<compile_context>
chip_gen: v6e
topology: v6e:2x2x1
jax: 0.10.0
libtpu: 0.0.40
codegen_flags: <defaults>
</compile_context>

<pallas_src>
import jax
import jax.numpy as jnp
from jax.experimental import pallas as pl
from jax.experimental.pallas import tpu as pltpu

_EPS = 1e-5


def _vmem():
    # Whole (tiny) array resident in VMEM; no tiling needed at these shapes.
    return pl.BlockSpec(memory_space=pltpu.MemorySpace.VMEM)


def _ne_all(c, positions):
    """Elementwise (c != p) for every static python int p in positions."""
    m = c != positions[0]
    for q in positions[1:]:
        m = m & (c != q)
    return m


def _make_unet_kernel(L):
    """Builds the fused UNet1D forward kernel.  Activations are (C, N*L)."""

    def shift_mats(nl, l):
        # 0/1 matrices so that x @ m_prev / x @ m_next give x shifted by -1/+1
        # along L *within each sample*, with zero columns at sample edges
        # (== Conv1d padding=1).  Built from 2-D iota + compares; the matmuls
        # run on the otherwise-idle MXU (no unaligned lane slices).
        r = jax.lax.broadcasted_iota(jnp.int32, (nl, nl), 0)
        c = jax.lax.broadcasted_iota(jnp.int32, (nl, nl), 1)
        n = nl // l
        starts = [s * l for s in range(n)]
        ends = [(s + 1) * l - 1 for s in range(n)]
        m_prev = jnp.where((c == r + 1) & _ne_all(c, starts), 1.0, 0.0)
        m_next = jnp.where((r == c + 1) & _ne_all(c, ends), 1.0, 0.0)
        return m_prev, m_next

    def conv3_relu_bn(x, l, w, p):
        """Conv1d(k=3, pad=1) + ReLU + BatchNorm1d (training-mode stats).

        x: (Cin, N*l) lane-dense activations (samples contiguous along lanes)
        w: (Cout, 3*Cin) im2col weight [tap0|tap1|tap2], or (3, Cout, 1) when
           Cin == 1 (VPU path, no MXU).
        p: (3, Cout, 1) = [conv bias, BN gamma, BN beta]
        """
        cin, nl = x.shape
        m_prev, m_next = shift_mats(nl, l)
        x_prev = jnp.dot(x, m_prev, preferred_element_type=jnp.float32)
        x_next = jnp.dot(x, m_next, preferred_element_type=jnp.float32)
        if cin == 1:
            # enc1: Cin == 1 -> three VPU broadcast-multiplies, skip the MXU.
            y = w[0] * x_prev + w[1] * x + w[2] * x_next + p[0]
        else:
            # Single MXU matmul per stage: (Cout, 3Cin) @ (3Cin, N*l).
            x2 = jnp.concatenate([x_prev, x, x_next], axis=0)
            y = jnp.dot(w, x2, preferred_element_type=jnp.float32) + p[0]
        y = jnp.maximum(y, 0.0)                               # ReLU
        # BatchNorm1d (training mode): biased batch stats per channel over all
        # N*l positions, then a single fused scale/shift pass over y.
        mean = jnp.mean(y, axis=1, keepdims=True)
        ctr = y - mean
        var = jnp.mean(ctr * ctr, axis=1, keepdims=True)
        scale = p[1] * jax.lax.rsqrt(var + _EPS)
        shift = p[2] - mean * scale
        return y * scale + shift

    def maxpool2(y):
        # nn.MaxPool1d(2): max of even/odd lane selections (0/1 MXU matmuls).
        nl = y.shape[1]
        r = jax.lax.broadcasted_iota(jnp.int32, (nl, nl // 2), 0)
        c = jax.lax.broadcasted_iota(jnp.int32, (nl, nl // 2), 1)
        s_even = jnp.where(r == 2 * c, 1.0, 0.0)
        s_odd = jnp.where(r == 2 * c + 1, 1.0, 0.0)
        return jnp.maximum(
            jnp.dot(y, s_even, preferred_element_type=jnp.float32),
            jnp.dot(y, s_odd, preferred_element_type=jnp.float32))

    def upsample2(y):
        # nn.Upsample(scale_factor=2, mode='nearest'): replication matmul.
        m = y.shape[1]
        r = jax.lax.broadcasted_iota(jnp.int32, (m, 2 * m), 0)
        c = jax.lax.broadcasted_iota(jnp.int32, (m, 2 * m), 1)
        rep = jnp.where((c == 2 * r) | (c == 2 * r + 1), 1.0, 0.0)
        return jnp.dot(y, rep, preferred_element_type=jnp.float32)

    def kernel(x_ref, we1, pe1, we2, pe2, we3, pe3,
               wd2, pd2, wd1, pd1, wf, bf, o_ref):
        x = x_ref[...]                                        # (1,  N*L)
        e1 = conv3_relu_bn(x,  L,      we1[...], pe1[...])    # (16, N*L)
        p1 = maxpool2(e1)                                     # (16, N*L/2)
        e2 = conv3_relu_bn(p1, L // 2, we2[...], pe2[...])    # (32, N*L/2)
        p2 = maxpool2(e2)                                     # (32, N*L/4)
        e3 = conv3_relu_bn(p2, L // 4, we3[...], pe3[...])    # (64, N*L/4)
        d2 = jnp.concatenate([upsample2(e3), e2], axis=0)     # (96, N*L/2)
        d2 = conv3_relu_bn(d2, L // 2, wd2[...], pd2[...])    # (32, N*L/2)
        d1 = jnp.concatenate([upsample2(d2), e1], axis=0)     # (48, N*L)
        d1 = conv3_relu_bn(d1, L,      wd1[...], pd1[...])    # (16, N*L)
        # Final Conv1d(16 -> 1, kernel_size=1): Cout=1 -> VPU broadcast-mul +
        # sublane reduce (no MXU), fused as the kernel epilogue.
        o_ref[...] = jnp.sum(d1 * wf[...], axis=0, keepdims=True) + bf[...]

    return kernel


def unet1d_forward(x, p):
    """x: (N, 1, L) float32, NCL layout like PyTorch.  Returns (N, 1, L)."""
    N, cin, L = x.shape
    assert cin == 1 and L % 4 == 0
    NL = N * L
    x2 = x.reshape(1, NL)                     # lane-dense (Cin=1, N*L)
    out = pl.pallas_call(
        _make_unet_kernel(L),
        out_shape=jax.ShapeDtypeStruct((1, NL), jnp.float32),
        in_specs=[_vmem()] * 13,
        out_specs=_vmem(),
    )(x2,
      p['enc1'][0], p['enc1'][1],
      p['enc2'][0], p['enc2'][1],
      p['enc3'][0], p['enc3'][1],
      p['dec2'][0], p['dec2'][1],
      p['dec1'][0], p['dec1'][1],
      p['final'][0], p['final'][1])
    return out.reshape(N, 1, L)


def init_params(key):
    """Deterministic PyTorch-Conv1d-style init; weights pre-arranged once
    into the kernel's im2col layouts (not per call)."""
    def conv_init(k, cout, cin, ksz):
        kw, kb = jax.random.split(k)
        bound = 1.0 / jnp.sqrt(jnp.float32(cin * ksz))
        w = jax.random.uniform(kw, (cout, cin, ksz), jnp.float32, -bound, bound)
        b = jax.random.uniform(kb, (cout,), jnp.float32, -bound, bound)
        return w, b

    def stage(k, cout, cin):
        w, b = conv_init(k, cout, cin, 3)
        if cin == 1:
            wk = jnp.transpose(w, (2, 0, 1))          # (3, Cout, 1) VPU path
        else:
            wk = jnp.concatenate(                     # (Cout, 3*Cin) im2col
                [w[:, :, 0], w[:, :, 1], w[:, :, 2]], axis=1)
        gamma = jnp.ones((cout,), jnp.float32)        # BN affine defaults
        beta = jnp.zeros((cout,), jnp.float32)
        pk = jnp.stack([b, gamma, beta], axis=0).reshape(3, cout, 1)
        return wk, pk

    keys = jax.random.split(key, 6)
    p = {
        'enc1': stage(keys[0], 16, 1),
        'enc2': stage(keys[1], 32, 16),
        'enc3': stage(keys[2], 64, 32),
        'dec2': stage(keys[3], 32, 64 + 32),
        'dec1': stage(keys[4], 16, 32 + 16),
    }
    wf, bf = conv_init(keys[5], 1, 16, 1)
    p['final'] = (wf[0, :, 0].reshape(16, 1), bf.reshape(1, 1))
    return p


if __name__ == "__main__":
    key = jax.random.PRNGKey(0)
    kx, kp = jax.random.split(key)
    x = jax.random.normal(kx, (2, 1, 16), jnp.float32)   # (N=2, C=1, L=16)
    params = init_params(kp)
    out = jax.jit(unet1d_forward)(x, params)
    jax.block_until_ready(out)
    assert out.shape == (2, 1, 16) and out.dtype == jnp.float32
    print("KERNEL_OK")
</pallas_src>

<mosaic_0001>
module attributes {stable_mosaic.version = 11 : i64} {
  func.func @kernel(%arg0: memref<1x32xf32, #tpu.memory_space<vmem>>, %arg1: memref<3x16x1xf32, #tpu.memory_space<vmem>>, %arg2: memref<3x16x1xf32, #tpu.memory_space<vmem>>, %arg3: memref<32x48xf32, #tpu.memory_space<vmem>>, %arg4: memref<3x32x1xf32, #tpu.memory_space<vmem>>, %arg5: memref<64x96xf32, #tpu.memory_space<vmem>>, %arg6: memref<3x64x1xf32, #tpu.memory_space<vmem>>, %arg7: memref<32x288xf32, #tpu.memory_space<vmem>>, %arg8: memref<3x32x1xf32, #tpu.memory_space<vmem>>, %arg9: memref<16x144xf32, #tpu.memory_space<vmem>>, %arg10: memref<3x16x1xf32, #tpu.memory_space<vmem>>, %arg11: memref<16x1xf32, #tpu.memory_space<vmem>>, %arg12: memref<1x1xf32, #tpu.memory_space<vmem>>, %arg13: memref<1x32xf32, #tpu.memory_space<vmem>>) attributes {dimension_semantics = [], scalar_prefetch = 0 : i64, scratch_operands = 0 : i64, tpu.core_type = #tpu.core_type<tc>} {
    %c0 = arith.constant 0 : index
    %c0_0 = arith.constant 0 : index
    %0 = vector.load %arg0[%c0, %c0_0] : memref<1x32xf32, #tpu.memory_space<vmem>>, vector<1x32xf32>
    %c0_1 = arith.constant 0 : index
    %c0_2 = arith.constant 0 : index
    %c0_3 = arith.constant 0 : index
    %1 = vector.load %arg1[%c0_1, %c0_2, %c0_3] : memref<3x16x1xf32, #tpu.memory_space<vmem>>, vector<3x16x1xf32>
    %c0_4 = arith.constant 0 : index
    %c0_5 = arith.constant 0 : index
    %c0_6 = arith.constant 0 : index
    %2 = vector.load %arg2[%c0_4, %c0_5, %c0_6] : memref<3x16x1xf32, #tpu.memory_space<vmem>>, vector<3x16x1xf32>
    %3 = tpu.iota {dimensions = array<i32: 0>} : vector<32x32xi32>
    %4 = tpu.iota {dimensions = array<i32: 1>} : vector<32x32xi32>
    %c1_i32 = arith.constant 1 : i32
    %5 = vector.broadcast %c1_i32 : i32 to vector<32x32xi32>
    %6 = arith.addi %3, %5 : vector<32x32xi32>
    %7 = arith.cmpi eq, %4, %6 : vector<32x32xi32>
    %c0_i32 = arith.constant 0 : i32
    %8 = vector.broadcast %c0_i32 : i32 to vector<32x32xi32>
    %9 = arith.cmpi ne, %4, %8 : vector<32x32xi32>
    %c16_i32 = arith.constant 16 : i32
    %10 = vector.broadcast %c16_i32 : i32 to vector<32x32xi32>
    %11 = arith.cmpi ne, %4, %10 : vector<32x32xi32>
    %12 = arith.andi %9, %11 : vector<32x32xi1>
    %13 = arith.andi %7, %12 : vector<32x32xi1>
    %cst = arith.constant 1.000000e+00 : f32
    %cst_7 = arith.constant 0.000000e+00 : f32
    %14 = vector.broadcast %cst : f32 to vector<32x32xf32>
    %15 = vector.broadcast %cst_7 : f32 to vector<32x32xf32>
    %16 = arith.select %13, %14, %15 : vector<32x32xi1>, vector<32x32xf32>
    %c1_i32_8 = arith.constant 1 : i32
    %17 = vector.broadcast %c1_i32_8 : i32 to vector<32x32xi32>
    %18 = arith.addi %4, %17 : vector<32x32xi32>
    %19 = arith.cmpi eq, %3, %18 : vector<32x32xi32>
    %c15_i32 = arith.constant 15 : i32
    %20 = vector.broadcast %c15_i32 : i32 to vector<32x32xi32>
    %21 = arith.cmpi ne, %4, %20 : vector<32x32xi32>
    %c31_i32 = arith.constant 31 : i32
    %22 = vector.broadcast %c31_i32 : i32 to vector<32x32xi32>
    %23 = arith.cmpi ne, %4, %22 : vector<32x32xi32>
    %24 = arith.andi %21, %23 : vector<32x32xi1>
    %25 = arith.andi %19, %24 : vector<32x32xi1>
    %cst_9 = arith.constant 1.000000e+00 : f32
    %cst_10 = arith.constant 0.000000e+00 : f32
    %26 = vector.broadcast %cst_9 : f32 to vector<32x32xf32>
    %27 = vector.broadcast %cst_10 : f32 to vector<32x32xf32>
    %28 = arith.select %25, %26, %27 : vector<32x32xi1>, vector<32x32xf32>
    %cst_11 = arith.constant dense<0.000000e+00> : vector<1x32xf32>
    %29 = tpu.matmul %0, %16, %cst_11 {dimension_numbers = #tpu.dot_dimension_numbers<[1], [0], [0], [1], [0, 0, 1, 1], [], []>} : vector<1x32xf32>, vector<32x32xf32>, vector<1x32xf32> -> vector<1x32xf32>
    %cst_12 = arith.constant dense<0.000000e+00> : vector<1x32xf32>
    %30 = tpu.matmul %0, %28, %cst_12 {dimension_numbers = #tpu.dot_dimension_numbers<[1], [0], [0], [1], [0, 0, 1, 1], [], []>} : vector<1x32xf32>, vector<32x32xf32>, vector<1x32xf32> -> vector<1x32xf32>
    %31 = vector.extract_strided_slice %1 {offsets = [0, 0, 0], sizes = [1, 16, 1], strides = [1, 1, 1]} : vector<3x16x1xf32> to vector<1x16x1xf32>
    %32 = vector.shape_cast %31 : vector<1x16x1xf32> to vector<16x1xf32>
    %33 = vector.broadcast %32 : vector<16x1xf32> to vector<16x32xf32>
    %34 = vector.broadcast %29 : vector<1x32xf32> to vector<16x32xf32>
    %35 = arith.mulf %33, %34 : vector<16x32xf32>
    %36 = vector.extract_strided_slice %1 {offsets = [1, 0, 0], sizes = [1, 16, 1], strides = [1, 1, 1]} : vector<3x16x1xf32> to vector<1x16x1xf32>
    %37 = vector.shape_cast %36 : vector<1x16x1xf32> to vector<16x1xf32>
    %38 = vector.broadcast %37 : vector<16x1xf32> to vector<16x32xf32>
    %39 = vector.broadcast %0 : vector<1x32xf32> to vector<16x32xf32>
    %40 = arith.mulf %38, %39 : vector<16x32xf32>
    %41 = arith.addf %35, %40 : vector<16x32xf32>
    %42 = vector.extract_strided_slice %1 {offsets = [2, 0, 0], sizes = [1, 16, 1], strides = [1, 1, 1]} : vector<3x16x1xf32> to vector<1x16x1xf32>
    %43 = vector.shape_cast %42 : vector<1x16x1xf32> to vector<16x1xf32>
    %44 = vector.broadcast %43 : vector<16x1xf32> to vector<16x32xf32>
    %45 = vector.broadcast %30 : vector<1x32xf32> to vector<16x32xf32>
    %46 = arith.mulf %44, %45 : vector<16x32xf32>
    %47 = arith.addf %41, %46 : vector<16x32xf32>
    %48 = vector.extract_strided_slice %2 {offsets = [0, 0, 0], sizes = [1, 16, 1], strides = [1, 1, 1]} : vector<3x16x1xf32> to vector<1x16x1xf32>
    %49 = vector.shape_cast %48 : vector<1x16x1xf32> to vector<16x1xf32>
    %50 = vector.broadcast %49 : vector<16x1xf32> to vector<16x32xf32>
    %51 = arith.addf %47, %50 : vector<16x32xf32>
    %cst_13 = arith.constant 0.000000e+00 : f32
    %52 = vector.broadcast %cst_13 : f32 to vector<16x32xf32>
    %53 = arith.maximumf %51, %52 : vector<16x32xf32>
    %cst_14 = arith.constant dense<0.000000e+00> : vector<16xf32>
    %54 = vector.multi_reduction <add>, %53, %cst_14 [1] : vector<16x32xf32> to vector<16xf32>
    %55 = vector.shape_cast %54 : vector<16xf32> to vector<16x1xf32>
    %cst_15 = arith.constant 3.200000e+01 : f32
    %56 = vector.broadcast %cst_15 : f32 to vector<16x1xf32>
    %57 = arith.divf %55, %56 : vector<16x1xf32>
    %58 = vector.broadcast %57 : vector<16x1xf32> to vector<16x32xf32>
    %59 = arith.subf %53, %58 : vector<16x32xf32>
    %60 = arith.mulf %59, %59 : vector<16x32xf32>
    %cst_16 = arith.constant dense<0.000000e+00> : vector<16xf32>
    %61 = vector.multi_reduction <add>, %60, %cst_16 [1] : vector<16x32xf32> to vector<16xf32>
    %62 = vector.shape_cast %61 : vector<16xf32> to vector<16x1xf32>
    %cst_17 = arith.constant 3.200000e+01 : f32
    %63 = vector.broadcast %cst_17 : f32 to vector<16x1xf32>
    %64 = arith.divf %62, %63 : vector<16x1xf32>
    %65 = vector.extract_strided_slice %2 {offsets = [1, 0, 0], sizes = [1, 16, 1], strides = [1, 1, 1]} : vector<3x16x1xf32> to vector<1x16x1xf32>
    %66 = vector.shape_cast %65 : vector<1x16x1xf32> to vector<16x1xf32>
    %cst_18 = arith.constant 9.99999974E-6 : f32
    %67 = vector.broadcast %cst_18 : f32 to vector<16x1xf32>
    %68 = arith.addf %64, %67 : vector<16x1xf32>
    %69 = math.rsqrt %68 : vector<16x1xf32>
    %70 = arith.mulf %66, %69 : vector<16x1xf32>
    %71 = vector.extract_strided_slice %2 {offsets = [2, 0, 0], sizes = [1, 16, 1], strides = [1, 1, 1]} : vector<3x16x1xf32> to vector<1x16x1xf32>
    %72 = vector.shape_cast %71 : vector<1x16x1xf32> to vector<16x1xf32>
    %73 = arith.mulf %57, %70 : vector<16x1xf32>
    %74 = arith.subf %72, %73 : vector<16x1xf32>
    %75 = vector.broadcast %70 : vector<16x1xf32> to vector<16x32xf32>
    %76 = arith.mulf %53, %75 : vector<16x32xf32>
    %77 = vector.broadcast %74 : vector<16x1xf32> to vector<16x32xf32>
    %78 = arith.addf %76, %77 : vector<16x32xf32>
    %79 = tpu.iota {dimensions = array<i32: 0>} : vector<32x16xi32>
    %80 = tpu.iota {dimensions = array<i32: 1>} : vector<32x16xi32>
    %c2_i32 = arith.constant 2 : i32
    %81 = vector.broadcast %c2_i32 : i32 to vector<32x16xi32>
    %82 = arith.muli %81, %80 : vector<32x16xi32>
    %83 = arith.cmpi eq, %79, %82 : vector<32x16xi32>
    %cst_19 = arith.constant 1.000000e+00 : f32
    %cst_20 = arith.constant 0.000000e+00 : f32
    %84 = vector.broadcast %cst_19 : f32 to vector<32x16xf32>
    %85 = vector.broadcast %cst_20 : f32 to vector<32x16xf32>
    %86 = arith.select %83, %84, %85 : vector<32x16xi1>, vector<32x16xf32>
    %c2_i32_21 = arith.constant 2 : i32
    %87 = vector.broadcast %c2_i32_21 : i32 to vector<32x16xi32>
    %88 = arith.muli %87, %80 : vector<32x16xi32>
    %c1_i32_22 = arith.constant 1 : i32
    %89 = vector.broadcast %c1_i32_22 : i32 to vector<32x16xi32>
    %90 = arith.addi %88, %89 : vector<32x16xi32>
    %91 = arith.cmpi eq, %79, %90 : vector<32x16xi32>
    %cst_23 = arith.constant 1.000000e+00 : f32
    %cst_24 = arith.constant 0.000000e+00 : f32
    %92 = vector.broadcast %cst_23 : f32 to vector<32x16xf32>
    %93 = vector.broadcast %cst_24 : f32 to vector<32x16xf32>
    %94 = arith.select %91, %92, %93 : vector<32x16xi1>, vector<32x16xf32>
    %cst_25 = arith.constant dense<0.000000e+00> : vector<16x16xf32>
    %95 = tpu.matmul %78, %86, %cst_25 {dimension_numbers = #tpu.dot_dimension_numbers<[1], [0], [0], [1], [0, 0, 1, 1], [], []>} : vector<16x32xf32>, vector<32x16xf32>, vector<16x16xf32> -> vector<16x16xf32>
    %cst_26 = arith.constant dense<0.000000e+00> : vector<16x16xf32>
    %96 = tpu.matmul %78, %94, %cst_26 {dimension_numbers = #tpu.dot_dimension_numbers<[1], [0], [0], [1], [0, 0, 1, 1], [], []>} : vector<16x32xf32>, vector<32x16xf32>, vector<16x16xf32> -> vector<16x16xf32>
    %97 = arith.maximumf %95, %96 : vector<16x16xf32>
    %c0_27 = arith.constant 0 : index
    %c0_28 = arith.constant 0 : index
    %98 = vector.load %arg3[%c0_27, %c0_28] : memref<32x48xf32, #tpu.memory_space<vmem>>, vector<32x48xf32>
    %c0_29 = arith.constant 0 : index
    %c0_30 = arith.constant 0 : index
    %c0_31 = arith.constant 0 : index
    %99 = vector.load %arg4[%c0_29, %c0_30, %c0_31] : memref<3x32x1xf32, #tpu.memory_space<vmem>>, vector<3x32x1xf32>
    %100 = tpu.iota {dimensions = array<i32: 0>} : vector<16x16xi32>
    %101 = tpu.iota {dimensions = array<i32: 1>} : vector<16x16xi32>
    %c1_i32_32 = arith.constant 1 : i32
    %102 = vector.broadcast %c1_i32_32 : i32 to vector<16x16xi32>
    %103 = arith.addi %100, %102 : vector<16x16xi32>
    %104 = arith.cmpi eq, %101, %103 : vector<16x16xi32>
    %c0_i32_33 = arith.constant 0 : i32
    %105 = vector.broadcast %c0_i32_33 : i32 to vector<16x16xi32>
    %106 = arith.cmpi ne, %101, %105 : vector<16x16xi32>
    %c8_i32 = arith.constant 8 : i32
    %107 = vector.broadcast %c8_i32 : i32 to vector<16x16xi32>
    %108 = arith.cmpi ne, %101, %107 : vector<16x16xi32>
    %109 = arith.andi %106, %108 : vector<16x16xi1>
    %110 = arith.andi %104, %109 : vector<16x16xi1>
    %cst_34 = arith.constant 1.000000e+00 : f32
    %cst_35 = arith.constant 0.000000e+00 : f32
    %111 = vector.broadcast %cst_34 : f32 to vector<16x16xf32>
    %112 = vector.broadcast %cst_35 : f32 to vector<16x16xf32>
    %113 = arith.select %110, %111, %112 : vector<16x16xi1>, vector<16x16xf32>
    %c1_i32_36 = arith.constant 1 : i32
    %114 = vector.broadcast %c1_i32_36 : i32 to vector<16x16xi32>
    %115 = arith.addi %101, %114 : vector<16x16xi32>
    %116 = arith.cmpi eq, %100, %115 : vector<16x16xi32>
    %c7_i32 = arith.constant 7 : i32
    %117 = vector.broadcast %c7_i32 : i32 to vector<16x16xi32>
    %118 = arith.cmpi ne, %101, %117 : vector<16x16xi32>
    %c15_i32_37 = arith.constant 15 : i32
    %119 = vector.broadcast %c15_i32_37 : i32 to vector<16x16xi32>
    %120 = arith.cmpi ne, %101, %119 : vector<16x16xi32>
    %121 = arith.andi %118, %120 : vector<16x16xi1>
    %122 = arith.andi %116, %121 : vector<16x16xi1>
    %cst_38 = arith.constant 1.000000e+00 : f32
    %cst_39 = arith.constant 0.000000e+00 : f32
    %123 = vector.broadcast %cst_38 : f32 to vector<16x16xf32>
    %124 = vector.broadcast %cst_39 : f32 to vector<16x16xf32>
    %125 = arith.select %122, %123, %124 : vector<16x16xi1>, vector<16x16xf32>
    %cst_40 = arith.constant dense<0.000000e+00> : vector<16x16xf32>
    %126 = tpu.matmul %97, %113, %cst_40 {dimension_numbers = #tpu.dot_dimension_numbers<[1], [0], [0], [1], [0, 0, 1, 1], [], []>} : vector<16x16xf32>, vector<16x16xf32>, vector<16x16xf32> -> vector<16x16xf32>
    %cst_41 = arith.constant dense<0.000000e+00> : vector<16x16xf32>
    %127 = tpu.matmul %97, %125, %cst_41 {dimension_numbers = #tpu.dot_dimension_numbers<[1], [0], [0], [1], [0, 0, 1, 1], [], []>} : vector<16x16xf32>, vector<16x16xf32>, vector<16x16xf32> -> vector<16x16xf32>
    %128 = tpu.concatenate %126, %97, %127 in 0 : vector<16x16xf32>, vector<16x16xf32>, vector<16x16xf32> -> vector<48x16xf32>
    %cst_42 = arith.constant dense<0.000000e+00> : vector<32x16xf32>
    %129 = tpu.matmul %98, %128, %cst_42 {dimension_numbers = #tpu.dot_dimension_numbers<[1], [0], [0], [1], [0, 0, 1, 1], [], []>} : vector<32x48xf32>, vector<48x16xf32>, vector<32x16xf32> -> vector<32x16xf32>
    %130 = vector.extract_strided_slice %99 {offsets = [0, 0, 0], sizes = [1, 32, 1], strides = [1, 1, 1]} : vector<3x32x1xf32> to vector<1x32x1xf32>
    %131 = vector.shape_cast %130 : vector<1x32x1xf32> to vector<32x1xf32>
    %132 = vector.broadcast %131 : vector<32x1xf32> to vector<32x16xf32>
    %133 = arith.addf %129, %132 : vector<32x16xf32>
    %cst_43 = arith.constant 0.000000e+00 : f32
    %134 = vector.broadcast %cst_43 : f32 to vector<32x16xf32>
    %135 = arith.maximumf %133, %134 : vector<32x16xf32>
    %cst_44 = arith.constant dense<0.000000e+00> : vector<32xf32>
    %136 = vector.multi_reduction <add>, %135, %cst_44 [1] : vector<32x16xf32> to vector<32xf32>
    %137 = vector.shape_cast %136 : vector<32xf32> to vector<32x1xf32>
    %cst_45 = arith.constant 1.600000e+01 : f32
    %138 = vector.broadcast %cst_45 : f32 to vector<32x1xf32>
    %139 = arith.divf %137, %138 : vector<32x1xf32>
    %140 = vector.broadcast %139 : vector<32x1xf32> to vector<32x16xf32>
    %141 = arith.subf %135, %140 : vector<32x16xf32>
    %142 = arith.mulf %141, %141 : vector<32x16xf32>
    %cst_46 = arith.constant dense<0.000000e+00> : vector<32xf32>
    %143 = vector.multi_reduction <add>, %142, %cst_46 [1] : vector<32x16xf32> to vector<32xf32>
    %144 = vector.shape_cast %143 : vector<32xf32> to vector<32x1xf32>
    %cst_47 = arith.constant 1.600000e+01 : f32
    %145 = vector.broadcast %cst_47 : f32 to vector<32x1xf32>
    %146 = arith.divf %144, %145 : vector<32x1xf32>
    %147 = vector.extract_strided_slice %99 {offsets = [1, 0, 0], sizes = [1, 32, 1], strides = [1, 1, 1]} : vector<3x32x1xf32> to vector<1x32x1xf32>
    %148 = vector.shape_cast %147 : vector<1x32x1xf32> to vector<32x1xf32>
    %cst_48 = arith.constant 9.99999974E-6 : f32
    %149 = vector.broadcast %cst_48 : f32 to vector<32x1xf32>
    %150 = arith.addf %146, %149 : vector<32x1xf32>
    %151 = math.rsqrt %150 : vector<32x1xf32>
    %152 = arith.mulf %148, %151 : vector<32x1xf32>
    %153 = vector.extract_strided_slice %99 {offsets = [2, 0, 0], sizes = [1, 32, 1], strides = [1, 1, 1]} : vector<3x32x1xf32> to vector<1x32x1xf32>
    %154 = vector.shape_cast %153 : vector<1x32x1xf32> to vector<32x1xf32>
    %155 = arith.mulf %139, %152 : vector<32x1xf32>
    %156 = arith.subf %154, %155 : vector<32x1xf32>
    %157 = vector.broadcast %152 : vector<32x1xf32> to vector<32x16xf32>
    %158 = arith.mulf %135, %157 : vector<32x16xf32>
    %159 = vector.broadcast %156 : vector<32x1xf32> to vector<32x16xf32>
    %160 = arith.addf %158, %159 : vector<32x16xf32>
    %161 = tpu.iota {dimensions = array<i32: 0>} : vector<16x8xi32>
    %162 = tpu.iota {dimensions = array<i32: 1>} : vector<16x8xi32>
    %c2_i32_49 = arith.constant 2 : i32
    %163 = vector.broadcast %c2_i32_49 : i32 to vector<16x8xi32>
    %164 = arith.muli %163, %162 : vector<16x8xi32>
    %165 = arith.cmpi eq, %161, %164 : vector<16x8xi32>
    %cst_50 = arith.constant 1.000000e+00 : f32
    %cst_51 = arith.constant 0.000000e+00 : f32
    %166 = vector.broadcast %cst_50 : f32 to vector<16x8xf32>
    %167 = vector.broadcast %cst_51 : f32 to vector<16x8xf32>
    %168 = arith.select %165, %166, %167 : vector<16x8xi1>, vector<16x8xf32>
    %c2_i32_52 = arith.constant 2 : i32
    %169 = vector.broadcast %c2_i32_52 : i32 to vector<16x8xi32>
    %170 = arith.muli %169, %162 : vector<16x8xi32>
    %c1_i32_53 = arith.constant 1 : i32
    %171 = vector.broadcast %c1_i32_53 : i32 to vector<16x8xi32>
    %172 = arith.addi %170, %171 : vector<16x8xi32>
    %173 = arith.cmpi eq, %161, %172 : vector<16x8xi32>
    %cst_54 = arith.constant 1.000000e+00 : f32
    %cst_55 = arith.constant 0.000000e+00 : f32
    %174 = vector.broadcast %cst_54 : f32 to vector<16x8xf32>
    %175 = vector.broadcast %cst_55 : f32 to vector<16x8xf32>
    %176 = arith.select %173, %174, %175 : vector<16x8xi1>, vector<16x8xf32>
    %cst_56 = arith.constant dense<0.000000e+00> : vector<32x8xf32>
    %177 = tpu.matmul %160, %168, %cst_56 {dimension_numbers = #tpu.dot_dimension_numbers<[1], [0], [0], [1], [0, 0, 1, 1], [], []>} : vector<32x16xf32>, vector<16x8xf32>, vector<32x8xf32> -> vector<32x8xf32>
    %cst_57 = arith.constant dense<0.000000e+00> : vector<32x8xf32>
    %178 = tpu.matmul %160, %176, %cst_57 {dimension_numbers = #tpu.dot_dimension_numbers<[1], [0], [0], [1], [0, 0, 1, 1], [], []>} : vector<32x16xf32>, vector<16x8xf32>, vector<32x8xf32> -> vector<32x8xf32>
    %179 = arith.maximumf %177, %178 : vector<32x8xf32>
    %c0_58 = arith.constant 0 : index
    %c0_59 = arith.constant 0 : index
    %180 = vector.load %arg5[%c0_58, %c0_59] : memref<64x96xf32, #tpu.memory_space<vmem>>, vector<64x96xf32>
    %c0_60 = arith.constant 0 : index
    %c0_61 = arith.constant 0 : index
    %c0_62 = arith.constant 0 : index
    %181 = vector.load %arg6[%c0_60, %c0_61, %c0_62] : memref<3x64x1xf32, #tpu.memory_space<vmem>>, vector<3x64x1xf32>
    %182 = tpu.iota {dimensions = array<i32: 0>} : vector<8x8xi32>
    %183 = tpu.iota {dimensions = array<i32: 1>} : vector<8x8xi32>
    %c1_i32_63 = arith.constant 1 : i32
    %184 = vector.broadcast %c1_i32_63 : i32 to vector<8x8xi32>
    %185 = arith.addi %182, %184 : vector<8x8xi32>
    %186 = arith.cmpi eq, %183, %185 : vector<8x8xi32>
    %c0_i32_64 = arith.constant 0 : i32
    %187 = vector.broadcast %c0_i32_64 : i32 to vector<8x8xi32>
    %188 = arith.cmpi ne, %183, %187 : vector<8x8xi32>
    %c4_i32 = arith.constant 4 : i32
    %189 = vector.broadcast %c4_i32 : i32 to vector<8x8xi32>
    %190 = arith.cmpi ne, %183, %189 : vector<8x8xi32>
    %191 = arith.andi %188, %190 : vector<8x8xi1>
    %192 = arith.andi %186, %191 : vector<8x8xi1>
    %cst_65 = arith.constant 1.000000e+00 : f32
    %cst_66 = arith.constant 0.000000e+00 : f32
    %193 = vector.broadcast %cst_65 : f32 to vector<8x8xf32>
    %194 = vector.broadcast %cst_66 : f32 to vector<8x8xf32>
    %195 = arith.select %192, %193, %194 : vector<8x8xi1>, vector<8x8xf32>
    %c1_i32_67 = arith.constant 1 : i32
    %196 = vector.broadcast %c1_i32_67 : i32 to vector<8x8xi32>
    %197 = arith.addi %183, %196 : vector<8x8xi32>
    %198 = arith.cmpi eq, %182, %197 : vector<8x8xi32>
    %c3_i32 = arith.constant 3 : i32
    %199 = vector.broadcast %c3_i32 : i32 to vector<8x8xi32>
    %200 = arith.cmpi ne, %183, %199 : vector<8x8xi32>
    %c7_i32_68 = arith.constant 7 : i32
    %201 = vector.broadcast %c7_i32_68 : i32 to vector<8x8xi32>
    %202 = arith.cmpi ne, %183, %201 : vector<8x8xi32>
    %203 = arith.andi %200, %202 : vector<8x8xi1>
    %204 = arith.andi %198, %203 : vector<8x8xi1>
    %cst_69 = arith.constant 1.000000e+00 : f32
    %cst_70 = arith.constant 0.000000e+00 : f32
    %205 = vector.broadcast %cst_69 : f32 to vector<8x8xf32>
    %206 = vector.broadcast %cst_70 : f32 to vector<8x8xf32>
    %207 = arith.select %204, %205, %206 : vector<8x8xi1>, vector<8x8xf32>
    %cst_71 = arith.constant dense<0.000000e+00> : vector<32x8xf32>
    %208 = tpu.matmul %179, %195, %cst_71 {dimension_numbers = #tpu.dot_dimension_numbers<[1], [0], [0], [1], [0, 0, 1, 1], [], []>} : vector<32x8xf32>, vector<8x8xf32>, vector<32x8xf32> -> vector<32x8xf32>
    %cst_72 = arith.constant dense<0.000000e+00> : vector<32x8xf32>
    %209 = tpu.matmul %179, %207, %cst_72 {dimension_numbers = #tpu.dot_dimension_numbers<[1], [0], [0], [1], [0, 0, 1, 1], [], []>} : vector<32x8xf32>, vector<8x8xf32>, vector<32x8xf32> -> vector<32x8xf32>
    %210 = tpu.concatenate %208, %179, %209 in 0 : vector<32x8xf32>, vector<32x8xf32>, vector<32x8xf32> -> vector<96x8xf32>
    %cst_73 = arith.constant dense<0.000000e+00> : vector<64x8xf32>
    %211 = tpu.matmul %180, %210, %cst_73 {dimension_numbers = #tpu.dot_dimension_numbers<[1], [0], [0], [1], [0, 0, 1, 1], [], []>} : vector<64x96xf32>, vector<96x8xf32>, vector<64x8xf32> -> vector<64x8xf32>
    %212 = vector.extract_strided_slice %181 {offsets = [0, 0, 0], sizes = [1, 64, 1], strides = [1, 1, 1]} : vector<3x64x1xf32> to vector<1x64x1xf32>
    %213 = vector.shape_cast %212 : vector<1x64x1xf32> to vector<64x1xf32>
    %214 = vector.broadcast %213 : vector<64x1xf32> to vector<64x8xf32>
    %215 = arith.addf %211, %214 : vector<64x8xf32>
    %cst_74 = arith.constant 0.000000e+00 : f32
    %216 = vector.broadcast %cst_74 : f32 to vector<64x8xf32>
    %217 = arith.maximumf %215, %216 : vector<64x8xf32>
    %cst_75 = arith.constant dense<0.000000e+00> : vector<64xf32>
    %218 = vector.multi_reduction <add>, %217, %cst_75 [1] : vector<64x8xf32> to vector<64xf32>
    %219 = vector.shape_cast %218 : vector<64xf32> to vector<64x1xf32>
    %cst_76 = arith.constant 8.000000e+00 : f32
    %220 = vector.broadcast %cst_76 : f32 to vector<64x1xf32>
    %221 = arith.divf %219, %220 : vector<64x1xf32>
    %222 = vector.broadcast %221 : vector<64x1xf32> to vector<64x8xf32>
    %223 = arith.subf %217, %222 : vector<64x8xf32>
    %224 = arith.mulf %223, %223 : vector<64x8xf32>
    %cst_77 = arith.constant dense<0.000000e+00> : vector<64xf32>
    %225 = vector.multi_reduction <add>, %224, %cst_77 [1] : vector<64x8xf32> to vector<64xf32>
    %226 = vector.shape_cast %225 : vector<64xf32> to vector<64x1xf32>
    %cst_78 = arith.constant 8.000000e+00 : f32
    %227 = vector.broadcast %cst_78 : f32 to vector<64x1xf32>
    %228 = arith.divf %226, %227 : vector<64x1xf32>
    %229 = vector.extract_strided_slice %181 {offsets = [1, 0, 0], sizes = [1, 64, 1], strides = [1, 1, 1]} : vector<3x64x1xf32> to vector<1x64x1xf32>
    %230 = vector.shape_cast %229 : vector<1x64x1xf32> to vector<64x1xf32>
    %cst_79 = arith.constant 9.99999974E-6 : f32
    %231 = vector.broadcast %cst_79 : f32 to vector<64x1xf32>
    %232 = arith.addf %228, %231 : vector<64x1xf32>
    %233 = math.rsqrt %232 : vector<64x1xf32>
    %234 = arith.mulf %230, %233 : vector<64x1xf32>
    %235 = vector.extract_strided_slice %181 {offsets = [2, 0, 0], sizes = [1, 64, 1], strides = [1, 1, 1]} : vector<3x64x1xf32> to vector<1x64x1xf32>
    %236 = vector.shape_cast %235 : vector<1x64x1xf32> to vector<64x1xf32>
    %237 = arith.mulf %221, %234 : vector<64x1xf32>
    %238 = arith.subf %236, %237 : vector<64x1xf32>
    %239 = vector.broadcast %234 : vector<64x1xf32> to vector<64x8xf32>
    %240 = arith.mulf %217, %239 : vector<64x8xf32>
    %241 = vector.broadcast %238 : vector<64x1xf32> to vector<64x8xf32>
    %242 = arith.addf %240, %241 : vector<64x8xf32>
    %243 = tpu.iota {dimensions = array<i32: 0>} : vector<8x16xi32>
    %244 = tpu.iota {dimensions = array<i32: 1>} : vector<8x16xi32>
    %c2_i32_80 = arith.constant 2 : i32
    %245 = vector.broadcast %c2_i32_80 : i32 to vector<8x16xi32>
    %246 = arith.muli %245, %243 : vector<8x16xi32>
    %247 = arith.cmpi eq, %244, %246 : vector<8x16xi32>
    %c2_i32_81 = arith.constant 2 : i32
    %248 = vector.broadcast %c2_i32_81 : i32 to vector<8x16xi32>
    %249 = arith.muli %248, %243 : vector<8x16xi32>
    %c1_i32_82 = arith.constant 1 : i32
    %250 = vector.broadcast %c1_i32_82 : i32 to vector<8x16xi32>
    %251 = arith.addi %249, %250 : vector<8x16xi32>
    %252 = arith.cmpi eq, %244, %251 : vector<8x16xi32>
    %253 = arith.ori %247, %252 : vector<8x16xi1>
    %cst_83 = arith.constant 1.000000e+00 : f32
    %cst_84 = arith.constant 0.000000e+00 : f32
    %254 = vector.broadcast %cst_83 : f32 to vector<8x16xf32>
    %255 = vector.broadcast %cst_84 : f32 to vector<8x16xf32>
    %256 = arith.select %253, %254, %255 : vector<8x16xi1>, vector<8x16xf32>
    %cst_85 = arith.constant dense<0.000000e+00> : vector<64x16xf32>
    %257 = tpu.matmul %242, %256, %cst_85 {dimension_numbers = #tpu.dot_dimension_numbers<[1], [0], [0], [1], [0, 0, 1, 1], [], []>} : vector<64x8xf32>, vector<8x16xf32>, vector<64x16xf32> -> vector<64x16xf32>
    %258 = tpu.concatenate %257, %160 in 0 : vector<64x16xf32>, vector<32x16xf32> -> vector<96x16xf32>
    %c0_86 = arith.constant 0 : index
    %c0_87 = arith.constant 0 : index
    %259 = vector.load %arg7[%c0_86, %c0_87] : memref<32x288xf32, #tpu.memory_space<vmem>>, vector<32x288xf32>
    %c0_88 = arith.constant 0 : index
    %c0_89 = arith.constant 0 : index
    %c0_90 = arith.constant 0 : index
    %260 = vector.load %arg8[%c0_88, %c0_89, %c0_90] : memref<3x32x1xf32, #tpu.memory_space<vmem>>, vector<3x32x1xf32>
    %261 = tpu.iota {dimensions = array<i32: 0>} : vector<16x16xi32>
    %262 = tpu.iota {dimensions = array<i32: 1>} : vector<16x16xi32>
    %c1_i32_91 = arith.constant 1 : i32
    %263 = vector.broadcast %c1_i32_91 : i32 to vector<16x16xi32>
    %264 = arith.addi %261, %263 : vector<16x16xi32>
    %265 = arith.cmpi eq, %262, %264 : vector<16x16xi32>
    %c0_i32_92 = arith.constant 0 : i32
    %266 = vector.broadcast %c0_i32_92 : i32 to vector<16x16xi32>
    %267 = arith.cmpi ne, %262, %266 : vector<16x16xi32>
    %c8_i32_93 = arith.constant 8 : i32
    %268 = vector.broadcast %c8_i32_93 : i32 to vector<16x16xi32>
    %269 = arith.cmpi ne, %262, %268 : vector<16x16xi32>
    %270 = arith.andi %267, %269 : vector<16x16xi1>
    %271 = arith.andi %265, %270 : vector<16x16xi1>
    %cst_94 = arith.constant 1.000000e+00 : f32
    %cst_95 = arith.constant 0.000000e+00 : f32
    %272 = vector.broadcast %cst_94 : f32 to vector<16x16xf32>
    %273 = vector.broadcast %cst_95 : f32 to vector<16x16xf32>
    %274 = arith.select %271, %272, %273 : vector<16x16xi1>, vector<16x16xf32>
    %c1_i32_96 = arith.constant 1 : i32
    %275 = vector.broadcast %c1_i32_96 : i32 to vector<16x16xi32>
    %276 = arith.addi %262, %275 : vector<16x16xi32>
    %277 = arith.cmpi eq, %261, %276 : vector<16x16xi32>
    %c7_i32_97 = arith.constant 7 : i32
    %278 = vector.broadcast %c7_i32_97 : i32 to vector<16x16xi32>
    %279 = arith.cmpi ne, %262, %278 : vector<16x16xi32>
    %c15_i32_98 = arith.constant 15 : i32
    %280 = vector.broadcast %c15_i32_98 : i32 to vector<16x16xi32>
    %281 = arith.cmpi ne, %262, %280 : vector<16x16xi32>
    %282 = arith.andi %279, %281 : vector<16x16xi1>
    %283 = arith.andi %277, %282 : vector<16x16xi1>
    %cst_99 = arith.constant 1.000000e+00 : f32
    %cst_100 = arith.constant 0.000000e+00 : f32
    %284 = vector.broadcast %cst_99 : f32 to vector<16x16xf32>
    %285 = vector.broadcast %cst_100 : f32 to vector<16x16xf32>
    %286 = arith.select %283, %284, %285 : vector<16x16xi1>, vector<16x16xf32>
    %cst_101 = arith.constant dense<0.000000e+00> : vector<96x16xf32>
    %287 = tpu.matmul %258, %274, %cst_101 {dimension_numbers = #tpu.dot_dimension_numbers<[1], [0], [0], [1], [0, 0, 1, 1], [], []>} : vector<96x16xf32>, vector<16x16xf32>, vector<96x16xf32> -> vector<96x16xf32>
    %cst_102 = arith.constant dense<0.000000e+00> : vector<96x16xf32>
    %288 = tpu.matmul %258, %286, %cst_102 {dimension_numbers = #tpu.dot_dimension_numbers<[1], [0], [0], [1], [0, 0, 1, 1], [], []>} : vector<96x16xf32>, vector<16x16xf32>, vector<96x16xf32> -> vector<96x16xf32>
    %289 = tpu.concatenate %287, %258, %288 in 0 : vector<96x16xf32>, vector<96x16xf32>, vector<96x16xf32> -> vector<288x16xf32>
    %cst_103 = arith.constant dense<0.000000e+00> : vector<32x16xf32>
    %290 = tpu.matmul %259, %289, %cst_103 {dimension_numbers = #tpu.dot_dimension_numbers<[1], [0], [0], [1], [0, 0, 1, 1], [], []>} : vector<32x288xf32>, vector<288x16xf32>, vector<32x16xf32> -> vector<32x16xf32>
    %291 = vector.extract_strided_slice %260 {offsets = [0, 0, 0], sizes = [1, 32, 1], strides = [1, 1, 1]} : vector<3x32x1xf32> to vector<1x32x1xf32>
    %292 = vector.shape_cast %291 : vector<1x32x1xf32> to vector<32x1xf32>
    %293 = vector.broadcast %292 : vector<32x1xf32> to vector<32x16xf32>
    %294 = arith.addf %290, %293 : vector<32x16xf32>
    %cst_104 = arith.constant 0.000000e+00 : f32
    %295 = vector.broadcast %cst_104 : f32 to vector<32x16xf32>
    %296 = arith.maximumf %294, %295 : vector<32x16xf32>
    %cst_105 = arith.constant dense<0.000000e+00> : vector<32xf32>
    %297 = vector.multi_reduction <add>, %296, %cst_105 [1] : vector<32x16xf32> to vector<32xf32>
    %298 = vector.shape_cast %297 : vector<32xf32> to vector<32x1xf32>
    %cst_106 = arith.constant 1.600000e+01 : f32
    %299 = vector.broadcast %cst_106 : f32 to vector<32x1xf32>
    %300 = arith.divf %298, %299 : vector<32x1xf32>
    %301 = vector.broadcast %300 : vector<32x1xf32> to vector<32x16xf32>
    %302 = arith.subf %296, %301 : vector<32x16xf32>
    %303 = arith.mulf %302, %302 : vector<32x16xf32>
    %cst_107 = arith.constant dense<0.000000e+00> : vector<32xf32>
    %304 = vector.multi_reduction <add>, %303, %cst_107 [1] : vector<32x16xf32> to vector<32xf32>
    %305 = vector.shape_cast %304 : vector<32xf32> to vector<32x1xf32>
    %cst_108 = arith.constant 1.600000e+01 : f32
    %306 = vector.broadcast %cst_108 : f32 to vector<32x1xf32>
    %307 = arith.divf %305, %306 : vector<32x1xf32>
    %308 = vector.extract_strided_slice %260 {offsets = [1, 0, 0], sizes = [1, 32, 1], strides = [1, 1, 1]} : vector<3x32x1xf32> to vector<1x32x1xf32>
    %309 = vector.shape_cast %308 : vector<1x32x1xf32> to vector<32x1xf32>
    %cst_109 = arith.constant 9.99999974E-6 : f32
    %310 = vector.broadcast %cst_109 : f32 to vector<32x1xf32>
    %311 = arith.addf %307, %310 : vector<32x1xf32>
    %312 = math.rsqrt %311 : vector<32x1xf32>
    %313 = arith.mulf %309, %312 : vector<32x1xf32>
    %314 = vector.extract_strided_slice %260 {offsets = [2, 0, 0], sizes = [1, 32, 1], strides = [1, 1, 1]} : vector<3x32x1xf32> to vector<1x32x1xf32>
    %315 = vector.shape_cast %314 : vector<1x32x1xf32> to vector<32x1xf32>
    %316 = arith.mulf %300, %313 : vector<32x1xf32>
    %317 = arith.subf %315, %316 : vector<32x1xf32>
    %318 = vector.broadcast %313 : vector<32x1xf32> to vector<32x16xf32>
    %319 = arith.mulf %296, %318 : vector<32x16xf32>
    %320 = vector.broadcast %317 : vector<32x1xf32> to vector<32x16xf32>
    %321 = arith.addf %319, %320 : vector<32x16xf32>
    %322 = tpu.iota {dimensions = array<i32: 0>} : vector<16x32xi32>
    %323 = tpu.iota {dimensions = array<i32: 1>} : vector<16x32xi32>
    %c2_i32_110 = arith.constant 2 : i32
    %324 = vector.broadcast %c2_i32_110 : i32 to vector<16x32xi32>
    %325 = arith.muli %324, %322 : vector<16x32xi32>
    %326 = arith.cmpi eq, %323, %325 : vector<16x32xi32>
    %c2_i32_111 = arith.constant 2 : i32
    %327 = vector.broadcast %c2_i32_111 : i32 to vector<16x32xi32>
    %328 = arith.muli %327, %322 : vector<16x32xi32>
    %c1_i32_112 = arith.constant 1 : i32
    %329 = vector.broadcast %c1_i32_112 : i32 to vector<16x32xi32>
    %330 = arith.addi %328, %329 : vector<16x32xi32>
    %331 = arith.cmpi eq, %323, %330 : vector<16x32xi32>
    %332 = arith.ori %326, %331 : vector<16x32xi1>
    %cst_113 = arith.constant 1.000000e+00 : f32
    %cst_114 = arith.constant 0.000000e+00 : f32
    %333 = vector.broadcast %cst_113 : f32 to vector<16x32xf32>
    %334 = vector.broadcast %cst_114 : f32 to vector<16x32xf32>
    %335 = arith.select %332, %333, %334 : vector<16x32xi1>, vector<16x32xf32>
    %cst_115 = arith.constant dense<0.000000e+00> : vector<32x32xf32>
    %336 = tpu.matmul %321, %335, %cst_115 {dimension_numbers = #tpu.dot_dimension_numbers<[1], [0], [0], [1], [0, 0, 1, 1], [], []>} : vector<32x16xf32>, vector<16x32xf32>, vector<32x32xf32> -> vector<32x32xf32>
    %337 = tpu.concatenate %336, %78 in 0 : vector<32x32xf32>, vector<16x32xf32> -> vector<48x32xf32>
    %c0_116 = arith.constant 0 : index
    %c0_117 = arith.constant 0 : index
    %338 = vector.load %arg9[%c0_116, %c0_117] : memref<16x144xf32, #tpu.memory_space<vmem>>, vector<16x144xf32>
    %c0_118 = arith.constant 0 : index
    %c0_119 = arith.constant 0 : index
    %c0_120 = arith.constant 0 : index
    %339 = vector.load %arg10[%c0_118, %c0_119, %c0_120] : memref<3x16x1xf32, #tpu.memory_space<vmem>>, vector<3x16x1xf32>
    %340 = tpu.iota {dimensions = array<i32: 0>} : vector<32x32xi32>
    %341 = tpu.iota {dimensions = array<i32: 1>} : vector<32x32xi32>
    %c1_i32_121 = arith.constant 1 : i32
    %342 = vector.broadcast %c1_i32_121 : i32 to vector<32x32xi32>
    %343 = arith.addi %340, %342 : vector<32x32xi32>
    %344 = arith.cmpi eq, %341, %343 : vector<32x32xi32>
    %c0_i32_122 = arith.constant 0 : i32
    %345 = vector.broadcast %c0_i32_122 : i32 to vector<32x32xi32>
    %346 = arith.cmpi ne, %341, %345 : vector<32x32xi32>
    %c16_i32_123 = arith.constant 16 : i32
    %347 = vector.broadcast %c16_i32_123 : i32 to vector<32x32xi32>
    %348 = arith.cmpi ne, %341, %347 : vector<32x32xi32>
    %349 = arith.andi %346, %348 : vector<32x32xi1>
    %350 = arith.andi %344, %349 : vector<32x32xi1>
    %cst_124 = arith.constant 1.000000e+00 : f32
    %cst_125 = arith.constant 0.000000e+00 : f32
    %351 = vector.broadcast %cst_124 : f32 to vector<32x32xf32>
    %352 = vector.broadcast %cst_125 : f32 to vector<32x32xf32>
    %353 = arith.select %350, %351, %352 : vector<32x32xi1>, vector<32x32xf32>
    %c1_i32_126 = arith.constant 1 : i32
    %354 = vector.broadcast %c1_i32_126 : i32 to vector<32x32xi32>
    %355 = arith.addi %341, %354 : vector<32x32xi32>
    %356 = arith.cmpi eq, %340, %355 : vector<32x32xi32>
    %c15_i32_127 = arith.constant 15 : i32
    %357 = vector.broadcast %c15_i32_127 : i32 to vector<32x32xi32>
    %358 = arith.cmpi ne, %341, %357 : vector<32x32xi32>
    %c31_i32_128 = arith.constant 31 : i32
    %359 = vector.broadcast %c31_i32_128 : i32 to vector<32x32xi32>
    %360 = arith.cmpi ne, %341, %359 : vector<32x32xi32>
    %361 = arith.andi %358, %360 : vector<32x32xi1>
    %362 = arith.andi %356, %361 : vector<32x32xi1>
    %cst_129 = arith.constant 1.000000e+00 : f32
    %cst_130 = arith.constant 0.000000e+00 : f32
    %363 = vector.broadcast %cst_129 : f32 to vector<32x32xf32>
    %364 = vector.broadcast %cst_130 : f32 to vector<32x32xf32>
    %365 = arith.select %362, %363, %364 : vector<32x32xi1>, vector<32x32xf32>
    %cst_131 = arith.constant dense<0.000000e+00> : vector<48x32xf32>
    %366 = tpu.matmul %337, %353, %cst_131 {dimension_numbers = #tpu.dot_dimension_numbers<[1], [0], [0], [1], [0, 0, 1, 1], [], []>} : vector<48x32xf32>, vector<32x32xf32>, vector<48x32xf32> -> vector<48x32xf32>
    %cst_132 = arith.constant dense<0.000000e+00> : vector<48x32xf32>
    %367 = tpu.matmul %337, %365, %cst_132 {dimension_numbers = #tpu.dot_dimension_numbers<[1], [0], [0], [1], [0, 0, 1, 1], [], []>} : vector<48x32xf32>, vector<32x32xf32>, vector<48x32xf32> -> vector<48x32xf32>
    %368 = tpu.concatenate %366, %337, %367 in 0 : vector<48x32xf32>, vector<48x32xf32>, vector<48x32xf32> -> vector<144x32xf32>
    %cst_133 = arith.constant dense<0.000000e+00> : vector<16x32xf32>
    %369 = tpu.matmul %338, %368, %cst_133 {dimension_numbers = #tpu.dot_dimension_numbers<[1], [0], [0], [1], [0, 0, 1, 1], [], []>} : vector<16x144xf32>, vector<144x32xf32>, vector<16x32xf32> -> vector<16x32xf32>
    %370 = vector.extract_strided_slice %339 {offsets = [0, 0, 0], sizes = [1, 16, 1], strides = [1, 1, 1]} : vector<3x16x1xf32> to vector<1x16x1xf32>
    %371 = vector.shape_cast %370 : vector<1x16x1xf32> to vector<16x1xf32>
    %372 = vector.broadcast %371 : vector<16x1xf32> to vector<16x32xf32>
    %373 = arith.addf %369, %372 : vector<16x32xf32>
    %cst_134 = arith.constant 0.000000e+00 : f32
    %374 = vector.broadcast %cst_134 : f32 to vector<16x32xf32>
    %375 = arith.maximumf %373, %374 : vector<16x32xf32>
    %cst_135 = arith.constant dense<0.000000e+00> : vector<16xf32>
    %376 = vector.multi_reduction <add>, %375, %cst_135 [1] : vector<16x32xf32> to vector<16xf32>
    %377 = vector.shape_cast %376 : vector<16xf32> to vector<16x1xf32>
    %cst_136 = arith.constant 3.200000e+01 : f32
    %378 = vector.broadcast %cst_136 : f32 to vector<16x1xf32>
    %379 = arith.divf %377, %378 : vector<16x1xf32>
    %380 = vector.broadcast %379 : vector<16x1xf32> to vector<16x32xf32>
    %381 = arith.subf %375, %380 : vector<16x32xf32>
    %382 = arith.mulf %381, %381 : vector<16x32xf32>
    %cst_137 = arith.constant dense<0.000000e+00> : vector<16xf32>
    %383 = vector.multi_reduction <add>, %382, %cst_137 [1] : vector<16x32xf32> to vector<16xf32>
    %384 = vector.shape_cast %383 : vector<16xf32> to vector<16x1xf32>
    %cst_138 = arith.constant 3.200000e+01 : f32
    %385 = vector.broadcast %cst_138 : f32 to vector<16x1xf32>
    %386 = arith.divf %384, %385 : vector<16x1xf32>
    %387 = vector.extract_strided_slice %339 {offsets = [1, 0, 0], sizes = [1, 16, 1], strides = [1, 1, 1]} : vector<3x16x1xf32> to vector<1x16x1xf32>
    %388 = vector.shape_cast %387 : vector<1x16x1xf32> to vector<16x1xf32>
    %cst_139 = arith.constant 9.99999974E-6 : f32
    %389 = vector.broadcast %cst_139 : f32 to vector<16x1xf32>
    %390 = arith.addf %386, %389 : vector<16x1xf32>
    %391 = math.rsqrt %390 : vector<16x1xf32>
    %392 = arith.mulf %388, %391 : vector<16x1xf32>
    %393 = vector.extract_strided_slice %339 {offsets = [2, 0, 0], sizes = [1, 16, 1], strides = [1, 1, 1]} : vector<3x16x1xf32> to vector<1x16x1xf32>
    %394 = vector.shape_cast %393 : vector<1x16x1xf32> to vector<16x1xf32>
    %395 = arith.mulf %379, %392 : vector<16x1xf32>
    %396 = arith.subf %394, %395 : vector<16x1xf32>
    %397 = vector.broadcast %392 : vector<16x1xf32> to vector<16x32xf32>
    %398 = arith.mulf %375, %397 : vector<16x32xf32>
    %399 = vector.broadcast %396 : vector<16x1xf32> to vector<16x32xf32>
    %400 = arith.addf %398, %399 : vector<16x32xf32>
    %c0_140 = arith.constant 0 : index
    %c0_141 = arith.constant 0 : index
    %401 = vector.load %arg11[%c0_140, %c0_141] : memref<16x1xf32, #tpu.memory_space<vmem>>, vector<16x1xf32>
    %402 = vector.broadcast %401 : vector<16x1xf32> to vector<16x32xf32>
    %403 = arith.mulf %400, %402 : vector<16x32xf32>
    %cst_142 = arith.constant dense<0.000000e+00> : vector<32xf32>
    %404 = vector.multi_reduction <add>, %403, %cst_142 [0] : vector<16x32xf32> to vector<32xf32>
    %405 = vector.shape_cast %404 : vector<32xf32> to vector<1x32xf32>
    %c0_143 = arith.constant 0 : index
    %c0_144 = arith.constant 0 : index
    %406 = vector.load %arg12[%c0_143, %c0_144] : memref<1x1xf32, #tpu.memory_space<vmem>>, vector<1x1xf32>
    %407 = vector.broadcast %406 : vector<1x1xf32> to vector<1x32xf32>
    %408 = arith.addf %405, %407 : vector<1x32xf32>
    %c0_145 = arith.constant 0 : index
    %c0_146 = arith.constant 0 : index
    %409 = vector.load %arg13[%c0_145, %c0_146] : memref<1x32xf32, #tpu.memory_space<vmem>>, vector<1x32xf32>
    tpu.vector_store %arg13[%c0_145, %c0_146], %408 {strides = array<i32>} : memref<1x32xf32, #tpu.memory_space<vmem>>, vector<1x32xf32>,
    return
  }
}

</mosaic_0001>

<llo_original>
// kernel: unet1d_forward.1
$region0: #{unet1d_forward.1}
  #allocation0 [shape = 'u32[]', space=smem, size = 0x4, offset = 0x4, fixed_abs, tag = 'smem constant byte address 0x4 - core index']
  #allocation1 [shape = 'u32[144,128]{1,0:T(1,128)}', space=vmem, size = 0x12000, scoped, tag = 'internal scratch']
  #allocation2 [shape = 'f32[1,1]{1,0:T(1,128)S(1)}', space=vmem, size = 0x200, scoped, tag = 'scoped memory for unet1d_forward.1']
  %s0 = inlined_call_operand.vmem [shape: f32[1,32], index: 0, kind: input, shape index: {}]
  %s1 = inlined_call_operand.vmem [shape: f32[3,16,1], index: 1, kind: input, shape index: {}]
  %s2 = inlined_call_operand.vmem [shape: f32[3,16,1], index: 2, kind: input, shape index: {}]
  %s3 = inlined_call_operand.vmem [shape: f32[32,48], index: 3, kind: input, shape index: {}]
  %s4 = inlined_call_operand.vmem [shape: f32[3,32,1], index: 4, kind: input, shape index: {}]
  %s5 = inlined_call_operand.vmem [shape: f32[64,96], index: 5, kind: input, shape index: {}]
  %s6 = inlined_call_operand.vmem [shape: f32[3,64,1], index: 6, kind: input, shape index: {}]
  %s7 = inlined_call_operand.vmem [shape: f32[32,288], index: 7, kind: input, shape index: {}]
  %s8 = inlined_call_operand.vmem [shape: f32[3,32,1], index: 8, kind: input, shape index: {}]
  %s9 = inlined_call_operand.vmem [shape: f32[16,144], index: 9, kind: input, shape index: {}]
  %s10 = inlined_call_operand.vmem [shape: f32[3,16,1], index: 10, kind: input, shape index: {}]
  %s11 = inlined_call_operand.vmem [shape: f32[16,1], index: 11, kind: input, shape index: {}]
  %s12 = inlined_call_operand.<no memory space> [shape: f32[1,1], index: 12, kind: input, shape index: {}]
  %s13 = inlined_call_operand.vmem [shape: f32[1,32], index: 13, kind: output, shape index: {}]
  %s14 = sld [smem:[#allocation0]]
  $region62: #{unet1d_forward.1} parent=0
    _
  %s16 = ssub.s32 1, %s14
  %s17 = scalar_select 0, %s16, %s14
  %v18 = vstv %s12
  %19 = vst [vmem:[#allocation2] sm:$0x1] %v18
  // Predicated region
  $region2: #{unet1d_forward.1} parent=0 // pred_check
    _
  $region3: #{unet1d_forward.1} parent=0 // pred_check_branch
    %21 = sbr.rel (0) target = $region5
  $region4: #{unet1d_forward.1} parent=0 // pred_region
    _
  $region5: #{unet1d_forward.1} parent=0 // pred_fallthru
    _
  // Predicated region
  $region6: #{unet1d_forward.1} parent=0 // pred_check
    _
  $region7: #{unet1d_forward.1} parent=0 // pred_check_branch
    %23 = sbr.rel (0) target = $region9
  $region8: #{unet1d_forward.1} parent=0 // pred_region
    _
  $region9: #{unet1d_forward.1} parent=0 // pred_fallthru
    _
  // Predicated region
  $region10: #{unet1d_forward.1} parent=0 // pred_check
    _
  $region11: #{unet1d_forward.1} parent=0 // pred_check_branch
    %25 = sbr.rel (0) target = $region13
  $region12: #{unet1d_forward.1} parent=0 // pred_region
    _
  $region13: #{unet1d_forward.1} parent=0 // pred_fallthru
    _
  // Predicated region
  $region14: #{unet1d_forward.1} parent=0 // pred_check
    _
  $region15: #{unet1d_forward.1} parent=0 // pred_check_branch
    %27 = sbr.rel (0) target = $region17
  $region16: #{unet1d_forward.1} parent=0 // pred_region
    _
  $region17: #{unet1d_forward.1} parent=0 // pred_fallthru
    _
  // Predicated region
  $region18: #{unet1d_forward.1} parent=0 // pred_check
    _
  $region19: #{unet1d_forward.1} parent=0 // pred_check_branch
    %29 = sbr.rel (0) target = $region21
  $region20: #{unet1d_forward.1} parent=0 // pred_region
    _
  $region21: #{unet1d_forward.1} parent=0 // pred_fallthru
    _
  // Predicated region
  $region22: #{unet1d_forward.1} parent=0 // pred_check
    _
  $region23: #{unet1d_forward.1} parent=0 // pred_check_branch
    %31 = sbr.rel (0) target = $region25
  $region24: #{unet1d_forward.1} parent=0 // pred_region
    _
  $region25: #{unet1d_forward.1} parent=0 // pred_fallthru
    _
  // Predicated region
  $region26: #{unet1d_forward.1} parent=0 // pred_check
    _
  $region27: #{unet1d_forward.1} parent=0 // pred_check_branch
    %33 = sbr.rel (0) target = $region29
  $region28: #{unet1d_forward.1} parent=0 // pred_region
    _
  $region29: #{unet1d_forward.1} parent=0 // pred_fallthru
    _
  // Predicated region
  $region30: #{unet1d_forward.1} parent=0 // pred_check
    _
  $region31: #{unet1d_forward.1} parent=0 // pred_check_branch
    %35 = sbr.rel (0) target = $region33
  $region32: #{unet1d_forward.1} parent=0 // pred_region
    _
  $region33: #{unet1d_forward.1} parent=0 // pred_fallthru
    _
  // Predicated region
  $region34: #{unet1d_forward.1} parent=0 // pred_check
    _
  $region35: #{unet1d_forward.1} parent=0 // pred_check_branch
    %37 = sbr.rel (0) target = $region37
  $region36: #{unet1d_forward.1} parent=0 // pred_region
    _
  $region37: #{unet1d_forward.1} parent=0 // pred_fallthru
    _
  // Predicated region
  $region38: #{unet1d_forward.1} parent=0 // pred_check
    _
  $region39: #{unet1d_forward.1} parent=0 // pred_check_branch
    %39 = sbr.rel (0) target = $region41
  $region40: #{unet1d_forward.1} parent=0 // pred_region
    _
  $region41: #{unet1d_forward.1} parent=0 // pred_fallthru
    _
  // Predicated region
  $region42: #{unet1d_forward.1} parent=0 // pred_check
    _
  $region43: #{unet1d_forward.1} parent=0 // pred_check_branch
    %41 = sbr.rel (0) target = $region45
  $region44: #{unet1d_forward.1} parent=0 // pred_region
    _
  $region45: #{unet1d_forward.1} parent=0 // pred_fallthru
    _
  // Predicated region
  $region46: #{unet1d_forward.1} parent=0 // pred_check
    _
  $region47: #{unet1d_forward.1} parent=0 // pred_check_branch
    %43 = sbr.rel (0) target = $region49
  $region48: #{unet1d_forward.1} parent=0 // pred_region
    _
  $region49: #{unet1d_forward.1} parent=0 // pred_fallthru
    _
  // Predicated region
  $region50: #{unet1d_forward.1} parent=0 // pred_check
    _
  $region51: #{unet1d_forward.1} parent=0 // pred_check_branch
    %45 = sbr.rel (0) target = $region53
  $region52: #{unet1d_forward.1} parent=0 // pred_region
    _
  $region53: #{unet1d_forward.1} parent=0 // pred_fallthru
    _
  %v46 = vld [vmem:[%s0] sm:$0x1]
  %v47 = vld [vmem:[%s1] sm:$0xff]
  %v48 = vld [vmem:[%s1 + $0x8] sm:$0xff]
  %v49 = vld [vmem:[%s1 + $0x10] sm:$0xff]
  %v50 = vld [vmem:[%s1 + $0x18] sm:$0xff]
  %v51 = vld [vmem:[%s1 + $0x20] sm:$0xff]
  %v52 = vld [vmem:[%s1 + $0x28] sm:$0xff]
  %v53 = vld [vmem:[%s2] sm:$0xff]
  %v54 = vld [vmem:[%s2 + $0x8] sm:$0xff]
  %v55 = vld [vmem:[%s2 + $0x10] sm:$0xff]
  %v56 = vld [vmem:[%s2 + $0x18] sm:$0xff]
  %v57 = vld [vmem:[%s2 + $0x20] sm:$0xff]
  %v58 = vld [vmem:[%s2 + $0x28] sm:$0xff]
  %v59 = vlaneseq
  %v60 = vshrl.u32 %v59, 7
  %v61 = vadd.s32 %v60, 8
  %v62 = vadd.s32 %v60, 16
  %v63 = vadd.s32 %v60, 24
  %v64 = vlaneseq
  %v65 = vand.u32 %v64, 127
  %v66 = vadd.s32 %v60, 1
  %v67 = vadd.s32 %v61, 1
  %v68 = vadd.s32 %v62, 1
  %v69 = vadd.s32 %v63, 1
  %vm70 = vcmp.eq.s32.totalorder %v65, %v66
  %vm71 = vcmp.eq.s32.totalorder %v65, %v67
  %vm72 = vcmp.eq.s32.totalorder %v65, %v68
  %vm73 = vcmp.eq.s32.totalorder %v65, %v69
  %vm74 = vcmp.ne.s32.totalorder %v65, 0
  %vm75 = vcmp.ne.s32.totalorder %v65, 16
  %vm76 = vmand %vm74, %vm75
  %vm77 = vmand %vm70, %vm76
  %vm78 = vmand %vm71, %vm76
  %vm79 = vmand %vm72, %vm76
  %vm80 = vmand %vm73, %vm76
  %v81 = vsel %vm77, 1.0, 0.0
  %v82 = vsel %vm78, 1.0, 0.0
  %v83 = vsel %vm79, 1.0, 0.0
  %v84 = vsel %vm80, 1.0, 0.0
  %v85 = vadd.s32 %v65, 1
  %vm86 = vcmp.eq.s32.totalorder %v60, %v85
  %vm87 = vcmp.eq.s32.totalorder %v61, %v85
  %vm88 = vcmp.eq.s32.totalorder %v62, %v85
  %vm89 = vcmp.eq.s32.totalorder %v63, %v85
  %vm90 = vcmp.ne.s32.totalorder %v65, 15
  %vm91 = vcmp.ne.s32.totalorder %v65, 31
  %vm92 = vmand %vm90, %vm91
  %vm93 = vmand %vm86, %vm92
  %vm94 = vmand %vm87, %vm92
  %vm95 = vmand %vm88, %vm92
  %vm96 = vmand %vm89, %vm92
  %v97 = vsel %vm93, 1.0, 0.0
  %v98 = vsel %vm94, 1.0, 0.0
  %v99 = vsel %vm95, 1.0, 0.0
  %v100 = vsel %vm96, 1.0, 0.0
  %vm101 = vcmask 261120
  %v103 = vsel %vm101, %v46, 0
  %105 = vmatprep.subr.mxu0 0.0
  %106 = vmatpush1.msra.mxu0 0.0
  %107 = vmatprep.subr.mxu0 0.0
  %108 = vmatpush1.msra.mxu0 0.0
  %109 = vmatprep.subr.mxu0 0.0
  %110 = vmatpush1.msra.mxu0 0.0
  %111 = vmatprep.subr.mxu0 0.0
  %112 = vmatpush1.msra.mxu0 0.0
  %113 = vmatprep.subr.mxu0 0.0
  %114 = vmatpush1.msra.mxu0 0.0
  %115 = vmatprep.subr.mxu0 0.0
  %116 = vmatpush1.msra.mxu0 0.0
  %117 = vmatprep.subr.mxu0 0.0
  %118 = vmatpush1.msra.mxu0 0.0
  %119 = vmatprep.subr.mxu0 0.0
  %120 = vmatpush1.msra.mxu0 0.0
  %121 = vmatprep.subr.mxu0 0.0
  %122 = vmatpush1.msra.mxu0 0.0
  %123 = vmatprep.subr.mxu0 0.0
  %124 = vmatpush1.msra.mxu0 0.0
  %125 = vmatprep.subr.mxu0 0.0
  %126 = vmatpush1.msra.mxu0 0.0
  %127 = vmatprep.subr.mxu0 0.0
  %128 = vmatpush1.msra.mxu0 0.0
  %129 = vmatprep.subr.mxu0 0.0
  %130 = vmatpush1.msra.mxu0 %v84
  %131 = vmatprep.subr.mxu0 0.0
  %132 = vmatpush1.msra.mxu0 %v83
  %133 = vmatprep.subr.mxu0 0.0
  %134 = vmatpush1.msra.mxu0 %v82
  %135 = vmatprep.subr.mxu0 0.0
  %136 = vmatpush1.msra.mxu0 %v81
  %137 = vmatprep.subr.mxu0 0.0
  %138 = vmatpush2.msra.mxu0 0.0
  %139 = vmatprep.subr.mxu0 0.0
  %140 = vmatpush2.msra.mxu0 0.0
  %141 = vmatprep.subr.mxu0 0.0
  %142 = vmatpush2.msra.mxu0 0.0
  %143 = vmatprep.subr.mxu0 0.0
  %144 = vmatpush2.msra.mxu0 0.0
  %145 = vmatprep.subr.mxu0 0.0
  %146 = vmatpush2.msra.mxu0 0.0
  %147 = vmatprep.subr.mxu0 0.0
  %148 = vmatpush2.msra.mxu0 0.0
  %149 = vmatprep.subr.mxu0 0.0
  %150 = vmatpush2.msra.mxu0 0.0
  %151 = vmatprep.subr.mxu0 0.0
  %152 = vmatpush2.msra.mxu0 0.0
  %153 = vmatprep.subr.mxu0 0.0
  %154 = vmatpush2.msra.mxu0 0.0
  %155 = vmatprep.subr.mxu0 0.0
  %156 = vmatpush2.msra.mxu0 0.0
  %157 = vmatprep.subr.mxu0 0.0
  %158 = vmatpush2.msra.mxu0 0.0
  %159 = vmatprep.subr.mxu0 0.0
  %160 = vmatpush2.msra.mxu0 0.0
  %161 = vmatprep.subr.mxu0 0.0
  %162 = vmatpush2.msra.mxu0 0.0
  %163 = vmatprep.subr.mxu0 0.0
  %164 = vmatpush2.msra.mxu0 0.0
  %165 = vmatprep.subr.mxu0 0.0
  %166 = vmatpush2.msra.mxu0 0.0
  %167 = vmatprep.subr.mxu0 0.0
  %168 = vmatpush2.msra.mxu0 0.0
  %169 = vmatprep.mubr.f32.mxu0 0.0
  %170 = vmatmul.mubr.f32.gmra.mxu0 %v103
  %v171 = vpop.f32.mrf.mxu0
  %v172 = vadd.f32 0.0, %v171
  %v173 = vpop.f32.mrf.mxu0
  %174 = vdwg.mxu0
  %175 = vmatprep.subr.mxu0 0.0
  %176 = vmatpush1.msra.mxu0 0.0
  %177 = vmatprep.subr.mxu0 0.0
  %178 = vmatpush1.msra.mxu0 0.0
  %179 = vmatprep.subr.mxu0 0.0
  %180 = vmatpush1.msra.mxu0 0.0
  %181 = vmatprep.subr.mxu0 0.0
  %182 = vmatpush1.msra.mxu0 0.0
  %183 = vmatprep.subr.mxu0 0.0
  %184 = vmatpush1.msra.mxu0 0.0
  %185 = vmatprep.subr.mxu0 0.0
  %186 = vmatpush1.msra.mxu0 0.0
  %187 = vmatprep.subr.mxu0 0.0
  %188 = vmatpush1.msra.mxu0 0.0
  %189 = vmatprep.subr.mxu0 0.0
  %190 = vmatpush1.msra.mxu0 0.0
  %191 = vmatprep.subr.mxu0 0.0
  %192 = vmatpush1.msra.mxu0 0.0
  %193 = vmatprep.subr.mxu0 0.0
  %194 = vmatpush1.msra.mxu0 0.0
  %195 = vmatprep.subr.mxu0 0.0
  %196 = vmatpush1.msra.mxu0 0.0
  %197 = vmatprep.subr.mxu0 0.0
  %198 = vmatpush1.msra.mxu0 0.0
  %199 = vmatprep.subr.mxu0 0.0
  %200 = vmatpush1.msra.mxu0 %v100
  %201 = vmatprep.subr.mxu0 0.0
  %202 = vmatpush1.msra.mxu0 %v99
  %203 = vmatprep.subr.mxu0 0.0
  %204 = vmatpush1.msra.mxu0 %v98
  %205 = vmatprep.subr.mxu0 0.0
  %206 = vmatpush1.msra.mxu0 %v97
  %207 = vmatprep.subr.mxu0 0.0
  %208 = vmatpush2.msra.mxu0 0.0
  %209 = vmatprep.subr.mxu0 0.0
  %210 = vmatpush2.msra.mxu0 0.0
  %211 = vmatprep.subr.mxu0 0.0
  %212 = vmatpush2.msra.mxu0 0.0
  %213 = vmatprep.subr.mxu0 0.0
  %214 = vmatpush2.msra.mxu0 0.0
  %215 = vmatprep.subr.mxu0 0.0
  %216 = vmatpush2.msra.mxu0 0.0
  %217 = vmatprep.subr.mxu0 0.0
  %218 = vmatpush2.msra.mxu0 0.0
  %219 = vmatprep.subr.mxu0 0.0
  %220 = vmatpush2.msra.mxu0 0.0
  %221 = vmatprep.subr.mxu0 0.0
  %222 = vmatpush2.msra.mxu0 0.0
  %223 = vmatprep.subr.mxu0 0.0
  %224 = vmatpush2.msra.mxu0 0.0
  %225 = vmatprep.subr.mxu0 0.0
  %226 = vmatpush2.msra.mxu0 0.0
  %227 = vmatprep.subr.mxu0 0.0
  %228 = vmatpush2.msra.mxu0 0.0
  %229 = vmatprep.subr.mxu0 0.0
  %230 = vmatpush2.msra.mxu0 0.0
  %231 = vmatprep.subr.mxu0 0.0
  %232 = vmatpush2.msra.mxu0 0.0
  %233 = vmatprep.subr.mxu0 0.0
  %234 = vmatpush2.msra.mxu0 0.0
  %235 = vmatprep.subr.mxu0 0.0
  %236 = vmatpush2.msra.mxu0 0.0
  %237 = vmatprep.subr.mxu0 0.0
  %238 = vmatpush2.msra.mxu0 0.0
  %239 = vmatprep.mubr.f32.mxu0 0.0
  %240 = vmatmul.mubr.f32.gmra.mxu0 %v103
  %v241 = vpop.f32.mrf.mxu0
  %v242 = vadd.f32 0.0, %v241
  %v243 = vpop.f32.mrf.mxu0
  %244 = vdwg.mxu0
  %246 = vset.pattern.permute.xlu0 0
  %247 = vperm.xlu0 %246, %v47
  %v248 = vpop.permute.xlu0 %247
  %251 = vset.pattern.permute.xlu0 0
  %252 = vperm.xlu0 %251, %v48
  %v253 = vpop.permute.xlu0 %252
  %v255 = vlaneseq
  %v256 = vshrl.u32 %v255, 7
  %v257 = vsub.s32 0, %v256
  %v258 = vrot.slane %v172, %v257
  %v259 = vmul.f32 %v248, %v258
  %v260 = vmul.f32 %v253, %v258
  %262 = vset.pattern.permute.xlu0 0
  %263 = vperm.xlu0 %262, %v49
  %v264 = vpop.permute.xlu0 %263
  %267 = vset.pattern.permute.xlu0 0
  %268 = vperm.xlu0 %267, %v50
  %v269 = vpop.permute.xlu0 %268
  %v271 = vlaneseq
  %v272 = vshrl.u32 %v271, 7
  %v273 = vsub.s32 0, %v272
  %v274 = vrot.slane %v46, %v273
  %v276 = vmul.f32 %v264, %v274
  %v277 = vmul.f32 %v269, %v274
  %v278 = vadd.f32 %v259, %v276
  %v279 = vadd.f32 %v260, %v277
  %281 = vset.pattern.permute.xlu0 0
  %282 = vperm.xlu0 %281, %v51
  %v283 = vpop.permute.xlu0 %282
  %286 = vset.pattern.permute.xlu0 0
  %287 = vperm.xlu0 %286, %v52
  %v288 = vpop.permute.xlu0 %287
  %v290 = vlaneseq
  %v291 = vshrl.u32 %v290, 7
  %v292 = vsub.s32 0, %v291
  %v293 = vrot.slane %v242, %v292
  %v294 = vmul.f32 %v283, %v293
  %v295 = vmul.f32 %v288, %v293
  %v296 = vadd.f32 %v278, %v294
  %v297 = vadd.f32 %v279, %v295
  %299 = vset.pattern.permute.xlu0 0
  %300 = vperm.xlu0 %299, %v53
  %v301 = vpop.permute.xlu0 %300
  %304 = vset.pattern.permute.xlu0 0
  %305 = vperm.xlu0 %304, %v54
  %v306 = vpop.permute.xlu0 %305
  %v308 = vadd.f32 %v296, %v301
  %v309 = vadd.f32 %v297, %v306
  %v310 = vmax.f32 %v308, 0.0
  %v311 = vmax.f32 %v309, 0.0
  %v312 = vsel %vm101, %v310, 0.0
  %313 = vadd.xlane.f32.xlu0 %v312
  %v314 = vpop.xlane.xlu0 %313
  %v315 = vsel %vm101, %v311, 0.0
  %316 = vadd.xlane.f32.xlu0 %v315
  %v317 = vpop.xlane.xlu0 %316
  %v318 = vrcp.pop 32.0
  %v319 = vmul.f32 %v314, %v318
  %v320 = vmul.f32 %v317, %v318
  %v321 = vsub.f32 %v310, %v319
  %v322 = vsub.f32 %v311, %v320
  %v323 = vmul.f32 %v321, %v321
  %v324 = vmul.f32 %v322, %v322
  %v325 = vsel %vm101, %v323, 0.0
  %326 = vadd.xlane.f32.xlu0 %v325
  %v327 = vpop.xlane.xlu0 %326
  %v328 = vsel %vm101, %v324, 0.0
  %329 = vadd.xlane.f32.xlu0 %v328
  %v330 = vpop.xlane.xlu0 %329
  %v331 = vmul.f32 %v327, %v318
  %v332 = vmul.f32 %v330, %v318
  %v333 = vadd.f32 %v331, 1e-05
  %v334 = vadd.f32 %v332, 1e-05
  %v335 = vrsqrt.pop %v333
  %v336 = vrsqrt.pop %v334
  %v337 = vmul.f32 %v55, %v335
  %v338 = vmul.f32 %v56, %v336
  %v339 = vmul.f32 %v319, %v337
  %v340 = vmul.f32 %v320, %v338
  %v341 = vsub.f32 %v57, %v339
  %v342 = vsub.f32 %v58, %v340
  %344 = vset.pattern.permute.xlu0 0
  %345 = vperm.xlu0 %344, %v337
  %v346 = vpop.permute.xlu0 %345
  %349 = vset.pattern.permute.xlu0 0
  %350 = vperm.xlu0 %349, %v338
  %v351 = vpop.permute.xlu0 %350
  %v353 = vmul.f32 %v310, %v346
  %v354 = vmul.f32 %v311, %v351
  %356 = vset.pattern.permute.xlu0 0
  %357 = vperm.xlu0 %356, %v341
  %v358 = vpop.permute.xlu0 %357
  %361 = vset.pattern.permute.xlu0 0
  %362 = vperm.xlu0 %361, %v342
  %v363 = vpop.permute.xlu0 %362
  %v365 = vadd.f32 %v353, %v358
  %v366 = vadd.f32 %v354, %v363
  %v367 = vmul.u32 %v65, 2
  %vm368 = vcmp.eq.s32.totalorder %v60, %v367
  %vm369 = vcmp.eq.s32.totalorder %v61, %v367
  %vm370 = vcmp.eq.s32.totalorder %v62, %v367
  %vm371 = vcmp.eq.s32.totalorder %v63, %v367
  %v372 = vsel %vm368, 1.0, 0.0
  %v373 = vsel %vm369, 1.0, 0.0
  %v374 = vsel %vm370, 1.0, 0.0
  %v375 = vsel %vm371, 1.0, 0.0
  %v376 = vadd.s32 %v367, 1
  %vm377 = vcmp.eq.s32.totalorder %v60, %v376
  %vm378 = vcmp.eq.s32.totalorder %v61, %v376
  %vm379 = vcmp.eq.s32.totalorder %v62, %v376
  %vm380 = vcmp.eq.s32.totalorder %v63, %v376
  %v381 = vsel %vm377, 1.0, 0.0
  %v382 = vsel %vm378, 1.0, 0.0
  %v383 = vsel %vm379, 1.0, 0.0
  %v384 = vsel %vm380, 1.0, 0.0
  %v386 = vsel %vm101, %v365, 0
  %v389 = vsel %vm101, %v366, 0
  %391 = vmatprep.subr.mxu0 0.0
  %392 = vmatpush1.msra.mxu0 0.0
  %393 = vmatprep.subr.mxu0 0.0
  %394 = vmatpush1.msra.mxu0 0.0
  %395 = vmatprep.subr.mxu0 0.0
  %396 = vmatpush1.msra.mxu0 0.0
  %397 = vmatprep.subr.mxu0 0.0
  %398 = vmatpush1.msra.mxu0 0.0
  %399 = vmatprep.subr.mxu0 0.0
  %400 = vmatpush1.msra.mxu0 0.0
  %401 = vmatprep.subr.mxu0 0.0
  %402 = vmatpush1.msra.mxu0 0.0
  %403 = vmatprep.subr.mxu0 0.0
  %404 = vmatpush1.msra.mxu0 0.0
  %405 = vmatprep.subr.mxu0 0.0
  %406 = vmatpush1.msra.mxu0 0.0
  %407 = vmatprep.subr.mxu0 0.0
  %408 = vmatpush1.msra.mxu0 0.0
  %409 = vmatprep.subr.mxu0 0.0
  %410 = vmatpush1.msra.mxu0 0.0
  %411 = vmatprep.subr.mxu0 0.0
  %412 = vmatpush1.msra.mxu0 0.0
  %413 = vmatprep.subr.mxu0 0.0
  %414 = vmatpush1.msra.mxu0 0.0
  %415 = vmatprep.subr.mxu0 0.0
  %416 = vmatpush1.msra.mxu0 %v375
  %417 = vmatprep.subr.mxu0 0.0
  %418 = vmatpush1.msra.mxu0 %v374
  %419 = vmatprep.subr.mxu0 0.0
  %420 = vmatpush1.msra.mxu0 %v373
  %421 = vmatprep.subr.mxu0 0.0
  %422 = vmatpush1.msra.mxu0 %v372
  %423 = vmatprep.subr.mxu0 0.0
  %424 = vmatpush2.msra.mxu0 0.0
  %425 = vmatprep.subr.mxu0 0.0
  %426 = vmatpush2.msra.mxu0 0.0
  %427 = vmatprep.subr.mxu0 0.0
  %428 = vmatpush2.msra.mxu0 0.0
  %429 = vmatprep.subr.mxu0 0.0
  %430 = vmatpush2.msra.mxu0 0.0
  %431 = vmatprep.subr.mxu0 0.0
  %432 = vmatpush2.msra.mxu0 0.0
  %433 = vmatprep.subr.mxu0 0.0
  %434 = vmatpush2.msra.mxu0 0.0
  %435 = vmatprep.subr.mxu0 0.0
  %436 = vmatpush2.msra.mxu0 0.0
  %437 = vmatprep.subr.mxu0 0.0
  %438 = vmatpush2.msra.mxu0 0.0
  %439 = vmatprep.subr.mxu0 0.0
  %440 = vmatpush2.msra.mxu0 0.0
  %441 = vmatprep.subr.mxu0 0.0
  %442 = vmatpush2.msra.mxu0 0.0
  %443 = vmatprep.subr.mxu0 0.0
  %444 = vmatpush2.msra.mxu0 0.0
  %445 = vmatprep.subr.mxu0 0.0
  %446 = vmatpush2.msra.mxu0 0.0
  %447 = vmatprep.subr.mxu0 0.0
  %448 = vmatpush2.msra.mxu0 0.0
  %449 = vmatprep.subr.mxu0 0.0
  %450 = vmatpush2.msra.mxu0 0.0
  %451 = vmatprep.subr.mxu0 0.0
  %452 = vmatpush2.msra.mxu0 0.0
  %453 = vmatprep.subr.mxu0 0.0
  %454 = vmatpush2.msra.mxu0 0.0
  %455 = vmatprep.mubr.f32.mxu0 0.0
  %456 = vmatmul.mubr.f32.gmra.mxu0 %v386
  %v457 = vpop.f32.mrf.mxu0
  %v458 = vadd.f32 0.0, %v457
  %v459 = vpop.f32.mrf.mxu0
  %460 = vmatprep.mubr.f32.mxu0 0.0
  %461 = vmatmul.mubr.f32.gmra.mxu0 %v389
  %v462 = vpop.f32.mrf.mxu0
  %v463 = vadd.f32 0.0, %v462
  %v464 = vpop.f32.mrf.mxu0
  %465 = vdwg.mxu0
  %466 = vmatprep.subr.mxu0 0.0
  %467 = vmatpush1.msra.mxu0 0.0
  %468 = vmatprep.subr.mxu0 0.0
  %469 = vmatpush1.msra.mxu0 0.0
  %470 = vmatprep.subr.mxu0 0.0
  %471 = vmatpush1.msra.mxu0 0.0
  %472 = vmatprep.subr.mxu0 0.0
  %473 = vmatpush1.msra.mxu0 0.0
  %474 = vmatprep.subr.mxu0 0.0
  %475 = vmatpush1.msra.mxu0 0.0
  %476 = vmatprep.subr.mxu0 0.0
  %477 = vmatpush1.msra.mxu0 0.0
  %478 = vmatprep.subr.mxu0 0.0
  %479 = vmatpush1.msra.mxu0 0.0
  %480 = vmatprep.subr.mxu0 0.0
  %481 = vmatpush1.msra.mxu0 0.0
  %482 = vmatprep.subr.mxu0 0.0
  %483 = vmatpush1.msra.mxu0 0.0
  %484 = vmatprep.subr.mxu0 0.0
  %485 = vmatpush1.msra.mxu0 0.0
  %486 = vmatprep.subr.mxu0 0.0
  %487 = vmatpush1.msra.mxu0 0.0
  %488 = vmatprep.subr.mxu0 0.0
  %489 = vmatpush1.msra.mxu0 0.0
  %490 = vmatprep.subr.mxu0 0.0
  %491 = vmatpush1.msra.mxu0 %v384
  %492 = vmatprep.subr.mxu0 0.0
  %493 = vmatpush1.msra.mxu0 %v383
  %494 = vmatprep.subr.mxu0 0.0
  %495 = vmatpush1.msra.mxu0 %v382
  %496 = vmatprep.subr.mxu0 0.0
  %497 = vmatpush1.msra.mxu0 %v381
  %498 = vmatprep.subr.mxu0 0.0
  %499 = vmatpush2.msra.mxu0 0.0
  %500 = vmatprep.subr.mxu0 0.0
  %501 = vmatpush2.msra.mxu0 0.0
  %502 = vmatprep.subr.mxu0 0.0
  %503 = vmatpush2.msra.mxu0 0.0
  %504 = vmatprep.subr.mxu0 0.0
  %505 = vmatpush2.msra.mxu0 0.0
  %506 = vmatprep.subr.mxu0 0.0
  %507 = vmatpush2.msra.mxu0 0.0
  %508 = vmatprep.subr.mxu0 0.0
  %509 = vmatpush2.msra.mxu0 0.0
  %510 = vmatprep.subr.mxu0 0.0
  %511 = vmatpush2.msra.mxu0 0.0
  %512 = vmatprep.subr.mxu0 0.0
  %513 = vmatpush2.msra.mxu0 0.0
  %514 = vmatprep.subr.mxu0 0.0
  %515 = vmatpush2.msra.mxu0 0.0
  %516 = vmatprep.subr.mxu0 0.0
  %517 = vmatpush2.msra.mxu0 0.0
  %518 = vmatprep.subr.mxu0 0.0
  %519 = vmatpush2.msra.mxu0 0.0
  %520 = vmatprep.subr.mxu0 0.0
  %521 = vmatpush2.msra.mxu0 0.0
  %522 = vmatprep.subr.mxu0 0.0
  %523 = vmatpush2.msra.mxu0 0.0
  %524 = vmatprep.subr.mxu0 0.0
  %525 = vmatpush2.msra.mxu0 0.0
  %526 = vmatprep.subr.mxu0 0.0
  %527 = vmatpush2.msra.mxu0 0.0
  %528 = vmatprep.subr.mxu0 0.0
  %529 = vmatpush2.msra.mxu0 0.0
  %530 = vmatprep.mubr.f32.mxu0 0.0
  %531 = vmatmul.mubr.f32.gmra.mxu0 %v386
  %v532 = vpop.f32.mrf.mxu0
  %v533 = vadd.f32 0.0, %v532
  %v534 = vpop.f32.mrf.mxu0
  %535 = vmatprep.mubr.f32.mxu0 0.0
  %536 = vmatmul.mubr.f32.gmra.mxu0 %v389
  %v537 = vpop.f32.mrf.mxu0
  %v538 = vadd.f32 0.0, %v537
  %v539 = vpop.f32.mrf.mxu0
  %540 = vdwg.mxu0
  %v541 = vmax.f32 %v458, %v533
  %v542 = vmax.f32 %v463, %v538
  %v543 = vld [vmem:[%s3] sm:$0xff]
  %v544 = vld [vmem:[%s3 + $0x8] sm:$0xff]
  %v545 = vld [vmem:[%s3 + $0x10] sm:$0xff]
  %v546 = vld [vmem:[%s3 + $0x18] sm:$0xff]
  %v547 = vld [vmem:[%s4] sm:$0xff]
  %v548 = vld [vmem:[%s4 + $0x8] sm:$0xff]
  %v549 = vld [vmem:[%s4 + $0x10] sm:$0xff]
  %v550 = vld [vmem:[%s4 + $0x18] sm:$0xff]
  %v551 = vld [vmem:[%s4 + $0x20] sm:$0xff]
  %v552 = vld [vmem:[%s4 + $0x28] sm:$0xff]
  %v553 = vld [vmem:[%s4 + $0x30] sm:$0xff]
  %v554 = vld [vmem:[%s4 + $0x38] sm:$0xff]
  %v555 = vld [vmem:[%s4 + $0x40] sm:$0xff]
  %v556 = vld [vmem:[%s4 + $0x48] sm:$0xff]
  %v557 = vld [vmem:[%s4 + $0x50] sm:$0xff]
  %v558 = vld [vmem:[%s4 + $0x58] sm:$0xff]
  %vm559 = vcmp.ne.s32.totalorder %v65, 8
  %vm560 = vmand %vm74, %vm559
  %vm561 = vmand %vm70, %vm560
  %vm562 = vmand %vm71, %vm560
  %v563 = vsel %vm561, 1.0, 0.0
  %v564 = vsel %vm562, 1.0, 0.0
  %vm565 = vcmp.ne.s32.totalorder %v65, 7
  %vm566 = vmand %vm565, %vm90
  %vm567 = vmand %vm86, %vm566
  %vm568 = vmand %vm87, %vm566
  %v569 = vsel %vm567, 1.0, 0.0
  %v570 = vsel %vm568, 1.0, 0.0
  %vm571 = vcmask 130048
  %v573 = vsel %vm571, %v541, 0
  %v576 = vsel %vm571, %v542, 0
  %578 = vmatprep.subr.mxu0 0.0
  %579 = vmatpush1.msra.mxu0 0.0
  %580 = vmatprep.subr.mxu0 0.0
  %581 = vmatpush1.msra.mxu0 0.0
  %582 = vmatprep.subr.mxu0 0.0
  %583 = vmatpush1.msra.mxu0 0.0
  %584 = vmatprep.subr.mxu0 0.0
  %585 = vmatpush1.msra.mxu0 0.0
  %586 = vmatprep.subr.mxu0 0.0
  %587 = vmatpush1.msra.mxu0 0.0
  %588 = vmatprep.subr.mxu0 0.0
  %589 = vmatpush1.msra.mxu0 0.0
  %590 = vmatprep.subr.mxu0 0.0
  %591 = vmatpush1.msra.mxu0 0.0
  %592 = vmatprep.subr.mxu0 0.0
  %593 = vmatpush1.msra.mxu0 0.0
  %594 = vmatprep.subr.mxu0 0.0
  %595 = vmatpush1.msra.mxu0 0.0
  %596 = vmatprep.subr.mxu0 0.0
  %597 = vmatpush1.msra.mxu0 0.0
  %598 = vmatprep.subr.mxu0 0.0
  %599 = vmatpush1.msra.mxu0 0.0
  %600 = vmatprep.subr.mxu0 0.0
  %601 = vmatpush1.msra.mxu0 0.0
  %602 = vmatprep.subr.mxu0 0.0
  %603 = vmatpush1.msra.mxu0 0.0
  %604 = vmatprep.subr.mxu0 0.0
  %605 = vmatpush1.msra.mxu0 0.0
  %606 = vmatprep.subr.mxu0 0.0
  %607 = vmatpush1.msra.mxu0 %v564
  %608 = vmatprep.subr.mxu0 0.0
  %609 = vmatpush1.msra.mxu0 %v563
  %610 = vmatprep.subr.mxu0 0.0
  %611 = vmatpush2.msra.mxu0 0.0
  %612 = vmatprep.subr.mxu0 0.0
  %613 = vmatpush2.msra.mxu0 0.0
  %614 = vmatprep.subr.mxu0 0.0
  %615 = vmatpush2.msra.mxu0 0.0
  %616 = vmatprep.subr.mxu0 0.0
  %617 = vmatpush2.msra.mxu0 0.0
  %618 = vmatprep.subr.mxu0 0.0
  %619 = vmatpush2.msra.mxu0 0.0
  %620 = vmatprep.subr.mxu0 0.0
  %621 = vmatpush2.msra.mxu0 0.0
  %622 = vmatprep.subr.mxu0 0.0
  %623 = vmatpush2.msra.mxu0 0.0
  %624 = vmatprep.subr.mxu0 0.0
  %625 = vmatpush2.msra.mxu0 0.0
  %626 = vmatprep.subr.mxu0 0.0
  %627 = vmatpush2.msra.mxu0 0.0
  %628 = vmatprep.subr.mxu0 0.0
  %629 = vmatpush2.msra.mxu0 0.0
  %630 = vmatprep.subr.mxu0 0.0
  %631 = vmatpush2.msra.mxu0 0.0
  %632 = vmatprep.subr.mxu0 0.0
  %633 = vmatpush2.msra.mxu0 0.0
  %634 = vmatprep.subr.mxu0 0.0
  %635 = vmatpush2.msra.mxu0 0.0
  %636 = vmatprep.subr.mxu0 0.0
  %637 = vmatpush2.msra.mxu0 0.0
  %638 = vmatprep.subr.mxu0 0.0
  %639 = vmatpush2.msra.mxu0 0.0
  %640 = vmatprep.subr.mxu0 0.0
  %641 = vmatpush2.msra.mxu0 0.0
  %642 = vmatprep.mubr.f32.mxu0 0.0
  %643 = vmatmul.mubr.f32.gmra.mxu0 %v573
  %v644 = vpop.f32.mrf.mxu0
  %v645 = vadd.f32 0.0, %v644
  %v646 = vpop.f32.mrf.mxu0
  %647 = vmatprep.mubr.f32.mxu0 0.0
  %648 = vmatmul.mubr.f32.gmra.mxu0 %v576
  %v649 = vpop.f32.mrf.mxu0
  %v650 = vadd.f32 0.0, %v649
  %v651 = vpop.f32.mrf.mxu0
  %652 = vdwg.mxu0
  %653 = vmatprep.subr.mxu0 0.0
  %654 = vmatpush1.msra.mxu0 0.0
  %655 = vmatprep.subr.mxu0 0.0
  %656 = vmatpush1.msra.mxu0 0.0
  %657 = vmatprep.subr.mxu0 0.0
  %658 = vmatpush1.msra.mxu0 0.0
  %659 = vmatprep.subr.mxu0 0.0
  %660 = vmatpush1.msra.mxu0 0.0
  %661 = vmatprep.subr.mxu0 0.0
  %662 = vmatpush1.msra.mxu0 0.0
  %663 = vmatprep.subr.mxu0 0.0
  %664 = vmatpush1.msra.mxu0 0.0
  %665 = vmatprep.subr.mxu0 0.0
  %666 = vmatpush1.msra.mxu0 0.0
  %667 = vmatprep.subr.mxu0 0.0
  %668 = vmatpush1.msra.mxu0 0.0
  %669 = vmatprep.subr.mxu0 0.0
  %670 = vmatpush1.msra.mxu0 0.0
  %671 = vmatprep.subr.mxu0 0.0
  %672 = vmatpush1.msra.mxu0 0.0
  %673 = vmatprep.subr.mxu0 0.0
  %674 = vmatpush1.msra.mxu0 0.0
  %675 = vmatprep.subr.mxu0 0.0
  %676 = vmatpush1.msra.mxu0 0.0
  %677 = vmatprep.subr.mxu0 0.0
  %678 = vmatpush1.msra.mxu0 0.0
  %679 = vmatprep.subr.mxu0 0.0
  %680 = vmatpush1.msra.mxu0 0.0
  %681 = vmatprep.subr.mxu0 0.0
  %682 = vmatpush1.msra.mxu0 %v570
  %683 = vmatprep.subr.mxu0 0.0
  %684 = vmatpush1.msra.mxu0 %v569
  %685 = vmatprep.subr.mxu0 0.0
  %686 = vmatpush2.msra.mxu0 0.0
  %687 = vmatprep.subr.mxu0 0.0
  %688 = vmatpush2.msra.mxu0 0.0
  %689 = vmatprep.subr.mxu0 0.0
  %690 = vmatpush2.msra.mxu0 0.0
  %691 = vmatprep.subr.mxu0 0.0
  %692 = vmatpush2.msra.mxu0 0.0
  %693 = vmatprep.subr.mxu0 0.0
  %694 = vmatpush2.msra.mxu0 0.0
  %695 = vmatprep.subr.mxu0 0.0
  %696 = vmatpush2.msra.mxu0 0.0
  %697 = vmatprep.subr.mxu0 0.0
  %698 = vmatpush2.msra.mxu0 0.0
  %699 = vmatprep.subr.mxu0 0.0
  %700 = vmatpush2.msra.mxu0 0.0
  %701 = vmatprep.subr.mxu0 0.0
  %702 = vmatpush2.msra.mxu0 0.0
  %703 = vmatprep.subr.mxu0 0.0
  %704 = vmatpush2.msra.mxu0 0.0
  %705 = vmatprep.subr.mxu0 0.0
  %706 = vmatpush2.msra.mxu0 0.0
  %707 = vmatprep.subr.mxu0 0.0
  %708 = vmatpush2.msra.mxu0 0.0
  %709 = vmatprep.subr.mxu0 0.0
  %710 = vmatpush2.msra.mxu0 0.0
  %711 = vmatprep.subr.mxu0 0.0
  %712 = vmatpush2.msra.mxu0 0.0
  %713 = vmatprep.subr.mxu0 0.0
  %714 = vmatpush2.msra.mxu0 0.0
  %715 = vmatprep.subr.mxu0 0.0
  %716 = vmatpush2.msra.mxu0 0.0
  %717 = vmatprep.mubr.f32.mxu0 0.0
  %718 = vmatmul.mubr.f32.gmra.mxu0 %v573
  %v719 = vpop.f32.mrf.mxu0
  %v720 = vadd.f32 0.0, %v719
  %v721 = vpop.f32.mrf.mxu0
  %722 = vmatprep.mubr.f32.mxu0 0.0
  %723 = vmatmul.mubr.f32.gmra.mxu0 %v576
  %v724 = vpop.f32.mrf.mxu0
  %v725 = vadd.f32 0.0, %v724
  %v726 = vpop.f32.mrf.mxu0
  %727 = vdwg.mxu0
  %729 = vset.pattern.permute.xlu0 0
  %730 = vperm.xlu0 %729, %v547
  %v731 = vpop.permute.xlu0 %730
  %734 = vset.pattern.permute.xlu0 0
  %735 = vperm.xlu0 %734, %v548
  %v736 = vpop.permute.xlu0 %735
  %739 = vset.pattern.permute.xlu0 0
  %740 = vperm.xlu0 %739, %v549
  %v741 = vpop.permute.xlu0 %740
  %744 = vset.pattern.permute.xlu0 0
  %745 = vperm.xlu0 %744, %v550
  %v746 = vpop.permute.xlu0 %745
  %vm748 = vcmask 392192
  %v750 = vsel %vm748, %v543, 0
  %v753 = vsel %vm748, %v544, 0
  %v756 = vsel %vm748, %v545, 0
  %v759 = vsel %vm748, %v546, 0
  %761 = vmatprep.subr.mxu0 0.0
  %762 = vmatpush1.msra.mxu0 0.0
  %763 = vmatprep.subr.mxu0 0.0
  %764 = vmatpush1.msra.mxu0 0.0
  %765 = vmatprep.subr.mxu0 0.0
  %766 = vmatpush1.msra.mxu0 0.0
  %767 = vmatprep.subr.mxu0 0.0
  %768 = vmatpush1.msra.mxu0 0.0
  %769 = vmatprep.subr.mxu0 0.0
  %770 = vmatpush1.msra.mxu0 0.0
  %771 = vmatprep.subr.mxu0 0.0
  %772 = vmatpush1.msra.mxu0 0.0
  %773 = vmatprep.subr.mxu0 0.0
  %774 = vmatpush1.msra.mxu0 0.0
  %775 = vmatprep.subr.mxu0 0.0
  %776 = vmatpush1.msra.mxu0 0.0
  %777 = vmatprep.subr.mxu0 0.0
  %778 = vmatpush1.msra.mxu0 0.0
  %779 = vmatprep.subr.mxu0 0.0
  %780 = vmatpush1.msra.mxu0 0.0
  %781 = vmatprep.subr.mxu0 0.0
  %782 = vmatpush1.msra.mxu0 %v725
  %783 = vmatprep.subr.mxu0 0.0
  %784 = vmatpush1.msra.mxu0 %v720
  %785 = vmatprep.subr.mxu0 0.0
  %786 = vmatpush1.msra.mxu0 %v542
  %787 = vmatprep.subr.mxu0 0.0
  %788 = vmatpush1.msra.mxu0 %v541
  %789 = vmatprep.subr.mxu0 0.0
  %790 = vmatpush1.msra.mxu0 %v650
  %791 = vmatprep.subr.mxu0 0.0
  %792 = vmatpush1.msra.mxu0 %v645
  %793 = vmatprep.subr.mxu0 0.0
  %794 = vmatpush2.msra.mxu0 0.0
  %795 = vmatprep.subr.mxu0 0.0
  %796 = vmatpush2.msra.mxu0 0.0
  %797 = vmatprep.subr.mxu0 0.0
  %798 = vmatpush2.msra.mxu0 0.0
  %799 = vmatprep.subr.mxu0 0.0
  %800 = vmatpush2.msra.mxu0 0.0
  %801 = vmatprep.subr.mxu0 0.0
  %802 = vmatpush2.msra.mxu0 0.0
  %803 = vmatprep.subr.mxu0 0.0
  %804 = vmatpush2.msra.mxu0 0.0
  %805 = vmatprep.subr.mxu0 0.0
  %806 = vmatpush2.msra.mxu0 0.0
  %807 = vmatprep.subr.mxu0 0.0
  %808 = vmatpush2.msra.mxu0 0.0
  %809 = vmatprep.subr.mxu0 0.0
  %810 = vmatpush2.msra.mxu0 0.0
  %811 = vmatprep.subr.mxu0 0.0
  %812 = vmatpush2.msra.mxu0 0.0
  %813 = vmatprep.subr.mxu0 0.0
  %814 = vmatpush2.msra.mxu0 0.0
  %815 = vmatprep.subr.mxu0 0.0
  %816 = vmatpush2.msra.mxu0 0.0
  %817 = vmatprep.subr.mxu0 0.0
  %818 = vmatpush2.msra.mxu0 0.0
  %819 = vmatprep.subr.mxu0 0.0
  %820 = vmatpush2.msra.mxu0 0.0
  %821 = vmatprep.subr.mxu0 0.0
  %822 = vmatpush2.msra.mxu0 0.0
  %823 = vmatprep.subr.mxu0 0.0
  %824 = vmatpush2.msra.mxu0 0.0
  %825 = vmatprep.mubr.f32.mxu0 0.0
  %826 = vmatmul.mubr.f32.gmra.mxu0 %v750
  %v827 = vpop.f32.mrf.mxu0
  %v828 = vadd.f32 %v731, %v827
  %v829 = vpop.f32.mrf.mxu0
  %830 = vmatprep.mubr.f32.mxu0 0.0
  %831 = vmatmul.mubr.f32.gmra.mxu0 %v753
  %v832 = vpop.f32.mrf.mxu0
  %v833 = vadd.f32 %v736, %v832
  %v834 = vpop.f32.mrf.mxu0
  %835 = vmatprep.mubr.f32.mxu0 0.0
  %836 = vmatmul.mubr.f32.gmra.mxu0 %v756
  %v837 = vpop.f32.mrf.mxu0
  %v838 = vadd.f32 %v741, %v837
  %v839 = vpop.f32.mrf.mxu0
  %840 = vmatprep.mubr.f32.mxu0 0.0
  %841 = vmatmul.mubr.f32.gmra.mxu0 %v759
  %v842 = vpop.f32.mrf.mxu0
  %v843 = vadd.f32 %v746, %v842
  %v844 = vpop.f32.mrf.mxu0
  %845 = vdwg.mxu0
  %v846 = vmax.f32 %v828, 0.0
  %v847 = vmax.f32 %v833, 0.0
  %v848 = vmax.f32 %v838, 0.0
  %v849 = vmax.f32 %v843, 0.0
  %v850 = vsel %vm571, %v846, 0.0
  %851 = vadd.xlane.f32.xlu0 %v850
  %v852 = vpop.xlane.xlu0 %851
  %v853 = vsel %vm571, %v847, 0.0
  %854 = vadd.xlane.f32.xlu0 %v853
  %v855 = vpop.xlane.xlu0 %854
  %v856 = vsel %vm571, %v848, 0.0
  %857 = vadd.xlane.f32.xlu0 %v856
  %v858 = vpop.xlane.xlu0 %857
  %v859 = vsel %vm571, %v849, 0.0
  %860 = vadd.xlane.f32.xlu0 %v859
  %v861 = vpop.xlane.xlu0 %860
  %v862 = vrcp.pop 16.0
  %v863 = vmul.f32 %v852, %v862
  %v864 = vmul.f32 %v855, %v862
  %v865 = vmul.f32 %v858, %v862
  %v866 = vmul.f32 %v861, %v862
  %v867 = vsub.f32 %v846, %v863
  %v868 = vsub.f32 %v847, %v864
  %v869 = vsub.f32 %v848, %v865
  %v870 = vsub.f32 %v849, %v866
  %v871 = vmul.f32 %v867, %v867
  %v872 = vmul.f32 %v868, %v868
  %v873 = vmul.f32 %v869, %v869
  %v874 = vmul.f32 %v870, %v870
  %v875 = vsel %vm571, %v871, 0.0
  %876 = vadd.xlane.f32.xlu0 %v875
  %v877 = vpop.xlane.xlu0 %876
  %v878 = vsel %vm571, %v872, 0.0
  %879 = vadd.xlane.f32.xlu0 %v878
  %v880 = vpop.xlane.xlu0 %879
  %v881 = vsel %vm571, %v873, 0.0
  %882 = vadd.xlane.f32.xlu0 %v881
  %v883 = vpop.xlane.xlu0 %882
  %v884 = vsel %vm571, %v874, 0.0
  %885 = vadd.xlane.f32.xlu0 %v884
  %v886 = vpop.xlane.xlu0 %885
  %v887 = vmul.f32 %v877, %v862
  %v888 = vmul.f32 %v880, %v862
  %v889 = vmul.f32 %v883, %v862
  %v890 = vmul.f32 %v886, %v862
  %v891 = vadd.f32 %v887, 1e-05
  %v892 = vadd.f32 %v888, 1e-05
  %v893 = vadd.f32 %v889, 1e-05
  %v894 = vadd.f32 %v890, 1e-05
  %v895 = vrsqrt.pop %v891
  %v896 = vrsqrt.pop %v892
  %v897 = vrsqrt.pop %v893
  %v898 = vrsqrt.pop %v894
  %v899 = vmul.f32 %v551, %v895
  %v900 = vmul.f32 %v552, %v896
  %v901 = vmul.f32 %v553, %v897
  %v902 = vmul.f32 %v554, %v898
  %v903 = vmul.f32 %v863, %v899
  %v904 = vmul.f32 %v864, %v900
  %v905 = vmul.f32 %v865, %v901
  %v906 = vmul.f32 %v866, %v902
  %v907 = vsub.f32 %v555, %v903
  %v908 = vsub.f32 %v556, %v904
  %v909 = vsub.f32 %v557, %v905
  %v910 = vsub.f32 %v558, %v906
  %912 = vset.pattern.permute.xlu0 0
  %913 = vperm.xlu0 %912, %v899
  %v914 = vpop.permute.xlu0 %913
  %917 = vset.pattern.permute.xlu0 0
  %918 = vperm.xlu0 %917, %v900
  %v919 = vpop.permute.xlu0 %918
  %922 = vset.pattern.permute.xlu0 0
  %923 = vperm.xlu0 %922, %v901
  %v924 = vpop.permute.xlu0 %923
  %927 = vset.pattern.permute.xlu0 0
  %928 = vperm.xlu0 %927, %v902
  %v929 = vpop.permute.xlu0 %928
  %v931 = vmul.f32 %v846, %v914
  %v932 = vmul.f32 %v847, %v919
  %v933 = vmul.f32 %v848, %v924
  %v934 = vmul.f32 %v849, %v929
  %936 = vset.pattern.permute.xlu0 0
  %937 = vperm.xlu0 %936, %v907
  %v938 = vpop.permute.xlu0 %937
  %941 = vset.pattern.permute.xlu0 0
  %942 = vperm.xlu0 %941, %v908
  %v943 = vpop.permute.xlu0 %942
  %946 = vset.pattern.permute.xlu0 0
  %947 = vperm.xlu0 %946, %v909
  %v948 = vpop.permute.xlu0 %947
  %951 = vset.pattern.permute.xlu0 0
  %952 = vperm.xlu0 %951, %v910
  %v953 = vpop.permute.xlu0 %952
  %v955 = vadd.f32 %v931, %v938
  %v956 = vadd.f32 %v932, %v943
  %v957 = vadd.f32 %v933, %v948
  %v958 = vadd.f32 %v934, %v953
  %v960 = vsel %vm571, %v955, 0
  %v963 = vsel %vm571, %v956, 0
  %v966 = vsel %vm571, %v957, 0
  %v969 = vsel %vm571, %v958, 0
  %971 = vmatprep.subr.mxu0 0.0
  %972 = vmatpush1.msra.mxu0 0.0
  %973 = vmatprep.subr.mxu0 0.0
  %974 = vmatpush1.msra.mxu0 0.0
  %975 = vmatprep.subr.mxu0 0.0
  %976 = vmatpush1.msra.mxu0 0.0
  %977 = vmatprep.subr.mxu0 0.0
  %978 = vmatpush1.msra.mxu0 0.0
  %979 = vmatprep.subr.mxu0 0.0
  %980 = vmatpush1.msra.mxu0 0.0
  %981 = vmatprep.subr.mxu0 0.0
  %982 = vmatpush1.msra.mxu0 0.0
  %983 = vmatprep.subr.mxu0 0.0
  %984 = vmatpush1.msra.mxu0 0.0
  %985 = vmatprep.subr.mxu0 0.0
  %986 = vmatpush1.msra.mxu0 0.0
  %987 = vmatprep.subr.mxu0 0.0
  %988 = vmatpush1.msra.mxu0 0.0
  %989 = vmatprep.subr.mxu0 0.0
  %990 = vmatpush1.msra.mxu0 0.0
  %991 = vmatprep.subr.mxu0 0.0
  %992 = vmatpush1.msra.mxu0 0.0
  %993 = vmatprep.subr.mxu0 0.0
  %994 = vmatpush1.msra.mxu0 0.0
  %995 = vmatprep.subr.mxu0 0.0
  %996 = vmatpush1.msra.mxu0 0.0
  %997 = vmatprep.subr.mxu0 0.0
  %998 = vmatpush1.msra.mxu0 0.0
  %999 = vmatprep.subr.mxu0 0.0
  %1000 = vmatpush1.msra.mxu0 %v373
  %1001 = vmatprep.subr.mxu0 0.0
  %1002 = vmatpush1.msra.mxu0 %v372
  %1003 = vmatprep.subr.mxu0 0.0
  %1004 = vmatpush2.msra.mxu0 0.0
  %1005 = vmatprep.subr.mxu0 0.0
  %1006 = vmatpush2.msra.mxu0 0.0
  %1007 = vmatprep.subr.mxu0 0.0
  %1008 = vmatpush2.msra.mxu0 0.0
  %1009 = vmatprep.subr.mxu0 0.0
  %1010 = vmatpush2.msra.mxu0 0.0
  %1011 = vmatprep.subr.mxu0 0.0
  %1012 = vmatpush2.msra.mxu0 0.0
  %1013 = vmatprep.subr.mxu0 0.0
  %1014 = vmatpush2.msra.mxu0 0.0
  %1015 = vmatprep.subr.mxu0 0.0
  %1016 = vmatpush2.msra.mxu0 0.0
  %1017 = vmatprep.subr.mxu0 0.0
  %1018 = vmatpush2.msra.mxu0 0.0
  %1019 = vmatprep.subr.mxu0 0.0
  %1020 = vmatpush2.msra.mxu0 0.0
  %1021 = vmatprep.subr.mxu0 0.0
  %1022 = vmatpush2.msra.mxu0 0.0
  %1023 = vmatprep.subr.mxu0 0.0
  %1024 = vmatpush2.msra.mxu0 0.0
  %1025 = vmatprep.subr.mxu0 0.0
  %1026 = vmatpush2.msra.mxu0 0.0
  %1027 = vmatprep.subr.mxu0 0.0
  %1028 = vmatpush2.msra.mxu0 0.0
  %1029 = vmatprep.subr.mxu0 0.0
  %1030 = vmatpush2.msra.mxu0 0.0
  %1031 = vmatprep.subr.mxu0 0.0
  %1032 = vmatpush2.msra.mxu0 0.0
  %1033 = vmatprep.subr.mxu0 0.0
  %1034 = vmatpush2.msra.mxu0 0.0
  %1035 = vmatprep.mubr.f32.mxu0 0.0
  %1036 = vmatmul.mubr.f32.gmra.mxu0 %v960
  %v1037 = vpop.f32.mrf.mxu0
  %v1038 = vadd.f32 0.0, %v1037
  %v1039 = vpop.f32.mrf.mxu0
  %1040 = vmatprep.mubr.f32.mxu0 0.0
  %1041 = vmatmul.mubr.f32.gmra.mxu0 %v963
  %v1042 = vpop.f32.mrf.mxu0
  %v1043 = vadd.f32 0.0, %v1042
  %v1044 = vpop.f32.mrf.mxu0
  %1045 = vmatprep.mubr.f32.mxu0 0.0
  %1046 = vmatmul.mubr.f32.gmra.mxu0 %v966
  %v1047 = vpop.f32.mrf.mxu0
  %v1048 = vadd.f32 0.0, %v1047
  %v1049 = vpop.f32.mrf.mxu0
  %1050 = vmatprep.mubr.f32.mxu0 0.0
  %1051 = vmatmul.mubr.f32.gmra.mxu0 %v969
  %v1052 = vpop.f32.mrf.mxu0
  %v1053 = vadd.f32 0.0, %v1052
  %v1054 = vpop.f32.mrf.mxu0
  %1055 = vdwg.mxu0
  %1056 = vmatprep.subr.mxu0 0.0
  %1057 = vmatpush1.msra.mxu0 0.0
  %1058 = vmatprep.subr.mxu0 0.0
  %1059 = vmatpush1.msra.mxu0 0.0
  %1060 = vmatprep.subr.mxu0 0.0
  %1061 = vmatpush1.msra.mxu0 0.0
  %1062 = vmatprep.subr.mxu0 0.0
  %1063 = vmatpush1.msra.mxu0 0.0
  %1064 = vmatprep.subr.mxu0 0.0
  %1065 = vmatpush1.msra.mxu0 0.0
  %1066 = vmatprep.subr.mxu0 0.0
  %1067 = vmatpush1.msra.mxu0 0.0
  %1068 = vmatprep.subr.mxu0 0.0
  %1069 = vmatpush1.msra.mxu0 0.0
  %1070 = vmatprep.subr.mxu0 0.0
  %1071 = vmatpush1.msra.mxu0 0.0
  %1072 = vmatprep.subr.mxu0 0.0
  %1073 = vmatpush1.msra.mxu0 0.0
  %1074 = vmatprep.subr.mxu0 0.0
  %1075 = vmatpush1.msra.mxu0 0.0
  %1076 = vmatprep.subr.mxu0 0.0
  %1077 = vmatpush1.msra.mxu0 0.0
  %1078 = vmatprep.subr.mxu0 0.0
  %1079 = vmatpush1.msra.mxu0 0.0
  %1080 = vmatprep.subr.mxu0 0.0
  %1081 = vmatpush1.msra.mxu0 0.0
  %1082 = vmatprep.subr.mxu0 0.0
  %1083 = vmatpush1.msra.mxu0 0.0
  %1084 = vmatprep.subr.mxu0 0.0
  %1085 = vmatpush1.msra.mxu0 %v382
  %1086 = vmatprep.subr.mxu0 0.0
  %1087 = vmatpush1.msra.mxu0 %v381
  %1088 = vmatprep.subr.mxu0 0.0
  %1089 = vmatpush2.msra.mxu0 0.0
  %1090 = vmatprep.subr.mxu0 0.0
  %1091 = vmatpush2.msra.mxu0 0.0
  %1092 = vmatprep.subr.mxu0 0.0
  %1093 = vmatpush2.msra.mxu0 0.0
  %1094 = vmatprep.subr.mxu0 0.0
  %1095 = vmatpush2.msra.mxu0 0.0
  %1096 = vmatprep.subr.mxu0 0.0
  %1097 = vmatpush2.msra.mxu0 0.0
  %1098 = vmatprep.subr.mxu0 0.0
  %1099 = vmatpush2.msra.mxu0 0.0
  %1100 = vmatprep.subr.mxu0 0.0
  %1101 = vmatpush2.msra.mxu0 0.0
  %1102 = vmatprep.subr.mxu0 0.0
  %1103 = vmatpush2.msra.mxu0 0.0
  %1104 = vmatprep.subr.mxu0 0.0
  %1105 = vmatpush2.msra.mxu0 0.0
  %1106 = vmatprep.subr.mxu0 0.0
  %1107 = vmatpush2.msra.mxu0 0.0
  %1108 = vmatprep.subr.mxu0 0.0
  %1109 = vmatpush2.msra.mxu0 0.0
  %1110 = vmatprep.subr.mxu0 0.0
  %1111 = vmatpush2.msra.mxu0 0.0
  %1112 = vmatprep.subr.mxu0 0.0
  %1113 = vmatpush2.msra.mxu0 0.0
  %1114 = vmatprep.subr.mxu0 0.0
  %1115 = vmatpush2.msra.mxu0 0.0
  %1116 = vmatprep.subr.mxu0 0.0
  %1117 = vmatpush2.msra.mxu0 0.0
  %1118 = vmatprep.subr.mxu0 0.0
  %1119 = vmatpush2.msra.mxu0 0.0
  %1120 = vmatprep.mubr.f32.mxu0 0.0
  %1121 = vmatmul.mubr.f32.gmra.mxu0 %v960
  %v1122 = vpop.f32.mrf.mxu0
  %v1123 = vadd.f32 0.0, %v1122
  %v1124 = vpop.f32.mrf.mxu0
  %1125 = vmatprep.mubr.f32.mxu0 0.0
  %1126 = vmatmul.mubr.f32.gmra.mxu0 %v963
  %v1127 = vpop.f32.mrf.mxu0
  %v1128 = vadd.f32 0.0, %v1127
  %v1129 = vpop.f32.mrf.mxu0
  %1130 = vmatprep.mubr.f32.mxu0 0.0
  %1131 = vmatmul.mubr.f32.gmra.mxu0 %v966
  %v1132 = vpop.f32.mrf.mxu0
  %v1133 = vadd.f32 0.0, %v1132
  %v1134 = vpop.f32.mrf.mxu0
  %1135 = vmatprep.mubr.f32.mxu0 0.0
  %1136 = vmatmul.mubr.f32.gmra.mxu0 %v969
  %v1137 = vpop.f32.mrf.mxu0
  %v1138 = vadd.f32 0.0, %v1137
  %v1139 = vpop.f32.mrf.mxu0
  %1140 = vdwg.mxu0
  %v1141 = vmax.f32 %v1038, %v1123
  %v1142 = vmax.f32 %v1043, %v1128
  %v1143 = vmax.f32 %v1048, %v1133
  %v1144 = vmax.f32 %v1053, %v1138
  %v1145 = vld [vmem:[%s5] sm:$0xff]
  %v1146 = vld [vmem:[%s5 + $0x8] sm:$0xff]
  %v1147 = vld [vmem:[%s5 + $0x10] sm:$0xff]
  %v1148 = vld [vmem:[%s5 + $0x18] sm:$0xff]
  %v1149 = vld [vmem:[%s5 + $0x20] sm:$0xff]
  %v1150 = vld [vmem:[%s5 + $0x28] sm:$0xff]
  %v1151 = vld [vmem:[%s5 + $0x30] sm:$0xff]
  %v1152 = vld [vmem:[%s5 + $0x38] sm:$0xff]
  %v1153 = vld [vmem:[%s6] sm:$0xff]
  %v1154 = vld [vmem:[%s6 + $0x8] sm:$0xff]
  %v1155 = vld [vmem:[%s6 + $0x10] sm:$0xff]
  %v1156 = vld [vmem:[%s6 + $0x18] sm:$0xff]
  %v1157 = vld [vmem:[%s6 + $0x20] sm:$0xff]
  %v1158 = vld [vmem:[%s6 + $0x28] sm:$0xff]
  %v1159 = vld [vmem:[%s6 + $0x30] sm:$0xff]
  %v1160 = vld [vmem:[%s6 + $0x38] sm:$0xff]
  %v1161 = vld [vmem:[%s6 + $0x40] sm:$0xff]
  %v1162 = vld [vmem:[%s6 + $0x48] sm:$0xff]
  %v1163 = vld [vmem:[%s6 + $0x50] sm:$0xff]
  %v1164 = vld [vmem:[%s6 + $0x58] sm:$0xff]
  %v1165 = vld [vmem:[%s6 + $0x60] sm:$0xff]
  %v1166 = vld [vmem:[%s6 + $0x68] sm:$0xff]
  %v1167 = vld [vmem:[%s6 + $0x70] sm:$0xff]
  %v1168 = vld [vmem:[%s6 + $0x78] sm:$0xff]
  %v1169 = vld [vmem:[%s6 + $0x80] sm:$0xff]
  %v1170 = vld [vmem:[%s6 + $0x88] sm:$0xff]
  %v1171 = vld [vmem:[%s6 + $0x90] sm:$0xff]
  %v1172 = vld [vmem:[%s6 + $0x98] sm:$0xff]
  %v1173 = vld [vmem:[%s6 + $0xa0] sm:$0xff]
  %v1174 = vld [vmem:[%s6 + $0xa8] sm:$0xff]
  %v1175 = vld [vmem:[%s6 + $0xb0] sm:$0xff]
  %v1176 = vld [vmem:[%s6 + $0xb8] sm:$0xff]
  %vm1177 = vcmp.ne.s32.totalorder %v65, 4
  %vm1178 = vmand %vm74, %vm1177
  %vm1179 = vmand %vm70, %vm1178
  %v1180 = vsel %vm1179, 1.0, 0.0
  %vm1181 = vcmp.ne.s32.totalorder %v65, 3
  %vm1182 = vmand %vm1181, %vm565
  %vm1183 = vmand %vm86, %vm1182
  %v1184 = vsel %vm1183, 1.0, 0.0
  %vm1185 = vcmask 64512
  %v1187 = vsel %vm1185, %v1141, 0
  %v1190 = vsel %vm1185, %v1142, 0
  %v1193 = vsel %vm1185, %v1143, 0
  %v1196 = vsel %vm1185, %v1144, 0
  %1198 = vmatprep.subr.mxu0 0.0
  %1199 = vmatpush1.msra.mxu0 0.0
  %1200 = vmatprep.subr.mxu0 0.0
  %1201 = vmatpush1.msra.mxu0 0.0
  %1202 = vmatprep.subr.mxu0 0.0
  %1203 = vmatpush1.msra.mxu0 0.0
  %1204 = vmatprep.subr.mxu0 0.0
  %1205 = vmatpush1.msra.mxu0 0.0
  %1206 = vmatprep.subr.mxu0 0.0
  %1207 = vmatpush1.msra.mxu0 0.0
  %1208 = vmatprep.subr.mxu0 0.0
  %1209 = vmatpush1.msra.mxu0 0.0
  %1210 = vmatprep.subr.mxu0 0.0
  %1211 = vmatpush1.msra.mxu0 0.0
  %1212 = vmatprep.subr.mxu0 0.0
  %1213 = vmatpush1.msra.mxu0 0.0
  %1214 = vmatprep.subr.mxu0 0.0
  %1215 = vmatpush1.msra.mxu0 0.0
  %1216 = vmatprep.subr.mxu0 0.0
  %1217 = vmatpush1.msra.mxu0 0.0
  %1218 = vmatprep.subr.mxu0 0.0
  %1219 = vmatpush1.msra.mxu0 0.0
  %1220 = vmatprep.subr.mxu0 0.0
  %1221 = vmatpush1.msra.mxu0 0.0
  %1222 = vmatprep.subr.mxu0 0.0
  %1223 = vmatpush1.msra.mxu0 0.0
  %1224 = vmatprep.subr.mxu0 0.0
  %1225 = vmatpush1.msra.mxu0 0.0
  %1226 = vmatprep.subr.mxu0 0.0
  %1227 = vmatpush1.msra.mxu0 0.0
  %1228 = vmatprep.subr.mxu0 0.0
  %1229 = vmatpush1.msra.mxu0 %v1180
  %1230 = vmatprep.subr.mxu0 0.0
  %1231 = vmatpush2.msra.mxu0 0.0
  %1232 = vmatprep.subr.mxu0 0.0
  %1233 = vmatpush2.msra.mxu0 0.0
  %1234 = vmatprep.subr.mxu0 0.0
  %1235 = vmatpush2.msra.mxu0 0.0
  %1236 = vmatprep.subr.mxu0 0.0
  %1237 = vmatpush2.msra.mxu0 0.0
  %1238 = vmatprep.subr.mxu0 0.0
  %1239 = vmatpush2.msra.mxu0 0.0
  %1240 = vmatprep.subr.mxu0 0.0
  %1241 = vmatpush2.msra.mxu0 0.0
  %1242 = vmatprep.subr.mxu0 0.0
  %1243 = vmatpush2.msra.mxu0 0.0
  %1244 = vmatprep.subr.mxu0 0.0
  %1245 = vmatpush2.msra.mxu0 0.0
  %1246 = vmatprep.subr.mxu0 0.0
  %1247 = vmatpush2.msra.mxu0 0.0
  %1248 = vmatprep.subr.mxu0 0.0
  %1249 = vmatpush2.msra.mxu0 0.0
  %1250 = vmatprep.subr.mxu0 0.0
  %1251 = vmatpush2.msra.mxu0 0.0
  %1252 = vmatprep.subr.mxu0 0.0
  %1253 = vmatpush2.msra.mxu0 0.0
  %1254 = vmatprep.subr.mxu0 0.0
  %1255 = vmatpush2.msra.mxu0 0.0
  %1256 = vmatprep.subr.mxu0 0.0
  %1257 = vmatpush2.msra.mxu0 0.0
  %1258 = vmatprep.subr.mxu0 0.0
  %1259 = vmatpush2.msra.mxu0 0.0
  %1260 = vmatprep.subr.mxu0 0.0
  %1261 = vmatpush2.msra.mxu0 0.0
  %1262 = vmatprep.mubr.f32.mxu0 0.0
  %1263 = vmatmul.mubr.f32.gmra.mxu0 %v1187
  %v1264 = vpop.f32.mrf.mxu0
  %v1265 = vadd.f32 0.0, %v1264
  %v1266 = vpop.f32.mrf.mxu0
  %1267 = vmatprep.mubr.f32.mxu0 0.0
  %1268 = vmatmul.mubr.f32.gmra.mxu0 %v1190
  %v1269 = vpop.f32.mrf.mxu0
  %v1270 = vadd.f32 0.0, %v1269
  %v1271 = vpop.f32.mrf.mxu0
  %1272 = vmatprep.mubr.f32.mxu0 0.0
  %1273 = vmatmul.mubr.f32.gmra.mxu0 %v1193
  %v1274 = vpop.f32.mrf.mxu0
  %v1275 = vadd.f32 0.0, %v1274
  %v1276 = vpop.f32.mrf.mxu0
  %1277 = vmatprep.mubr.f32.mxu0 0.0
  %1278 = vmatmul.mubr.f32.gmra.mxu0 %v1196
  %v1279 = vpop.f32.mrf.mxu0
  %v1280 = vadd.f32 0.0, %v1279
  %v1281 = vpop.f32.mrf.mxu0
  %1282 = vdwg.mxu0
  %1283 = vmatprep.subr.mxu0 0.0
  %1284 = vmatpush1.msra.mxu0 0.0
  %1285 = vmatprep.subr.mxu0 0.0
  %1286 = vmatpush1.msra.mxu0 0.0
  %1287 = vmatprep.subr.mxu0 0.0
  %1288 = vmatpush1.msra.mxu0 0.0
  %1289 = vmatprep.subr.mxu0 0.0
  %1290 = vmatpush1.msra.mxu0 0.0
  %1291 = vmatprep.subr.mxu0 0.0
  %1292 = vmatpush1.msra.mxu0 0.0
  %1293 = vmatprep.subr.mxu0 0.0
  %1294 = vmatpush1.msra.mxu0 0.0
  %1295 = vmatprep.subr.mxu0 0.0
  %1296 = vmatpush1.msra.mxu0 0.0
  %1297 = vmatprep.subr.mxu0 0.0
  %1298 = vmatpush1.msra.mxu0 0.0
  %1299 = vmatprep.subr.mxu0 0.0
  %1300 = vmatpush1.msra.mxu0 0.0
  %1301 = vmatprep.subr.mxu0 0.0
  %1302 = vmatpush1.msra.mxu0 0.0
  %1303 = vmatprep.subr.mxu0 0.0
  %1304 = vmatpush1.msra.mxu0 0.0
  %1305 = vmatprep.subr.mxu0 0.0
  %1306 = vmatpush1.msra.mxu0 0.0
  %1307 = vmatprep.subr.mxu0 0.0
  %1308 = vmatpush1.msra.mxu0 0.0
  %1309 = vmatprep.subr.mxu0 0.0
  %1310 = vmatpush1.msra.mxu0 0.0
  %1311 = vmatprep.subr.mxu0 0.0
  %1312 = vmatpush1.msra.mxu0 0.0
  %1313 = vmatprep.subr.mxu0 0.0
  %1314 = vmatpush1.msra.mxu0 %v1184
  %1315 = vmatprep.subr.mxu0 0.0
  %1316 = vmatpush2.msra.mxu0 0.0
  %1317 = vmatprep.subr.mxu0 0.0
  %1318 = vmatpush2.msra.mxu0 0.0
  %1319 = vmatprep.subr.mxu0 0.0
  %1320 = vmatpush2.msra.mxu0 0.0
  %1321 = vmatprep.subr.mxu0 0.0
  %1322 = vmatpush2.msra.mxu0 0.0
  %1323 = vmatprep.subr.mxu0 0.0
  %1324 = vmatpush2.msra.mxu0 0.0
  %1325 = vmatprep.subr.mxu0 0.0
  %1326 = vmatpush2.msra.mxu0 0.0
  %1327 = vmatprep.subr.mxu0 0.0
  %1328 = vmatpush2.msra.mxu0 0.0
  %1329 = vmatprep.subr.mxu0 0.0
  %1330 = vmatpush2.msra.mxu0 0.0
  %1331 = vmatprep.subr.mxu0 0.0
  %1332 = vmatpush2.msra.mxu0 0.0
  %1333 = vmatprep.subr.mxu0 0.0
  %1334 = vmatpush2.msra.mxu0 0.0
  %1335 = vmatprep.subr.mxu0 0.0
  %1336 = vmatpush2.msra.mxu0 0.0
  %1337 = vmatprep.subr.mxu0 0.0
  %1338 = vmatpush2.msra.mxu0 0.0
  %1339 = vmatprep.subr.mxu0 0.0
  %1340 = vmatpush2.msra.mxu0 0.0
  %1341 = vmatprep.subr.mxu0 0.0
  %1342 = vmatpush2.msra.mxu0 0.0
  %1343 = vmatprep.subr.mxu0 0.0
  %1344 = vmatpush2.msra.mxu0 0.0
  %1345 = vmatprep.subr.mxu0 0.0
  %1346 = vmatpush2.msra.mxu0 0.0
  %1347 = vmatprep.mubr.f32.mxu0 0.0
  %1348 = vmatmul.mubr.f32.gmra.mxu0 %v1187
  %v1349 = vpop.f32.mrf.mxu0
  %v1350 = vadd.f32 0.0, %v1349
  %v1351 = vpop.f32.mrf.mxu0
  %1352 = vmatprep.mubr.f32.mxu0 0.0
  %1353 = vmatmul.mubr.f32.gmra.mxu0 %v1190
  %v1354 = vpop.f32.mrf.mxu0
  %v1355 = vadd.f32 0.0, %v1354
  %v1356 = vpop.f32.mrf.mxu0
  %1357 = vmatprep.mubr.f32.mxu0 0.0
  %1358 = vmatmul.mubr.f32.gmra.mxu0 %v1193
  %v1359 = vpop.f32.mrf.mxu0
  %v1360 = vadd.f32 0.0, %v1359
  %v1361 = vpop.f32.mrf.mxu0
  %1362 = vmatprep.mubr.f32.mxu0 0.0
  %1363 = vmatmul.mubr.f32.gmra.mxu0 %v1196
  %v1364 = vpop.f32.mrf.mxu0
  %v1365 = vadd.f32 0.0, %v1364
  %v1366 = vpop.f32.mrf.mxu0
  %1367 = vdwg.mxu0
  %1369 = vset.pattern.permute.xlu0 0
  %1370 = vperm.xlu0 %1369, %v1153
  %v1371 = vpop.permute.xlu0 %1370
  %1374 = vset.pattern.permute.xlu0 0
  %1375 = vperm.xlu0 %1374, %v1154
  %v1376 = vpop.permute.xlu0 %1375
  %1379 = vset.pattern.permute.xlu0 0
  %1380 = vperm.xlu0 %1379, %v1155
  %v1381 = vpop.permute.xlu0 %1380
  %1384 = vset.pattern.permute.xlu0 0
  %1385 = vperm.xlu0 %1384, %v1156
  %v1386 = vpop.permute.xlu0 %1385
  %1389 = vset.pattern.permute.xlu0 0
  %1390 = vperm.xlu0 %1389, %v1157
  %v1391 = vpop.permute.xlu0 %1390
  %1394 = vset.pattern.permute.xlu0 0
  %1395 = vperm.xlu0 %1394, %v1158
  %v1396 = vpop.permute.xlu0 %1395
  %1399 = vset.pattern.permute.xlu0 0
  %1400 = vperm.xlu0 %1399, %v1159
  %v1401 = vpop.permute.xlu0 %1400
  %1404 = vset.pattern.permute.xlu0 0
  %1405 = vperm.xlu0 %1404, %v1160
  %v1406 = vpop.permute.xlu0 %1405
  %vm1408 = vcmask 785408
  %v1410 = vsel %vm1408, %v1145, 0
  %v1413 = vsel %vm1408, %v1146, 0
  %v1416 = vsel %vm1408, %v1147, 0
  %v1419 = vsel %vm1408, %v1148, 0
  %v1422 = vsel %vm1408, %v1149, 0
  %v1425 = vsel %vm1408, %v1150, 0
  %v1428 = vsel %vm1408, %v1151, 0
  %v1431 = vsel %vm1408, %v1152, 0
  %1433 = vmatprep.subr.mxu0 0.0
  %1434 = vmatpush1.msra.mxu0 0.0
  %1435 = vmatprep.subr.mxu0 0.0
  %1436 = vmatpush1.msra.mxu0 0.0
  %1437 = vmatprep.subr.mxu0 0.0
  %1438 = vmatpush1.msra.mxu0 0.0
  %1439 = vmatprep.subr.mxu0 0.0
  %1440 = vmatpush1.msra.mxu0 0.0
  %1441 = vmatprep.subr.mxu0 0.0
  %1442 = vmatpush1.msra.mxu0 %v1365
  %1443 = vmatprep.subr.mxu0 0.0
  %1444 = vmatpush1.msra.mxu0 %v1360
  %1445 = vmatprep.subr.mxu0 0.0
  %1446 = vmatpush1.msra.mxu0 %v1355
  %1447 = vmatprep.subr.mxu0 0.0
  %1448 = vmatpush1.msra.mxu0 %v1350
  %1449 = vmatprep.subr.mxu0 0.0
  %1450 = vmatpush1.msra.mxu0 %v1144
  %1451 = vmatprep.subr.mxu0 0.0
  %1452 = vmatpush1.msra.mxu0 %v1143
  %1453 = vmatprep.subr.mxu0 0.0
  %1454 = vmatpush1.msra.mxu0 %v1142
  %1455 = vmatprep.subr.mxu0 0.0
  %1456 = vmatpush1.msra.mxu0 %v1141
  %1457 = vmatprep.subr.mxu0 0.0
  %1458 = vmatpush1.msra.mxu0 %v1280
  %1459 = vmatprep.subr.mxu0 0.0
  %1460 = vmatpush1.msra.mxu0 %v1275
  %1461 = vmatprep.subr.mxu0 0.0
  %1462 = vmatpush1.msra.mxu0 %v1270
  %1463 = vmatprep.subr.mxu0 0.0
  %1464 = vmatpush1.msra.mxu0 %v1265
  %1465 = vmatprep.subr.mxu0 0.0
  %1466 = vmatpush2.msra.mxu0 0.0
  %1467 = vmatprep.subr.mxu0 0.0
  %1468 = vmatpush2.msra.mxu0 0.0
  %1469 = vmatprep.subr.mxu0 0.0
  %1470 = vmatpush2.msra.mxu0 0.0
  %1471 = vmatprep.subr.mxu0 0.0
  %1472 = vmatpush2.msra.mxu0 0.0
  %1473 = vmatprep.subr.mxu0 0.0
  %1474 = vmatpush2.msra.mxu0 0.0
  %1475 = vmatprep.subr.mxu0 0.0
  %1476 = vmatpush2.msra.mxu0 0.0
  %1477 = vmatprep.subr.mxu0 0.0
  %1478 = vmatpush2.msra.mxu0 0.0
  %1479 = vmatprep.subr.mxu0 0.0
  %1480 = vmatpush2.msra.mxu0 0.0
  %1481 = vmatprep.subr.mxu0 0.0
  %1482 = vmatpush2.msra.mxu0 0.0
  %1483 = vmatprep.subr.mxu0 0.0
  %1484 = vmatpush2.msra.mxu0 0.0
  %1485 = vmatprep.subr.mxu0 0.0
  %1486 = vmatpush2.msra.mxu0 0.0
  %1487 = vmatprep.subr.mxu0 0.0
  %1488 = vmatpush2.msra.mxu0 0.0
  %1489 = vmatprep.subr.mxu0 0.0
  %1490 = vmatpush2.msra.mxu0 0.0
  %1491 = vmatprep.subr.mxu0 0.0
  %1492 = vmatpush2.msra.mxu0 0.0
  %1493 = vmatprep.subr.mxu0 0.0
  %1494 = vmatpush2.msra.mxu0 0.0
  %1495 = vmatprep.subr.mxu0 0.0
  %1496 = vmatpush2.msra.mxu0 0.0
  %1497 = vmatprep.mubr.f32.mxu0 0.0
  %1498 = vmatmul.mubr.f32.gmra.mxu0 %v1410
  %v1499 = vpop.f32.mrf.mxu0
  %v1500 = vadd.f32 %v1371, %v1499
  %v1501 = vpop.f32.mrf.mxu0
  %1502 = vmatprep.mubr.f32.mxu0 0.0
  %1503 = vmatmul.mubr.f32.gmra.mxu0 %v1413
  %v1504 = vpop.f32.mrf.mxu0
  %v1505 = vadd.f32 %v1376, %v1504
  %v1506 = vpop.f32.mrf.mxu0
  %1507 = vmatprep.mubr.f32.mxu0 0.0
  %1508 = vmatmul.mubr.f32.gmra.mxu0 %v1416
  %v1509 = vpop.f32.mrf.mxu0
  %v1510 = vadd.f32 %v1381, %v1509
  %v1511 = vpop.f32.mrf.mxu0
  %1512 = vmatprep.mubr.f32.mxu0 0.0
  %1513 = vmatmul.mubr.f32.gmra.mxu0 %v1419
  %v1514 = vpop.f32.mrf.mxu0
  %v1515 = vadd.f32 %v1386, %v1514
  %v1516 = vpop.f32.mrf.mxu0
  %1517 = vmatprep.mubr.f32.mxu0 0.0
  %1518 = vmatmul.mubr.f32.gmra.mxu0 %v1422
  %v1519 = vpop.f32.mrf.mxu0
  %v1520 = vadd.f32 %v1391, %v1519
  %v1521 = vpop.f32.mrf.mxu0
  %1522 = vmatprep.mubr.f32.mxu0 0.0
  %1523 = vmatmul.mubr.f32.gmra.mxu0 %v1425
  %v1524 = vpop.f32.mrf.mxu0
  %v1525 = vadd.f32 %v1396, %v1524
  %v1526 = vpop.f32.mrf.mxu0
  %1527 = vmatprep.mubr.f32.mxu0 0.0
  %1528 = vmatmul.mubr.f32.gmra.mxu0 %v1428
  %v1529 = vpop.f32.mrf.mxu0
  %v1530 = vadd.f32 %v1401, %v1529
  %v1531 = vpop.f32.mrf.mxu0
  %1532 = vmatprep.mubr.f32.mxu0 0.0
  %1533 = vmatmul.mubr.f32.gmra.mxu0 %v1431
  %v1534 = vpop.f32.mrf.mxu0
  %v1535 = vadd.f32 %v1406, %v1534
  %v1536 = vpop.f32.mrf.mxu0
  %1537 = vdwg.mxu0
  %v1538 = vmax.f32 %v1500, 0.0
  %v1539 = vmax.f32 %v1505, 0.0
  %v1540 = vmax.f32 %v1510, 0.0
  %v1541 = vmax.f32 %v1515, 0.0
  %v1542 = vmax.f32 %v1520, 0.0
  %v1543 = vmax.f32 %v1525, 0.0
  %v1544 = vmax.f32 %v1530, 0.0
  %v1545 = vmax.f32 %v1535, 0.0
  %v1546 = vsel %vm1185, %v1538, 0.0
  %1547 = vadd.xlane.f32.xlu0 %v1546
  %v1548 = vpop.xlane.xlu0 %1547
  %v1549 = vsel %vm1185, %v1539, 0.0
  %1550 = vadd.xlane.f32.xlu0 %v1549
  %v1551 = vpop.xlane.xlu0 %1550
  %v1552 = vsel %vm1185, %v1540, 0.0
  %1553 = vadd.xlane.f32.xlu0 %v1552
  %v1554 = vpop.xlane.xlu0 %1553
  %v1555 = vsel %vm1185, %v1541, 0.0
  %1556 = vadd.xlane.f32.xlu0 %v1555
  %v1557 = vpop.xlane.xlu0 %1556
  %v1558 = vsel %vm1185, %v1542, 0.0
  %1559 = vadd.xlane.f32.xlu0 %v1558
  %v1560 = vpop.xlane.xlu0 %1559
  %v1561 = vsel %vm1185, %v1543, 0.0
  %1562 = vadd.xlane.f32.xlu0 %v1561
  %v1563 = vpop.xlane.xlu0 %1562
  %v1564 = vsel %vm1185, %v1544, 0.0
  %1565 = vadd.xlane.f32.xlu0 %v1564
  %v1566 = vpop.xlane.xlu0 %1565
  %v1567 = vsel %vm1185, %v1545, 0.0
  %1568 = vadd.xlane.f32.xlu0 %v1567
  %v1569 = vpop.xlane.xlu0 %1568
  %v1570 = vrcp.pop 8.0
  %v1571 = vmul.f32 %v1548, %v1570
  %v1572 = vmul.f32 %v1551, %v1570
  %v1573 = vmul.f32 %v1554, %v1570
  %v1574 = vmul.f32 %v1557, %v1570
  %v1575 = vmul.f32 %v1560, %v1570
  %v1576 = vmul.f32 %v1563, %v1570
  %v1577 = vmul.f32 %v1566, %v1570
  %v1578 = vmul.f32 %v1569, %v1570
  %v1579 = vsub.f32 %v1538, %v1571
  %v1580 = vsub.f32 %v1539, %v1572
  %v1581 = vsub.f32 %v1540, %v1573
  %v1582 = vsub.f32 %v1541, %v1574
  %v1583 = vsub.f32 %v1542, %v1575
  %v1584 = vsub.f32 %v1543, %v1576
  %v1585 = vsub.f32 %v1544, %v1577
  %v1586 = vsub.f32 %v1545, %v1578
  %v1587 = vmul.f32 %v1579, %v1579
  %v1588 = vmul.f32 %v1580, %v1580
  %v1589 = vmul.f32 %v1581, %v1581
  %v1590 = vmul.f32 %v1582, %v1582
  %v1591 = vmul.f32 %v1583, %v1583
  %v1592 = vmul.f32 %v1584, %v1584
  %v1593 = vmul.f32 %v1585, %v1585
  %v1594 = vmul.f32 %v1586, %v1586
  %v1595 = vsel %vm1185, %v1587, 0.0
  %1596 = vadd.xlane.f32.xlu0 %v1595
  %v1597 = vpop.xlane.xlu0 %1596
  %v1598 = vsel %vm1185, %v1588, 0.0
  %1599 = vadd.xlane.f32.xlu0 %v1598
  %v1600 = vpop.xlane.xlu0 %1599
  %v1601 = vsel %vm1185, %v1589, 0.0
  %1602 = vadd.xlane.f32.xlu0 %v1601
  %v1603 = vpop.xlane.xlu0 %1602
  %v1604 = vsel %vm1185, %v1590, 0.0
  %1605 = vadd.xlane.f32.xlu0 %v1604
  %v1606 = vpop.xlane.xlu0 %1605
  %v1607 = vsel %vm1185, %v1591, 0.0
  %1608 = vadd.xlane.f32.xlu0 %v1607
  %v1609 = vpop.xlane.xlu0 %1608
  %v1610 = vsel %vm1185, %v1592, 0.0
  %1611 = vadd.xlane.f32.xlu0 %v1610
  %v1612 = vpop.xlane.xlu0 %1611
  %v1613 = vsel %vm1185, %v1593, 0.0
  %1614 = vadd.xlane.f32.xlu0 %v1613
  %v1615 = vpop.xlane.xlu0 %1614
  %v1616 = vsel %vm1185, %v1594, 0.0
  %1617 = vadd.xlane.f32.xlu0 %v1616
  %v1618 = vpop.xlane.xlu0 %1617
  %v1619 = vmul.f32 %v1597, %v1570
  %v1620 = vmul.f32 %v1600, %v1570
  %v1621 = vmul.f32 %v1603, %v1570
  %v1622 = vmul.f32 %v1606, %v1570
  %v1623 = vmul.f32 %v1609, %v1570
  %v1624 = vmul.f32 %v1612, %v1570
  %v1625 = vmul.f32 %v1615, %v1570
  %v1626 = vmul.f32 %v1618, %v1570
  %v1627 = vadd.f32 %v1619, 1e-05
  %v1628 = vadd.f32 %v1620, 1e-05
  %v1629 = vadd.f32 %v1621, 1e-05
  %v1630 = vadd.f32 %v1622, 1e-05
  %v1631 = vadd.f32 %v1623, 1e-05
  %v1632 = vadd.f32 %v1624, 1e-05
  %v1633 = vadd.f32 %v1625, 1e-05
  %v1634 = vadd.f32 %v1626, 1e-05
  %v1635 = vrsqrt.pop %v1627
  %v1636 = vrsqrt.pop %v1628
  %v1637 = vrsqrt.pop %v1629
  %v1638 = vrsqrt.pop %v1630
  %v1639 = vrsqrt.pop %v1631
  %v1640 = vrsqrt.pop %v1632
  %v1641 = vrsqrt.pop %v1633
  %v1642 = vrsqrt.pop %v1634
  %v1643 = vmul.f32 %v1161, %v1635
  %v1644 = vmul.f32 %v1162, %v1636
  %v1645 = vmul.f32 %v1163, %v1637
  %v1646 = vmul.f32 %v1164, %v1638
  %v1647 = vmul.f32 %v1165, %v1639
  %v1648 = vmul.f32 %v1166, %v1640
  %v1649 = vmul.f32 %v1167, %v1641
  %v1650 = vmul.f32 %v1168, %v1642
  %v1651 = vmul.f32 %v1571, %v1643
  %v1652 = vmul.f32 %v1572, %v1644
  %v1653 = vmul.f32 %v1573, %v1645
  %v1654 = vmul.f32 %v1574, %v1646
  %v1655 = vmul.f32 %v1575, %v1647
  %v1656 = vmul.f32 %v1576, %v1648
  %v1657 = vmul.f32 %v1577, %v1649
  %v1658 = vmul.f32 %v1578, %v1650
  %v1659 = vsub.f32 %v1169, %v1651
  %v1660 = vsub.f32 %v1170, %v1652
  %v1661 = vsub.f32 %v1171, %v1653
  %v1662 = vsub.f32 %v1172, %v1654
  %v1663 = vsub.f32 %v1173, %v1655
  %v1664 = vsub.f32 %v1174, %v1656
  %v1665 = vsub.f32 %v1175, %v1657
  %v1666 = vsub.f32 %v1176, %v1658
  %1668 = vset.pattern.permute.xlu0 0
  %1669 = vperm.xlu0 %1668, %v1643
  %v1670 = vpop.permute.xlu0 %1669
  %1673 = vset.pattern.permute.xlu0 0
  %1674 = vperm.xlu0 %1673, %v1644
  %v1675 = vpop.permute.xlu0 %1674
  %1678 = vset.pattern.permute.xlu0 0
  %1679 = vperm.xlu0 %1678, %v1645
  %v1680 = vpop.permute.xlu0 %1679
  %1683 = vset.pattern.permute.xlu0 0
  %1684 = vperm.xlu0 %1683, %v1646
  %v1685 = vpop.permute.xlu0 %1684
  %1688 = vset.pattern.permute.xlu0 0
  %1689 = vperm.xlu0 %1688, %v1647
  %v1690 = vpop.permute.xlu0 %1689
  %1693 = vset.pattern.permute.xlu0 0
  %1694 = vperm.xlu0 %1693, %v1648
  %v1695 = vpop.permute.xlu0 %1694
  %1698 = vset.pattern.permute.xlu0 0
  %1699 = vperm.xlu0 %1698, %v1649
  %v1700 = vpop.permute.xlu0 %1699
  %1703 = vset.pattern.permute.xlu0 0
  %1704 = vperm.xlu0 %1703, %v1650
  %v1705 = vpop.permute.xlu0 %1704
  %v1707 = vmul.f32 %v1538, %v1670
  %v1708 = vmul.f32 %v1539, %v1675
  %v1709 = vmul.f32 %v1540, %v1680
  %v1710 = vmul.f32 %v1541, %v1685
  %v1711 = vmul.f32 %v1542, %v1690
  %v1712 = vmul.f32 %v1543, %v1695
  %v1713 = vmul.f32 %v1544, %v1700
  %v1714 = vmul.f32 %v1545, %v1705
  %1716 = vset.pattern.permute.xlu0 0
  %1717 = vperm.xlu0 %1716, %v1659
  %v1718 = vpop.permute.xlu0 %1717
  %1721 = vset.pattern.permute.xlu0 0
  %1722 = vperm.xlu0 %1721, %v1660
  %v1723 = vpop.permute.xlu0 %1722
  %1726 = vset.pattern.permute.xlu0 0
  %1727 = vperm.xlu0 %1726, %v1661
  %v1728 = vpop.permute.xlu0 %1727
  %1731 = vset.pattern.permute.xlu0 0
  %1732 = vperm.xlu0 %1731, %v1662
  %v1733 = vpop.permute.xlu0 %1732
  %1736 = vset.pattern.permute.xlu0 0
  %1737 = vperm.xlu0 %1736, %v1663
  %v1738 = vpop.permute.xlu0 %1737
  %1741 = vset.pattern.permute.xlu0 0
  %1742 = vperm.xlu0 %1741, %v1664
  %v1743 = vpop.permute.xlu0 %1742
  %1746 = vset.pattern.permute.xlu0 0
  %1747 = vperm.xlu0 %1746, %v1665
  %v1748 = vpop.permute.xlu0 %1747
  %1751 = vset.pattern.permute.xlu0 0
  %1752 = vperm.xlu0 %1751, %v1666
  %v1753 = vpop.permute.xlu0 %1752
  %v1755 = vadd.f32 %v1707, %v1718
  %v1756 = vadd.f32 %v1708, %v1723
  %v1757 = vadd.f32 %v1709, %v1728
  %v1758 = vadd.f32 %v1710, %v1733
  %v1759 = vadd.f32 %v1711, %v1738
  %v1760 = vadd.f32 %v1712, %v1743
  %v1761 = vadd.f32 %v1713, %v1748
  %v1762 = vadd.f32 %v1714, %v1753
  %v1763 = vmul.u32 %v60, 2
  %vm1764 = vcmp.eq.s32.totalorder %v65, %v1763
  %v1765 = vadd.s32 %v1763, 1
  %vm1766 = vcmp.eq.s32.totalorder %v65, %v1765
  %vm1767 = vmor %vm1764, %vm1766
  %v1768 = vsel %vm1767, 1.0, 0.0
  %v1770 = vsel %vm1185, %v1755, 0
  %v1773 = vsel %vm1185, %v1756, 0
  %v1776 = vsel %vm1185, %v1757, 0
  %v1779 = vsel %vm1185, %v1758, 0
  %v1782 = vsel %vm1185, %v1759, 0
  %v1785 = vsel %vm1185, %v1760, 0
  %v1788 = vsel %vm1185, %v1761, 0
  %v1791 = vsel %vm1185, %v1762, 0
  %1793 = vmatprep.subr.mxu0 0.0
  %1794 = vmatpush1.msra.mxu0 0.0
  %1795 = vmatprep.subr.mxu0 0.0
  %1796 = vmatpush1.msra.mxu0 0.0
  %1797 = vmatprep.subr.mxu0 0.0
  %1798 = vmatpush1.msra.mxu0 0.0
  %1799 = vmatprep.subr.mxu0 0.0
  %1800 = vmatpush1.msra.mxu0 0.0
  %1801 = vmatprep.subr.mxu0 0.0
  %1802 = vmatpush1.msra.mxu0 0.0
  %1803 = vmatprep.subr.mxu0 0.0
  %1804 = vmatpush1.msra.mxu0 0.0
  %1805 = vmatprep.subr.mxu0 0.0
  %1806 = vmatpush1.msra.mxu0 0.0
  %1807 = vmatprep.subr.mxu0 0.0
  %1808 = vmatpush1.msra.mxu0 0.0
  %1809 = vmatprep.subr.mxu0 0.0
  %1810 = vmatpush1.msra.mxu0 0.0
  %1811 = vmatprep.subr.mxu0 0.0
  %1812 = vmatpush1.msra.mxu0 0.0
  %1813 = vmatprep.subr.mxu0 0.0
  %1814 = vmatpush1.msra.mxu0 0.0
  %1815 = vmatprep.subr.mxu0 0.0
  %1816 = vmatpush1.msra.mxu0 0.0
  %1817 = vmatprep.subr.mxu0 0.0
  %1818 = vmatpush1.msra.mxu0 0.0
  %1819 = vmatprep.subr.mxu0 0.0
  %1820 = vmatpush1.msra.mxu0 0.0
  %1821 = vmatprep.subr.mxu0 0.0
  %1822 = vmatpush1.msra.mxu0 0.0
  %1823 = vmatprep.subr.mxu0 0.0
  %1824 = vmatpush1.msra.mxu0 %v1768
  %1825 = vmatprep.subr.mxu0 0.0
  %1826 = vmatpush2.msra.mxu0 0.0
  %1827 = vmatprep.subr.mxu0 0.0
  %1828 = vmatpush2.msra.mxu0 0.0
  %1829 = vmatprep.subr.mxu0 0.0
  %1830 = vmatpush2.msra.mxu0 0.0
  %1831 = vmatprep.subr.mxu0 0.0
  %1832 = vmatpush2.msra.mxu0 0.0
  %1833 = vmatprep.subr.mxu0 0.0
  %1834 = vmatpush2.msra.mxu0 0.0
  %1835 = vmatprep.subr.mxu0 0.0
  %1836 = vmatpush2.msra.mxu0 0.0
  %1837 = vmatprep.subr.mxu0 0.0
  %1838 = vmatpush2.msra.mxu0 0.0
  %1839 = vmatprep.subr.mxu0 0.0
  %1840 = vmatpush2.msra.mxu0 0.0
  %1841 = vmatprep.subr.mxu0 0.0
  %1842 = vmatpush2.msra.mxu0 0.0
  %1843 = vmatprep.subr.mxu0 0.0
  %1844 = vmatpush2.msra.mxu0 0.0
  %1845 = vmatprep.subr.mxu0 0.0
  %1846 = vmatpush2.msra.mxu0 0.0
  %1847 = vmatprep.subr.mxu0 0.0
  %1848 = vmatpush2.msra.mxu0 0.0
  %1849 = vmatprep.subr.mxu0 0.0
  %1850 = vmatpush2.msra.mxu0 0.0
  %1851 = vmatprep.subr.mxu0 0.0
  %1852 = vmatpush2.msra.mxu0 0.0
  %1853 = vmatprep.subr.mxu0 0.0
  %1854 = vmatpush2.msra.mxu0 0.0
  %1855 = vmatprep.subr.mxu0 0.0
  %1856 = vmatpush2.msra.mxu0 0.0
  %1857 = vmatprep.mubr.f32.mxu0 0.0
  %1858 = vmatmul.mubr.f32.gmra.mxu0 %v1770
  %v1859 = vpop.f32.mrf.mxu0
  %v1860 = vadd.f32 0.0, %v1859
  %v1861 = vpop.f32.mrf.mxu0
  %1862 = vmatprep.mubr.f32.mxu0 0.0
  %1863 = vmatmul.mubr.f32.gmra.mxu0 %v1773
  %v1864 = vpop.f32.mrf.mxu0
  %v1865 = vadd.f32 0.0, %v1864
  %v1866 = vpop.f32.mrf.mxu0
  %1867 = vmatprep.mubr.f32.mxu0 0.0
  %1868 = vmatmul.mubr.f32.gmra.mxu0 %v1776
  %v1869 = vpop.f32.mrf.mxu0
  %v1870 = vadd.f32 0.0, %v1869
  %v1871 = vpop.f32.mrf.mxu0
  %1872 = vmatprep.mubr.f32.mxu0 0.0
  %1873 = vmatmul.mubr.f32.gmra.mxu0 %v1779
  %v1874 = vpop.f32.mrf.mxu0
  %v1875 = vadd.f32 0.0, %v1874
  %v1876 = vpop.f32.mrf.mxu0
  %1877 = vmatprep.mubr.f32.mxu0 0.0
  %1878 = vmatmul.mubr.f32.gmra.mxu0 %v1782
  %v1879 = vpop.f32.mrf.mxu0
  %v1880 = vadd.f32 0.0, %v1879
  %v1881 = vpop.f32.mrf.mxu0
  %1882 = vmatprep.mubr.f32.mxu0 0.0
  %1883 = vmatmul.mubr.f32.gmra.mxu0 %v1785
  %v1884 = vpop.f32.mrf.mxu0
  %v1885 = vadd.f32 0.0, %v1884
  %v1886 = vpop.f32.mrf.mxu0
  %1887 = vmatprep.mubr.f32.mxu0 0.0
  %1888 = vmatmul.mubr.f32.gmra.mxu0 %v1788
  %v1889 = vpop.f32.mrf.mxu0
  %v1890 = vadd.f32 0.0, %v1889
  %v1891 = vpop.f32.mrf.mxu0
  %1892 = vmatprep.mubr.f32.mxu0 0.0
  %1893 = vmatmul.mubr.f32.gmra.mxu0 %v1791
  %v1894 = vpop.f32.mrf.mxu0
  %v1895 = vadd.f32 0.0, %v1894
  %v1896 = vpop.f32.mrf.mxu0
  %1897 = vdwg.mxu0
  %v1898 = vld [vmem:[%s7] sm:$0xff]
  %v1899 = vld [vmem:[%s7 + $0x8] sm:$0xff]
  %v1900 = vld [vmem:[%s7 + $0x10] sm:$0xff]
  %v1901 = vld [vmem:[%s7 + $0x18] sm:$0xff]
  %v1902 = vld [vmem:[%s7 + $0x20] sm:$0xff]
  %v1903 = vld [vmem:[%s7 + $0x28] sm:$0xff]
  %v1904 = vld [vmem:[%s7 + $0x30] sm:$0xff]
  %v1905 = vld [vmem:[%s7 + $0x38] sm:$0xff]
  %v1906 = vld [vmem:[%s7 + $0x40] sm:$0xff]
  %v1907 = vld [vmem:[%s7 + $0x48] sm:$0xff]
  %v1908 = vld [vmem:[%s7 + $0x50] sm:$0xff]
  %v1909 = vld [vmem:[%s7 + $0x58] sm:$0xff]
  %v1910 = vld [vmem:[%s8] sm:$0xff]
  %v1911 = vld [vmem:[%s8 + $0x8] sm:$0xff]
  %v1912 = vld [vmem:[%s8 + $0x10] sm:$0xff]
  %v1913 = vld [vmem:[%s8 + $0x18] sm:$0xff]
  %v1914 = vld [vmem:[%s8 + $0x20] sm:$0xff]
  %v1915 = vld [vmem:[%s8 + $0x28] sm:$0xff]
  %v1916 = vld [vmem:[%s8 + $0x30] sm:$0xff]
  %v1917 = vld [vmem:[%s8 + $0x38] sm:$0xff]
  %v1918 = vld [vmem:[%s8 + $0x40] sm:$0xff]
  %v1919 = vld [vmem:[%s8 + $0x48] sm:$0xff]
  %v1920 = vld [vmem:[%s8 + $0x50] sm:$0xff]
  %v1921 = vld [vmem:[%s8 + $0x58] sm:$0xff]
  %v1923 = vsel %vm571, %v1860, 0
  %v1926 = vsel %vm571, %v1865, 0
  %v1929 = vsel %vm571, %v1870, 0
  %v1932 = vsel %vm571, %v1875, 0
  %v1935 = vsel %vm571, %v1880, 0
  %v1938 = vsel %vm571, %v1885, 0
  %v1941 = vsel %vm571, %v1890, 0
  %v1944 = vsel %vm571, %v1895, 0
  %1946 = vmatprep.subr.mxu0 0.0
  %1947 = vmatpush1.msra.mxu0 0.0
  %1948 = vmatprep.subr.mxu0 0.0
  %1949 = vmatpush1.msra.mxu0 0.0
  %1950 = vmatprep.subr.mxu0 0.0
  %1951 = vmatpush1.msra.mxu0 0.0
  %1952 = vmatprep.subr.mxu0 0.0
  %1953 = vmatpush1.msra.mxu0 0.0
  %1954 = vmatprep.subr.mxu0 0.0
  %1955 = vmatpush1.msra.mxu0 0.0
  %1956 = vmatprep.subr.mxu0 0.0
  %1957 = vmatpush1.msra.mxu0 0.0
  %1958 = vmatprep.subr.mxu0 0.0
  %1959 = vmatpush1.msra.mxu0 0.0
  %1960 = vmatprep.subr.mxu0 0.0
  %1961 = vmatpush1.msra.mxu0 0.0
  %1962 = vmatprep.subr.mxu0 0.0
  %1963 = vmatpush1.msra.mxu0 0.0
  %1964 = vmatprep.subr.mxu0 0.0
  %1965 = vmatpush1.msra.mxu0 0.0
  %1966 = vmatprep.subr.mxu0 0.0
  %1967 = vmatpush1.msra.mxu0 0.0
  %1968 = vmatprep.subr.mxu0 0.0
  %1969 = vmatpush1.msra.mxu0 0.0
  %1970 = vmatprep.subr.mxu0 0.0
  %1971 = vmatpush1.msra.mxu0 0.0
  %1972 = vmatprep.subr.mxu0 0.0
  %1973 = vmatpush1.msra.mxu0 0.0
  %1974 = vmatprep.subr.mxu0 0.0
  %1975 = vmatpush1.msra.mxu0 %v564
  %1976 = vmatprep.subr.mxu0 0.0
  %1977 = vmatpush1.msra.mxu0 %v563
  %1978 = vmatprep.subr.mxu0 0.0
  %1979 = vmatpush2.msra.mxu0 0.0
  %1980 = vmatprep.subr.mxu0 0.0
  %1981 = vmatpush2.msra.mxu0 0.0
  %1982 = vmatprep.subr.mxu0 0.0
  %1983 = vmatpush2.msra.mxu0 0.0
  %1984 = vmatprep.subr.mxu0 0.0
  %1985 = vmatpush2.msra.mxu0 0.0
  %1986 = vmatprep.subr.mxu0 0.0
  %1987 = vmatpush2.msra.mxu0 0.0
  %1988 = vmatprep.subr.mxu0 0.0
  %1989 = vmatpush2.msra.mxu0 0.0
  %1990 = vmatprep.subr.mxu0 0.0
  %1991 = vmatpush2.msra.mxu0 0.0
  %1992 = vmatprep.subr.mxu0 0.0
  %1993 = vmatpush2.msra.mxu0 0.0
  %1994 = vmatprep.subr.mxu0 0.0
  %1995 = vmatpush2.msra.mxu0 0.0
  %1996 = vmatprep.subr.mxu0 0.0
  %1997 = vmatpush2.msra.mxu0 0.0
  %1998 = vmatprep.subr.mxu0 0.0
  %1999 = vmatpush2.msra.mxu0 0.0
  %2000 = vmatprep.subr.mxu0 0.0
  %2001 = vmatpush2.msra.mxu0 0.0
  %2002 = vmatprep.subr.mxu0 0.0
  %2003 = vmatpush2.msra.mxu0 0.0
  %2004 = vmatprep.subr.mxu0 0.0
  %2005 = vmatpush2.msra.mxu0 0.0
  %2006 = vmatprep.subr.mxu0 0.0
  %2007 = vmatpush2.msra.mxu0 0.0
  %2008 = vmatprep.subr.mxu0 0.0
  %2009 = vmatpush2.msra.mxu0 0.0
  %2010 = vmatprep.mubr.f32.mxu0 0.0
  %2011 = vmatmul.mubr.f32.gmra.mxu0 %v1923
  %v2012 = vpop.f32.mrf.mxu0
  %v2013 = vadd.f32 0.0, %v2012
  %v2014 = vpop.f32.mrf.mxu0
  %2015 = vmatprep.mubr.f32.mxu0 0.0
  %2016 = vmatmul.mubr.f32.gmra.mxu0 %v1926
  %v2017 = vpop.f32.mrf.mxu0
  %v2018 = vadd.f32 0.0, %v2017
  %v2019 = vpop.f32.mrf.mxu0
  %2020 = vmatprep.mubr.f32.mxu0 0.0
  %2021 = vmatmul.mubr.f32.gmra.mxu0 %v1929
  %v2022 = vpop.f32.mrf.mxu0
  %v2023 = vadd.f32 0.0, %v2022
  %v2024 = vpop.f32.mrf.mxu0
  %2025 = vmatprep.mubr.f32.mxu0 0.0
  %2026 = vmatmul.mubr.f32.gmra.mxu0 %v1932
  %v2027 = vpop.f32.mrf.mxu0
  %v2028 = vadd.f32 0.0, %v2027
  %v2029 = vpop.f32.mrf.mxu0
  %2030 = vmatprep.mubr.f32.mxu0 0.0
  %2031 = vmatmul.mubr.f32.gmra.mxu0 %v1935
  %v2032 = vpop.f32.mrf.mxu0
  %v2033 = vadd.f32 0.0, %v2032
  %v2034 = vpop.f32.mrf.mxu0
  %2035 = vmatprep.mubr.f32.mxu0 0.0
  %2036 = vmatmul.mubr.f32.gmra.mxu0 %v1938
  %v2037 = vpop.f32.mrf.mxu0
  %v2038 = vadd.f32 0.0, %v2037
  %v2039 = vpop.f32.mrf.mxu0
  %2040 = vmatprep.mubr.f32.mxu0 0.0
  %2041 = vmatmul.mubr.f32.gmra.mxu0 %v1941
  %v2042 = vpop.f32.mrf.mxu0
  %v2043 = vadd.f32 0.0, %v2042
  %v2044 = vpop.f32.mrf.mxu0
  %2045 = vmatprep.mubr.f32.mxu0 0.0
  %2046 = vmatmul.mubr.f32.gmra.mxu0 %v1944
  %v2047 = vpop.f32.mrf.mxu0
  %v2048 = vadd.f32 0.0, %v2047
  %v2049 = vpop.f32.mrf.mxu0
  %2050 = vmatprep.mubr.f32.mxu0 0.0
  %2051 = vmatmul.mubr.f32.gmra.mxu0 %v960
  %v2052 = vpop.f32.mrf.mxu0
  %v2053 = vadd.f32 0.0, %v2052
  %v2054 = vpop.f32.mrf.mxu0
  %2055 = vmatprep.mubr.f32.mxu0 0.0
  %2056 = vmatmul.mubr.f32.gmra.mxu0 %v963
  %v2057 = vpop.f32.mrf.mxu0
  %v2058 = vadd.f32 0.0, %v2057
  %v2059 = vpop.f32.mrf.mxu0
  %2060 = vmatprep.mubr.f32.mxu0 0.0
  %2061 = vmatmul.mubr.f32.gmra.mxu0 %v966
  %v2062 = vpop.f32.mrf.mxu0
  %v2063 = vadd.f32 0.0, %v2062
  %v2064 = vpop.f32.mrf.mxu0
  %2065 = vmatprep.mubr.f32.mxu0 0.0
  %2066 = vmatmul.mubr.f32.gmra.mxu0 %v969
  %v2067 = vpop.f32.mrf.mxu0
  %v2068 = vadd.f32 0.0, %v2067
  %v2069 = vpop.f32.mrf.mxu0
  %2070 = vdwg.mxu0
  %2071 = vmatprep.subr.mxu0 0.0
  %2072 = vmatpush1.msra.mxu0 0.0
  %2073 = vmatprep.subr.mxu0 0.0
  %2074 = vmatpush1.msra.mxu0 0.0
  %2075 = vmatprep.subr.mxu0 0.0
  %2076 = vmatpush1.msra.mxu0 0.0
  %2077 = vmatprep.subr.mxu0 0.0
  %2078 = vmatpush1.msra.mxu0 0.0
  %2079 = vmatprep.subr.mxu0 0.0
  %2080 = vmatpush1.msra.mxu0 0.0
  %2081 = vmatprep.subr.mxu0 0.0
  %2082 = vmatpush1.msra.mxu0 0.0
  %2083 = vmatprep.subr.mxu0 0.0
  %2084 = vmatpush1.msra.mxu0 0.0
  %2085 = vmatprep.subr.mxu0 0.0
  %2086 = vmatpush1.msra.mxu0 0.0
  %2087 = vmatprep.subr.mxu0 0.0
  %2088 = vmatpush1.msra.mxu0 0.0
  %2089 = vmatprep.subr.mxu0 0.0
  %2090 = vmatpush1.msra.mxu0 0.0
  %2091 = vmatprep.subr.mxu0 0.0
  %2092 = vmatpush1.msra.mxu0 0.0
  %2093 = vmatprep.subr.mxu0 0.0
  %2094 = vmatpush1.msra.mxu0 0.0
  %2095 = vmatprep.subr.mxu0 0.0
  %2096 = vmatpush1.msra.mxu0 0.0
  %2097 = vmatprep.subr.mxu0 0.0
  %2098 = vmatpush1.msra.mxu0 0.0
  %2099 = vmatprep.subr.mxu0 0.0
  %2100 = vmatpush1.msra.mxu0 %v570
  %2101 = vmatprep.subr.mxu0 0.0
  %2102 = vmatpush1.msra.mxu0 %v569
  %2103 = vmatprep.subr.mxu0 0.0
  %2104 = vmatpush2.msra.mxu0 0.0
  %2105 = vmatprep.subr.mxu0 0.0
  %2106 = vmatpush2.msra.mxu0 0.0
  %2107 = vmatprep.subr.mxu0 0.0
  %2108 = vmatpush2.msra.mxu0 0.0
  %2109 = vmatprep.subr.mxu0 0.0
  %2110 = vmatpush2.msra.mxu0 0.0
  %2111 = vmatprep.subr.mxu0 0.0
  %2112 = vmatpush2.msra.mxu0 0.0
  %2113 = vmatprep.subr.mxu0 0.0
  %2114 = vmatpush2.msra.mxu0 0.0
  %2115 = vmatprep.subr.mxu0 0.0
  %2116 = vmatpush2.msra.mxu0 0.0
  %2117 = vmatprep.subr.mxu0 0.0
  %2118 = vmatpush2.msra.mxu0 0.0
  %2119 = vmatprep.subr.mxu0 0.0
  %2120 = vmatpush2.msra.mxu0 0.0
  %2121 = vmatprep.subr.mxu0 0.0
  %2122 = vmatpush2.msra.mxu0 0.0
  %2123 = vmatprep.subr.mxu0 0.0
  %2124 = vmatpush2.msra.mxu0 0.0
  %2125 = vmatprep.subr.mxu0 0.0
  %2126 = vmatpush2.msra.mxu0 0.0
  %2127 = vmatprep.subr.mxu0 0.0
  %2128 = vmatpush2.msra.mxu0 0.0
  %2129 = vmatprep.subr.mxu0 0.0
  %2130 = vmatpush2.msra.mxu0 0.0
  %2131 = vmatprep.subr.mxu0 0.0
  %2132 = vmatpush2.msra.mxu0 0.0
  %2133 = vmatprep.subr.mxu0 0.0
  %2134 = vmatpush2.msra.mxu0 0.0
  %2135 = vmatprep.mubr.f32.mxu0 0.0
  %2136 = vmatmul.mubr.f32.gmra.mxu0 %v1923
  %v2137 = vpop.f32.mrf.mxu0
  %v2138 = vadd.f32 0.0, %v2137
  %v2139 = vpop.f32.mrf.mxu0
  %2140 = vmatprep.mubr.f32.mxu0 0.0
  %2141 = vmatmul.mubr.f32.gmra.mxu0 %v1926
  %v2142 = vpop.f32.mrf.mxu0
  %v2143 = vadd.f32 0.0, %v2142
  %v2144 = vpop.f32.mrf.mxu0
  %2145 = vmatprep.mubr.f32.mxu0 0.0
  %2146 = vmatmul.mubr.f32.gmra.mxu0 %v1929
  %v2147 = vpop.f32.mrf.mxu0
  %v2148 = vadd.f32 0.0, %v2147
  %v2149 = vpop.f32.mrf.mxu0
  %2150 = vmatprep.mubr.f32.mxu0 0.0
  %2151 = vmatmul.mubr.f32.gmra.mxu0 %v1932
  %v2152 = vpop.f32.mrf.mxu0
  %v2153 = vadd.f32 0.0, %v2152
  %v2154 = vpop.f32.mrf.mxu0
  %2155 = vmatprep.mubr.f32.mxu0 0.0
  %2156 = vmatmul.mubr.f32.gmra.mxu0 %v1935
  %v2157 = vpop.f32.mrf.mxu0
  %v2158 = vadd.f32 0.0, %v2157
  %v2159 = vpop.f32.mrf.mxu0
  %2160 = vmatprep.mubr.f32.mxu0 0.0
  %2161 = vmatmul.mubr.f32.gmra.mxu0 %v1938
  %v2162 = vpop.f32.mrf.mxu0
  %v2163 = vadd.f32 0.0, %v2162
  %v2164 = vpop.f32.mrf.mxu0
  %2165 = vmatprep.mubr.f32.mxu0 0.0
  %2166 = vmatmul.mubr.f32.gmra.mxu0 %v1941
  %v2167 = vpop.f32.mrf.mxu0
  %v2168 = vadd.f32 0.0, %v2167
  %v2169 = vpop.f32.mrf.mxu0
  %2170 = vmatprep.mubr.f32.mxu0 0.0
  %2171 = vmatmul.mubr.f32.gmra.mxu0 %v1944
  %v2172 = vpop.f32.mrf.mxu0
  %v2173 = vadd.f32 0.0, %v2172
  %v2174 = vpop.f32.mrf.mxu0
  %2175 = vmatprep.mubr.f32.mxu0 0.0
  %2176 = vmatmul.mubr.f32.gmra.mxu0 %v960
  %v2177 = vpop.f32.mrf.mxu0
  %v2178 = vadd.f32 0.0, %v2177
  %v2179 = vpop.f32.mrf.mxu0
  %2180 = vmatprep.mubr.f32.mxu0 0.0
  %2181 = vmatmul.mubr.f32.gmra.mxu0 %v963
  %v2182 = vpop.f32.mrf.mxu0
  %v2183 = vadd.f32 0.0, %v2182
  %v2184 = vpop.f32.mrf.mxu0
  %2185 = vmatprep.mubr.f32.mxu0 0.0
  %2186 = vmatmul.mubr.f32.gmra.mxu0 %v966
  %v2187 = vpop.f32.mrf.mxu0
  %v2188 = vadd.f32 0.0, %v2187
  %v2189 = vpop.f32.mrf.mxu0
  %2190 = vmatprep.mubr.f32.mxu0 0.0
  %2191 = vmatmul.mubr.f32.gmra.mxu0 %v969
  %v2192 = vpop.f32.mrf.mxu0
  %v2193 = vadd.f32 0.0, %v2192
  %v2194 = vpop.f32.mrf.mxu0
  %2195 = vdwg.mxu0
  %2197 = vset.pattern.permute.xlu0 0
  %2198 = vperm.xlu0 %2197, %v1910
  %v2199 = vpop.permute.xlu0 %2198
  %2202 = vset.pattern.permute.xlu0 0
  %2203 = vperm.xlu0 %2202, %v1911
  %v2204 = vpop.permute.xlu0 %2203
  %2207 = vset.pattern.permute.xlu0 0
  %2208 = vperm.xlu0 %2207, %v1912
  %v2209 = vpop.permute.xlu0 %2208
  %2212 = vset.pattern.permute.xlu0 0
  %2213 = vperm.xlu0 %2212, %v1913
  %v2214 = vpop.permute.xlu0 %2213
  %v2217 = vsel %vm101, %v1900, 0
  %v2220 = vsel %vm101, %v1903, 0
  %v2223 = vsel %vm101, %v1906, 0
  %v2226 = vsel %vm101, %v1909, 0
  %2228 = vmatprep.subr.mxu0 0.0
  %2229 = vmatpush1.msra.mxu0 %v1875
  %2230 = vmatprep.subr.mxu0 0.0
  %2231 = vmatpush1.msra.mxu0 %v1870
  %2232 = vmatprep.subr.mxu0 0.0
  %2233 = vmatpush1.msra.mxu0 %v1865
  %2234 = vmatprep.subr.mxu0 0.0
  %2235 = vmatpush1.msra.mxu0 %v1860
  %2236 = vmatprep.subr.mxu0 0.0
  %2237 = vmatpush1.msra.mxu0 %v2068
  %2238 = vmatprep.subr.mxu0 0.0
  %2239 = vmatpush1.msra.mxu0 %v2063
  %2240 = vmatprep.subr.mxu0 0.0
  %2241 = vmatpush1.msra.mxu0 %v2058
  %2242 = vmatprep.subr.mxu0 0.0
  %2243 = vmatpush1.msra.mxu0 %v2053
  %2244 = vmatprep.subr.mxu0 0.0
  %2245 = vmatpush1.msra.mxu0 %v2048
  %2246 = vmatprep.subr.mxu0 0.0
  %2247 = vmatpush1.msra.mxu0 %v2043
  %2248 = vmatprep.subr.mxu0 0.0
  %2249 = vmatpush1.msra.mxu0 %v2038
  %2250 = vmatprep.subr.mxu0 0.0
  %2251 = vmatpush1.msra.mxu0 %v2033
  %2252 = vmatprep.subr.mxu0 0.0
  %2253 = vmatpush1.msra.mxu0 %v2028
  %2254 = vmatprep.subr.mxu0 0.0
  %2255 = vmatpush1.msra.mxu0 %v2023
  %2256 = vmatprep.subr.mxu0 0.0
  %2257 = vmatpush1.msra.mxu0 %v2018
  %2258 = vmatprep.subr.mxu0 0.0
  %2259 = vmatpush1.msra.mxu0 %v2013
  %2260 = vmatprep.subr.mxu0 0.0
  %2261 = vmatpush2.msra.mxu0 %v2173
  %2262 = vmatprep.subr.mxu0 0.0
  %2263 = vmatpush2.msra.mxu0 %v2168
  %2264 = vmatprep.subr.mxu0 0.0
  %2265 = vmatpush2.msra.mxu0 %v2163
  %2266 = vmatprep.subr.mxu0 0.0
  %2267 = vmatpush2.msra.mxu0 %v2158
  %2268 = vmatprep.subr.mxu0 0.0
  %2269 = vmatpush2.msra.mxu0 %v2153
  %2270 = vmatprep.subr.mxu0 0.0
  %2271 = vmatpush2.msra.mxu0 %v2148
  %2272 = vmatprep.subr.mxu0 0.0
  %2273 = vmatpush2.msra.mxu0 %v2143
  %2274 = vmatprep.subr.mxu0 0.0
  %2275 = vmatpush2.msra.mxu0 %v2138
  %2276 = vmatprep.subr.mxu0 0.0
  %2277 = vmatpush2.msra.mxu0 %v958
  %2278 = vmatprep.subr.mxu0 0.0
  %2279 = vmatpush2.msra.mxu0 %v957
  %2280 = vmatprep.subr.mxu0 0.0
  %2281 = vmatpush2.msra.mxu0 %v956
  %2282 = vmatprep.subr.mxu0 0.0
  %2283 = vmatpush2.msra.mxu0 %v955
  %2284 = vmatprep.subr.mxu0 0.0
  %2285 = vmatpush2.msra.mxu0 %v1895
  %2286 = vmatprep.subr.mxu0 0.0
  %2287 = vmatpush2.msra.mxu0 %v1890
  %2288 = vmatprep.subr.mxu0 0.0
  %2289 = vmatpush2.msra.mxu0 %v1885
  %2290 = vmatprep.subr.mxu0 0.0
  %2291 = vmatpush2.msra.mxu0 %v1880
  %2292 = vmatprep.mubr.f32.mxu0 %v1899
  %2293 = vmatmul.mubr.f32.gmra.mxu0 %v1898
  %v2294 = vpop.f32.mrf.mxu0
  %v2295 = vadd.f32 %v2199, %v2294
  %v2296 = vpop.f32.mrf.mxu0
  %2297 = vmatprep.mubr.f32.mxu0 %v1902
  %2298 = vmatmul.mubr.f32.gmra.mxu0 %v1901
  %v2299 = vpop.f32.mrf.mxu0
  %v2300 = vadd.f32 %v2204, %v2299
  %v2301 = vpop.f32.mrf.mxu0
  %2302 = vmatprep.mubr.f32.mxu0 %v1905
  %2303 = vmatmul.mubr.f32.gmra.mxu0 %v1904
  %v2304 = vpop.f32.mrf.mxu0
  %v2305 = vadd.f32 %v2209, %v2304
  %v2306 = vpop.f32.mrf.mxu0
  %2307 = vmatprep.mubr.f32.mxu0 %v1908
  %2308 = vmatmul.mubr.f32.gmra.mxu0 %v1907
  %v2309 = vpop.f32.mrf.mxu0
  %v2310 = vadd.f32 %v2214, %v2309
  %v2311 = vpop.f32.mrf.mxu0
  %2312 = vdwg.mxu0
  %2313 = vmatprep.subr.mxu0 0.0
  %2314 = vmatpush1.msra.mxu0 0.0
  %2315 = vmatprep.subr.mxu0 0.0
  %2316 = vmatpush1.msra.mxu0 0.0
  %2317 = vmatprep.subr.mxu0 0.0
  %2318 = vmatpush1.msra.mxu0 0.0
  %2319 = vmatprep.subr.mxu0 0.0
  %2320 = vmatpush1.msra.mxu0 0.0
  %2321 = vmatprep.subr.mxu0 0.0
  %2322 = vmatpush1.msra.mxu0 0.0
  %2323 = vmatprep.subr.mxu0 0.0
  %2324 = vmatpush1.msra.mxu0 0.0
  %2325 = vmatprep.subr.mxu0 0.0
  %2326 = vmatpush1.msra.mxu0 0.0
  %2327 = vmatprep.subr.mxu0 0.0
  %2328 = vmatpush1.msra.mxu0 0.0
  %2329 = vmatprep.subr.mxu0 0.0
  %2330 = vmatpush1.msra.mxu0 0.0
  %2331 = vmatprep.subr.mxu0 0.0
  %2332 = vmatpush1.msra.mxu0 0.0
  %2333 = vmatprep.subr.mxu0 0.0
  %2334 = vmatpush1.msra.mxu0 0.0
  %2335 = vmatprep.subr.mxu0 0.0
  %2336 = vmatpush1.msra.mxu0 0.0
  %2337 = vmatprep.subr.mxu0 0.0
  %2338 = vmatpush1.msra.mxu0 %v2193
  %2339 = vmatprep.subr.mxu0 0.0
  %2340 = vmatpush1.msra.mxu0 %v2188
  %2341 = vmatprep.subr.mxu0 0.0
  %2342 = vmatpush1.msra.mxu0 %v2183
  %2343 = vmatprep.subr.mxu0 0.0
  %2344 = vmatpush1.msra.mxu0 %v2178
  %2345 = vmatprep.subr.mxu0 0.0
  %2346 = vmatpush2.msra.mxu0 0.0
  %2347 = vmatprep.subr.mxu0 0.0
  %2348 = vmatpush2.msra.mxu0 0.0
  %2349 = vmatprep.subr.mxu0 0.0
  %2350 = vmatpush2.msra.mxu0 0.0
  %2351 = vmatprep.subr.mxu0 0.0
  %2352 = vmatpush2.msra.mxu0 0.0
  %2353 = vmatprep.subr.mxu0 0.0
  %2354 = vmatpush2.msra.mxu0 0.0
  %2355 = vmatprep.subr.mxu0 0.0
  %2356 = vmatpush2.msra.mxu0 0.0
  %2357 = vmatprep.subr.mxu0 0.0
  %2358 = vmatpush2.msra.mxu0 0.0
  %2359 = vmatprep.subr.mxu0 0.0
  %2360 = vmatpush2.msra.mxu0 0.0
  %2361 = vmatprep.subr.mxu0 0.0
  %2362 = vmatpush2.msra.mxu0 0.0
  %2363 = vmatprep.subr.mxu0 0.0
  %2364 = vmatpush2.msra.mxu0 0.0
  %2365 = vmatprep.subr.mxu0 0.0
  %2366 = vmatpush2.msra.mxu0 0.0
  %2367 = vmatprep.subr.mxu0 0.0
  %2368 = vmatpush2.msra.mxu0 0.0
  %2369 = vmatprep.subr.mxu0 0.0
  %2370 = vmatpush2.msra.mxu0 0.0
  %2371 = vmatprep.subr.mxu0 0.0
  %2372 = vmatpush2.msra.mxu0 0.0
  %2373 = vmatprep.subr.mxu0 0.0
  %2374 = vmatpush2.msra.mxu0 0.0
  %2375 = vmatprep.subr.mxu0 0.0
  %2376 = vmatpush2.msra.mxu0 0.0
  %2377 = vmatprep.mubr.f32.mxu0 0.0
  %2378 = vmatmul.mubr.f32.gmra.mxu0 %v2217
  %v2379 = vpop.f32.mrf.mxu0
  %v2380 = vadd.f32 %v2295, %v2379
  %v2381 = vpop.f32.mrf.mxu0
  %2382 = vmatprep.mubr.f32.mxu0 0.0
  %2383 = vmatmul.mubr.f32.gmra.mxu0 %v2220
  %v2384 = vpop.f32.mrf.mxu0
  %v2385 = vadd.f32 %v2300, %v2384
  %v2386 = vpop.f32.mrf.mxu0
  %2387 = vmatprep.mubr.f32.mxu0 0.0
  %2388 = vmatmul.mubr.f32.gmra.mxu0 %v2223
  %v2389 = vpop.f32.mrf.mxu0
  %v2390 = vadd.f32 %v2305, %v2389
  %v2391 = vpop.f32.mrf.mxu0
  %2392 = vmatprep.mubr.f32.mxu0 0.0
  %2393 = vmatmul.mubr.f32.gmra.mxu0 %v2226
  %v2394 = vpop.f32.mrf.mxu0
  %v2395 = vadd.f32 %v2310, %v2394
  %v2396 = vpop.f32.mrf.mxu0
  %2397 = vdwg.mxu0
  %v2398 = vmax.f32 %v2380, 0.0
  %v2399 = vmax.f32 %v2385, 0.0
  %v2400 = vmax.f32 %v2390, 0.0
  %v2401 = vmax.f32 %v2395, 0.0
  %v2402 = vsel %vm571, %v2398, 0.0
  %2403 = vadd.xlane.f32.xlu0 %v2402
  %v2404 = vpop.xlane.xlu0 %2403
  %v2405 = vsel %vm571, %v2399, 0.0
  %2406 = vadd.xlane.f32.xlu0 %v2405
  %v2407 = vpop.xlane.xlu0 %2406
  %v2408 = vsel %vm571, %v2400, 0.0
  %2409 = vadd.xlane.f32.xlu0 %v2408
  %v2410 = vpop.xlane.xlu0 %2409
  %v2411 = vsel %vm571, %v2401, 0.0
  %2412 = vadd.xlane.f32.xlu0 %v2411
  %v2413 = vpop.xlane.xlu0 %2412
  %v2414 = vmul.f32 %v2404, %v862
  %v2415 = vmul.f32 %v2407, %v862
  %v2416 = vmul.f32 %v2410, %v862
  %v2417 = vmul.f32 %v2413, %v862
  %v2418 = vsub.f32 %v2398, %v2414
  %v2419 = vsub.f32 %v2399, %v2415
  %v2420 = vsub.f32 %v2400, %v2416
  %v2421 = vsub.f32 %v2401, %v2417
  %v2422 = vmul.f32 %v2418, %v2418
  %v2423 = vmul.f32 %v2419, %v2419
  %v2424 = vmul.f32 %v2420, %v2420
  %v2425 = vmul.f32 %v2421, %v2421
  %v2426 = vsel %vm571, %v2422, 0.0
  %2427 = vadd.xlane.f32.xlu0 %v2426
  %v2428 = vpop.xlane.xlu0 %2427
  %v2429 = vsel %vm571, %v2423, 0.0
  %2430 = vadd.xlane.f32.xlu0 %v2429
  %v2431 = vpop.xlane.xlu0 %2430
  %v2432 = vsel %vm571, %v2424, 0.0
  %2433 = vadd.xlane.f32.xlu0 %v2432
  %v2434 = vpop.xlane.xlu0 %2433
  %v2435 = vsel %vm571, %v2425, 0.0
  %2436 = vadd.xlane.f32.xlu0 %v2435
  %v2437 = vpop.xlane.xlu0 %2436
  %v2438 = vmul.f32 %v2428, %v862
  %v2439 = vmul.f32 %v2431, %v862
  %v2440 = vmul.f32 %v2434, %v862
  %v2441 = vmul.f32 %v2437, %v862
  %v2442 = vadd.f32 %v2438, 1e-05
  %v2443 = vadd.f32 %v2439, 1e-05
  %v2444 = vadd.f32 %v2440, 1e-05
  %v2445 = vadd.f32 %v2441, 1e-05
  %v2446 = vrsqrt.pop %v2442
  %v2447 = vrsqrt.pop %v2443
  %v2448 = vrsqrt.pop %v2444
  %v2449 = vrsqrt.pop %v2445
  %v2450 = vmul.f32 %v1914, %v2446
  %v2451 = vmul.f32 %v1915, %v2447
  %v2452 = vmul.f32 %v1916, %v2448
  %v2453 = vmul.f32 %v1917, %v2449
  %v2454 = vmul.f32 %v2414, %v2450
  %v2455 = vmul.f32 %v2415, %v2451
  %v2456 = vmul.f32 %v2416, %v2452
  %v2457 = vmul.f32 %v2417, %v2453
  %v2458 = vsub.f32 %v1918, %v2454
  %v2459 = vsub.f32 %v1919, %v2455
  %v2460 = vsub.f32 %v1920, %v2456
  %v2461 = vsub.f32 %v1921, %v2457
  %2463 = vset.pattern.permute.xlu0 0
  %2464 = vperm.xlu0 %2463, %v2450
  %v2465 = vpop.permute.xlu0 %2464
  %2468 = vset.pattern.permute.xlu0 0
  %2469 = vperm.xlu0 %2468, %v2451
  %v2470 = vpop.permute.xlu0 %2469
  %2473 = vset.pattern.permute.xlu0 0
  %2474 = vperm.xlu0 %2473, %v2452
  %v2475 = vpop.permute.xlu0 %2474
  %2478 = vset.pattern.permute.xlu0 0
  %2479 = vperm.xlu0 %2478, %v2453
  %v2480 = vpop.permute.xlu0 %2479
  %v2482 = vmul.f32 %v2398, %v2465
  %v2483 = vmul.f32 %v2399, %v2470
  %v2484 = vmul.f32 %v2400, %v2475
  %v2485 = vmul.f32 %v2401, %v2480
  %2487 = vset.pattern.permute.xlu0 0
  %2488 = vperm.xlu0 %2487, %v2458
  %v2489 = vpop.permute.xlu0 %2488
  %2492 = vset.pattern.permute.xlu0 0
  %2493 = vperm.xlu0 %2492, %v2459
  %v2494 = vpop.permute.xlu0 %2493
  %2497 = vset.pattern.permute.xlu0 0
  %2498 = vperm.xlu0 %2497, %v2460
  %v2499 = vpop.permute.xlu0 %2498
  %2502 = vset.pattern.permute.xlu0 0
  %2503 = vperm.xlu0 %2502, %v2461
  %v2504 = vpop.permute.xlu0 %2503
  %v2506 = vadd.f32 %v2482, %v2489
  %v2507 = vadd.f32 %v2483, %v2494
  %v2508 = vadd.f32 %v2484, %v2499
  %v2509 = vadd.f32 %v2485, %v2504
  %v2510 = vmul.u32 %v61, 2
  %vm2511 = vcmp.eq.s32.totalorder %v65, %v2510
  %v2512 = vadd.s32 %v2510, 1
  %vm2513 = vcmp.eq.s32.totalorder %v65, %v2512
  %vm2514 = vmor %vm2511, %vm2513
  %v2515 = vsel %vm2514, 1.0, 0.0
  %v2517 = vsel %vm571, %v2506, 0
  %v2520 = vsel %vm571, %v2507, 0
  %v2523 = vsel %vm571, %v2508, 0
  %v2526 = vsel %vm571, %v2509, 0
  %2528 = vmatprep.subr.mxu0 0.0
  %2529 = vmatpush1.msra.mxu0 0.0
  %2530 = vmatprep.subr.mxu0 0.0
  %2531 = vmatpush1.msra.mxu0 0.0
  %2532 = vmatprep.subr.mxu0 0.0
  %2533 = vmatpush1.msra.mxu0 0.0
  %2534 = vmatprep.subr.mxu0 0.0
  %2535 = vmatpush1.msra.mxu0 0.0
  %2536 = vmatprep.subr.mxu0 0.0
  %2537 = vmatpush1.msra.mxu0 0.0
  %2538 = vmatprep.subr.mxu0 0.0
  %2539 = vmatpush1.msra.mxu0 0.0
  %2540 = vmatprep.subr.mxu0 0.0
  %2541 = vmatpush1.msra.mxu0 0.0
  %2542 = vmatprep.subr.mxu0 0.0
  %2543 = vmatpush1.msra.mxu0 0.0
  %2544 = vmatprep.subr.mxu0 0.0
  %2545 = vmatpush1.msra.mxu0 0.0
  %2546 = vmatprep.subr.mxu0 0.0
  %2547 = vmatpush1.msra.mxu0 0.0
  %2548 = vmatprep.subr.mxu0 0.0
  %2549 = vmatpush1.msra.mxu0 0.0
  %2550 = vmatprep.subr.mxu0 0.0
  %2551 = vmatpush1.msra.mxu0 0.0
  %2552 = vmatprep.subr.mxu0 0.0
  %2553 = vmatpush1.msra.mxu0 0.0
  %2554 = vmatprep.subr.mxu0 0.0
  %2555 = vmatpush1.msra.mxu0 0.0
  %2556 = vmatprep.subr.mxu0 0.0
  %2557 = vmatpush1.msra.mxu0 %v2515
  %2558 = vmatprep.subr.mxu0 0.0
  %2559 = vmatpush1.msra.mxu0 %v1768
  %2560 = vmatprep.subr.mxu0 0.0
  %2561 = vmatpush2.msra.mxu0 0.0
  %2562 = vmatprep.subr.mxu0 0.0
  %2563 = vmatpush2.msra.mxu0 0.0
  %2564 = vmatprep.subr.mxu0 0.0
  %2565 = vmatpush2.msra.mxu0 0.0
  %2566 = vmatprep.subr.mxu0 0.0
  %2567 = vmatpush2.msra.mxu0 0.0
  %2568 = vmatprep.subr.mxu0 0.0
  %2569 = vmatpush2.msra.mxu0 0.0
  %2570 = vmatprep.subr.mxu0 0.0
  %2571 = vmatpush2.msra.mxu0 0.0
  %2572 = vmatprep.subr.mxu0 0.0
  %2573 = vmatpush2.msra.mxu0 0.0
  %2574 = vmatprep.subr.mxu0 0.0
  %2575 = vmatpush2.msra.mxu0 0.0
  %2576 = vmatprep.subr.mxu0 0.0
  %2577 = vmatpush2.msra.mxu0 0.0
  %2578 = vmatprep.subr.mxu0 0.0
  %2579 = vmatpush2.msra.mxu0 0.0
  %2580 = vmatprep.subr.mxu0 0.0
  %2581 = vmatpush2.msra.mxu0 0.0
  %2582 = vmatprep.subr.mxu0 0.0
  %2583 = vmatpush2.msra.mxu0 0.0
  %2584 = vmatprep.subr.mxu0 0.0
  %2585 = vmatpush2.msra.mxu0 0.0
  %2586 = vmatprep.subr.mxu0 0.0
  %2587 = vmatpush2.msra.mxu0 0.0
  %2588 = vmatprep.subr.mxu0 0.0
  %2589 = vmatpush2.msra.mxu0 0.0
  %2590 = vmatprep.subr.mxu0 0.0
  %2591 = vmatpush2.msra.mxu0 0.0
  %2592 = vmatprep.mubr.f32.mxu0 0.0
  %2593 = vmatmul.mubr.f32.gmra.mxu0 %v2517
  %v2594 = vpop.f32.mrf.mxu0
  %v2595 = vadd.f32 0.0, %v2594
  %v2596 = vpop.f32.mrf.mxu0
  %2597 = vmatprep.mubr.f32.mxu0 0.0
  %2598 = vmatmul.mubr.f32.gmra.mxu0 %v2520
  %v2599 = vpop.f32.mrf.mxu0
  %v2600 = vadd.f32 0.0, %v2599
  %v2601 = vpop.f32.mrf.mxu0
  %2602 = vmatprep.mubr.f32.mxu0 0.0
  %2603 = vmatmul.mubr.f32.gmra.mxu0 %v2523
  %v2604 = vpop.f32.mrf.mxu0
  %v2605 = vadd.f32 0.0, %v2604
  %v2606 = vpop.f32.mrf.mxu0
  %2607 = vmatprep.mubr.f32.mxu0 0.0
  %2608 = vmatmul.mubr.f32.gmra.mxu0 %v2526
  %v2609 = vpop.f32.mrf.mxu0
  %v2610 = vadd.f32 0.0, %v2609
  %v2611 = vpop.f32.mrf.mxu0
  %2612 = vdwg.mxu0
  %v2613 = vld [vmem:[%s9] sm:$0xff]
  %v2614 = vld [vmem:[%s9 + $0x8] sm:$0xff]
  %v2615 = vld [vmem:[%s9 + $0x10] sm:$0xff]
  %v2616 = vld [vmem:[%s9 + $0x18] sm:$0xff]
  %v2617 = vld [vmem:[%s10] sm:$0xff]
  %v2618 = vld [vmem:[%s10 + $0x8] sm:$0xff]
  %v2619 = vld [vmem:[%s10 + $0x10] sm:$0xff]
  %v2620 = vld [vmem:[%s10 + $0x18] sm:$0xff]
  %v2621 = vld [vmem:[%s10 + $0x20] sm:$0xff]
  %v2622 = vld [vmem:[%s10 + $0x28] sm:$0xff]
  %v2624 = vsel %vm101, %v2595, 0
  %v2627 = vsel %vm101, %v2600, 0
  %v2630 = vsel %vm101, %v2605, 0
  %v2633 = vsel %vm101, %v2610, 0
  %2635 = vmatprep.subr.mxu0 0.0
  %2636 = vmatpush1.msra.mxu0 0.0
  %2637 = vmatprep.subr.mxu0 0.0
  %2638 = vmatpush1.msra.mxu0 0.0
  %2639 = vmatprep.subr.mxu0 0.0
  %2640 = vmatpush1.msra.mxu0 0.0
  %2641 = vmatprep.subr.mxu0 0.0
  %2642 = vmatpush1.msra.mxu0 0.0
  %2643 = vmatprep.subr.mxu0 0.0
  %2644 = vmatpush1.msra.mxu0 0.0
  %2645 = vmatprep.subr.mxu0 0.0
  %2646 = vmatpush1.msra.mxu0 0.0
  %2647 = vmatprep.subr.mxu0 0.0
  %2648 = vmatpush1.msra.mxu0 0.0
  %2649 = vmatprep.subr.mxu0 0.0
  %2650 = vmatpush1.msra.mxu0 0.0
  %2651 = vmatprep.subr.mxu0 0.0
  %2652 = vmatpush1.msra.mxu0 0.0
  %2653 = vmatprep.subr.mxu0 0.0
  %2654 = vmatpush1.msra.mxu0 0.0
  %2655 = vmatprep.subr.mxu0 0.0
  %2656 = vmatpush1.msra.mxu0 0.0
  %2657 = vmatprep.subr.mxu0 0.0
  %2658 = vmatpush1.msra.mxu0 0.0
  %2659 = vmatprep.subr.mxu0 0.0
  %2660 = vmatpush1.msra.mxu0 %v84
  %2661 = vmatprep.subr.mxu0 0.0
  %2662 = vmatpush1.msra.mxu0 %v83
  %2663 = vmatprep.subr.mxu0 0.0
  %2664 = vmatpush1.msra.mxu0 %v82
  %2665 = vmatprep.subr.mxu0 0.0
  %2666 = vmatpush1.msra.mxu0 %v81
  %2667 = vmatprep.subr.mxu0 0.0
  %2668 = vmatpush2.msra.mxu0 0.0
  %2669 = vmatprep.subr.mxu0 0.0
  %2670 = vmatpush2.msra.mxu0 0.0
  %2671 = vmatprep.subr.mxu0 0.0
  %2672 = vmatpush2.msra.mxu0 0.0
  %2673 = vmatprep.subr.mxu0 0.0
  %2674 = vmatpush2.msra.mxu0 0.0
  %2675 = vmatprep.subr.mxu0 0.0
  %2676 = vmatpush2.msra.mxu0 0.0
  %2677 = vmatprep.subr.mxu0 0.0
  %2678 = vmatpush2.msra.mxu0 0.0
  %2679 = vmatprep.subr.mxu0 0.0
  %2680 = vmatpush2.msra.mxu0 0.0
  %2681 = vmatprep.subr.mxu0 0.0
  %2682 = vmatpush2.msra.mxu0 0.0
  %2683 = vmatprep.subr.mxu0 0.0
  %2684 = vmatpush2.msra.mxu0 0.0
  %2685 = vmatprep.subr.mxu0 0.0
  %2686 = vmatpush2.msra.mxu0 0.0
  %2687 = vmatprep.subr.mxu0 0.0
  %2688 = vmatpush2.msra.mxu0 0.0
  %2689 = vmatprep.subr.mxu0 0.0
  %2690 = vmatpush2.msra.mxu0 0.0
  %2691 = vmatprep.subr.mxu0 0.0
  %2692 = vmatpush2.msra.mxu0 0.0
  %2693 = vmatprep.subr.mxu0 0.0
  %2694 = vmatpush2.msra.mxu0 0.0
  %2695 = vmatprep.subr.mxu0 0.0
  %2696 = vmatpush2.msra.mxu0 0.0
  %2697 = vmatprep.subr.mxu0 0.0
  %2698 = vmatpush2.msra.mxu0 0.0
  %2699 = vmatprep.mubr.f32.mxu0 0.0
  %2700 = vmatmul.mubr.f32.gmra.mxu0 %v2624
  %v2701 = vpop.f32.mrf.mxu0
  %v2702 = vadd.f32 0.0, %v2701
  %v2703 = vpop.f32.mrf.mxu0
  %2704 = vmatprep.mubr.f32.mxu0 0.0
  %2705 = vmatmul.mubr.f32.gmra.mxu0 %v2627
  %v2706 = vpop.f32.mrf.mxu0
  %v2707 = vadd.f32 0.0, %v2706
  %v2708 = vpop.f32.mrf.mxu0
  %2709 = vmatprep.mubr.f32.mxu0 0.0
  %2710 = vmatmul.mubr.f32.gmra.mxu0 %v2630
  %v2711 = vpop.f32.mrf.mxu0
  %v2712 = vadd.f32 0.0, %v2711
  %v2713 = vpop.f32.mrf.mxu0
  %2714 = vmatprep.mubr.f32.mxu0 0.0
  %2715 = vmatmul.mubr.f32.gmra.mxu0 %v2633
  %v2716 = vpop.f32.mrf.mxu0
  %v2717 = vadd.f32 0.0, %v2716
  %v2718 = vpop.f32.mrf.mxu0
  %2719 = vmatprep.mubr.f32.mxu0 0.0
  %2720 = vmatmul.mubr.f32.gmra.mxu0 %v386
  %v2721 = vpop.f32.mrf.mxu0
  %v2722 = vadd.f32 0.0, %v2721
  %v2723 = vpop.f32.mrf.mxu0
  %2724 = vmatprep.mubr.f32.mxu0 0.0
  %2725 = vmatmul.mubr.f32.gmra.mxu0 %v389
  %v2726 = vpop.f32.mrf.mxu0
  %v2727 = vadd.f32 0.0, %v2726
  %v2728 = vpop.f32.mrf.mxu0
  %2729 = vdwg.mxu0
  %2730 = vmatprep.subr.mxu0 0.0
  %2731 = vmatpush1.msra.mxu0 0.0
  %2732 = vmatprep.subr.mxu0 0.0
  %2733 = vmatpush1.msra.mxu0 0.0
  %2734 = vmatprep.subr.mxu0 0.0
  %2735 = vmatpush1.msra.mxu0 0.0
  %2736 = vmatprep.subr.mxu0 0.0
  %2737 = vmatpush1.msra.mxu0 0.0
  %2738 = vmatprep.subr.mxu0 0.0
  %2739 = vmatpush1.msra.mxu0 0.0
  %2740 = vmatprep.subr.mxu0 0.0
  %2741 = vmatpush1.msra.mxu0 0.0
  %2742 = vmatprep.subr.mxu0 0.0
  %2743 = vmatpush1.msra.mxu0 0.0
  %2744 = vmatprep.subr.mxu0 0.0
  %2745 = vmatpush1.msra.mxu0 0.0
  %2746 = vmatprep.subr.mxu0 0.0
  %2747 = vmatpush1.msra.mxu0 0.0
  %2748 = vmatprep.subr.mxu0 0.0
  %2749 = vmatpush1.msra.mxu0 0.0
  %2750 = vmatprep.subr.mxu0 0.0
  %2751 = vmatpush1.msra.mxu0 0.0
  %2752 = vmatprep.subr.mxu0 0.0
  %2753 = vmatpush1.msra.mxu0 0.0
  %2754 = vmatprep.subr.mxu0 0.0
  %2755 = vmatpush1.msra.mxu0 %v100
  %2756 = vmatprep.subr.mxu0 0.0
  %2757 = vmatpush1.msra.mxu0 %v99
  %2758 = vmatprep.subr.mxu0 0.0
  %2759 = vmatpush1.msra.mxu0 %v98
  %2760 = vmatprep.subr.mxu0 0.0
  %2761 = vmatpush1.msra.mxu0 %v97
  %2762 = vmatprep.subr.mxu0 0.0
  %2763 = vmatpush2.msra.mxu0 0.0
  %2764 = vmatprep.subr.mxu0 0.0
  %2765 = vmatpush2.msra.mxu0 0.0
  %2766 = vmatprep.subr.mxu0 0.0
  %2767 = vmatpush2.msra.mxu0 0.0
  %2768 = vmatprep.subr.mxu0 0.0
  %2769 = vmatpush2.msra.mxu0 0.0
  %2770 = vmatprep.subr.mxu0 0.0
  %2771 = vmatpush2.msra.mxu0 0.0
  %2772 = vmatprep.subr.mxu0 0.0
  %2773 = vmatpush2.msra.mxu0 0.0
  %2774 = vmatprep.subr.mxu0 0.0
  %2775 = vmatpush2.msra.mxu0 0.0
  %2776 = vmatprep.subr.mxu0 0.0
  %2777 = vmatpush2.msra.mxu0 0.0
  %2778 = vmatprep.subr.mxu0 0.0
  %2779 = vmatpush2.msra.mxu0 0.0
  %2780 = vmatprep.subr.mxu0 0.0
  %2781 = vmatpush2.msra.mxu0 0.0
  %2782 = vmatprep.subr.mxu0 0.0
  %2783 = vmatpush2.msra.mxu0 0.0
  %2784 = vmatprep.subr.mxu0 0.0
  %2785 = vmatpush2.msra.mxu0 0.0
  %2786 = vmatprep.subr.mxu0 0.0
  %2787 = vmatpush2.msra.mxu0 0.0
  %2788 = vmatprep.subr.mxu0 0.0
  %2789 = vmatpush2.msra.mxu0 0.0
  %2790 = vmatprep.subr.mxu0 0.0
  %2791 = vmatpush2.msra.mxu0 0.0
  %2792 = vmatprep.subr.mxu0 0.0
  %2793 = vmatpush2.msra.mxu0 0.0
  %2794 = vmatprep.mubr.f32.mxu0 0.0
  %2795 = vmatmul.mubr.f32.gmra.mxu0 %v2624
  %v2796 = vpop.f32.mrf.mxu0
  %v2797 = vadd.f32 0.0, %v2796
  %v2798 = vpop.f32.mrf.mxu0
  %2799 = vmatprep.mubr.f32.mxu0 0.0
  %2800 = vmatmul.mubr.f32.gmra.mxu0 %v2627
  %v2801 = vpop.f32.mrf.mxu0
  %v2802 = vadd.f32 0.0, %v2801
  %v2803 = vpop.f32.mrf.mxu0
  %2804 = vmatprep.mubr.f32.mxu0 0.0
  %2805 = vmatmul.mubr.f32.gmra.mxu0 %v2630
  %v2806 = vpop.f32.mrf.mxu0
  %v2807 = vadd.f32 0.0, %v2806
  %v2808 = vpop.f32.mrf.mxu0
  %2809 = vmatprep.mubr.f32.mxu0 0.0
  %2810 = vmatmul.mubr.f32.gmra.mxu0 %v2633
  %v2811 = vpop.f32.mrf.mxu0
  %v2812 = vadd.f32 0.0, %v2811
  %v2813 = vpop.f32.mrf.mxu0
  %2814 = vmatprep.mubr.f32.mxu0 0.0
  %2815 = vmatmul.mubr.f32.gmra.mxu0 %v386
  %v2816 = vpop.f32.mrf.mxu0
  %v2817 = vadd.f32 0.0, %v2816
  %v2818 = vpop.f32.mrf.mxu0
  %2819 = vmatprep.mubr.f32.mxu0 0.0
  %2820 = vmatmul.mubr.f32.gmra.mxu0 %v389
  %v2821 = vpop.f32.mrf.mxu0
  %v2822 = vadd.f32 0.0, %v2821
  %v2823 = vpop.f32.mrf.mxu0
  %2824 = vdwg.mxu0
  %2826 = vset.pattern.permute.xlu0 0
  %2827 = vperm.xlu0 %2826, %v2617
  %v2828 = vpop.permute.xlu0 %2827
  %2831 = vset.pattern.permute.xlu0 0
  %2832 = vperm.xlu0 %2831, %v2618
  %v2833 = vpop.permute.xlu0 %2832
  %v2836 = vsel %vm571, %v2614, 0
  %v2839 = vsel %vm571, %v2616, 0
  %2841 = vmatprep.subr.mxu0 0.0
  %2842 = vmatpush1.msra.mxu0 %v2812
  %2843 = vmatprep.subr.mxu0 0.0
  %2844 = vmatpush1.msra.mxu0 %v2807
  %2845 = vmatprep.subr.mxu0 0.0
  %2846 = vmatpush1.msra.mxu0 %v2802
  %2847 = vmatprep.subr.mxu0 0.0
  %2848 = vmatpush1.msra.mxu0 %v2797
  %2849 = vmatprep.subr.mxu0 0.0
  %2850 = vmatpush1.msra.mxu0 %v366
  %2851 = vmatprep.subr.mxu0 0.0
  %2852 = vmatpush1.msra.mxu0 %v365
  %2853 = vmatprep.subr.mxu0 0.0
  %2854 = vmatpush1.msra.mxu0 %v2610
  %2855 = vmatprep.subr.mxu0 0.0
  %2856 = vmatpush1.msra.mxu0 %v2605
  %2857 = vmatprep.subr.mxu0 0.0
  %2858 = vmatpush1.msra.mxu0 %v2600
  %2859 = vmatprep.subr.mxu0 0.0
  %2860 = vmatpush1.msra.mxu0 %v2595
  %2861 = vmatprep.subr.mxu0 0.0
  %2862 = vmatpush1.msra.mxu0 %v2727
  %2863 = vmatprep.subr.mxu0 0.0
  %2864 = vmatpush1.msra.mxu0 %v2722
  %2865 = vmatprep.subr.mxu0 0.0
  %2866 = vmatpush1.msra.mxu0 %v2717
  %2867 = vmatprep.subr.mxu0 0.0
  %2868 = vmatpush1.msra.mxu0 %v2712
  %2869 = vmatprep.subr.mxu0 0.0
  %2870 = vmatpush1.msra.mxu0 %v2707
  %2871 = vmatprep.subr.mxu0 0.0
  %2872 = vmatpush1.msra.mxu0 %v2702
  %2873 = vmatprep.subr.mxu0 0.0
  %2874 = vmatpush2.msra.mxu0 0.0
  %2875 = vmatprep.subr.mxu0 0.0
  %2876 = vmatpush2.msra.mxu0 0.0
  %2877 = vmatprep.subr.mxu0 0.0
  %2878 = vmatpush2.msra.mxu0 0.0
  %2879 = vmatprep.subr.mxu0 0.0
  %2880 = vmatpush2.msra.mxu0 0.0
  %2881 = vmatprep.subr.mxu0 0.0
  %2882 = vmatpush2.msra.mxu0 0.0
  %2883 = vmatprep.subr.mxu0 0.0
  %2884 = vmatpush2.msra.mxu0 0.0
  %2885 = vmatprep.subr.mxu0 0.0
  %2886 = vmatpush2.msra.mxu0 0.0
  %2887 = vmatprep.subr.mxu0 0.0
  %2888 = vmatpush2.msra.mxu0 0.0
  %2889 = vmatprep.subr.mxu0 0.0
  %2890 = vmatpush2.msra.mxu0 0.0
  %2891 = vmatprep.subr.mxu0 0.0
  %2892 = vmatpush2.msra.mxu0 0.0
  %2893 = vmatprep.subr.mxu0 0.0
  %2894 = vmatpush2.msra.mxu0 0.0
  %2895 = vmatprep.subr.mxu0 0.0
  %2896 = vmatpush2.msra.mxu0 0.0
  %2897 = vmatprep.subr.mxu0 0.0
  %2898 = vmatpush2.msra.mxu0 0.0
  %2899 = vmatprep.subr.mxu0 0.0
  %2900 = vmatpush2.msra.mxu0 0.0
  %2901 = vmatprep.subr.mxu0 0.0
  %2902 = vmatpush2.msra.mxu0 %v2822
  %2903 = vmatprep.subr.mxu0 0.0
  %2904 = vmatpush2.msra.mxu0 %v2817
  %2905 = vmatprep.mubr.f32.mxu0 %v2836
  %2906 = vmatmul.mubr.f32.gmra.mxu0 %v2613
  %v2907 = vpop.f32.mrf.mxu0
  %v2908 = vadd.f32 %v2828, %v2907
  %v2909 = vpop.f32.mrf.mxu0
  %2910 = vmatprep.mubr.f32.mxu0 %v2839
  %2911 = vmatmul.mubr.f32.gmra.mxu0 %v2615
  %v2912 = vpop.f32.mrf.mxu0
  %v2913 = vadd.f32 %v2833, %v2912
  %v2914 = vpop.f32.mrf.mxu0
  %2915 = vdwg.mxu0
  %v2916 = vmax.f32 %v2908, 0.0
  %v2917 = vmax.f32 %v2913, 0.0
  %v2918 = vsel %vm101, %v2916, 0.0
  %2919 = vadd.xlane.f32.xlu0 %v2918
  %v2920 = vpop.xlane.xlu0 %2919
  %v2921 = vsel %vm101, %v2917, 0.0
  %2922 = vadd.xlane.f32.xlu0 %v2921
  %v2923 = vpop.xlane.xlu0 %2922
  %v2924 = vmul.f32 %v2920, %v318
  %v2925 = vmul.f32 %v2923, %v318
  %v2926 = vsub.f32 %v2916, %v2924
  %v2927 = vsub.f32 %v2917, %v2925
  %v2928 = vmul.f32 %v2926, %v2926
  %v2929 = vmul.f32 %v2927, %v2927
  %v2930 = vsel %vm101, %v2928, 0.0
  %2931 = vadd.xlane.f32.xlu0 %v2930
  %v2932 = vpop.xlane.xlu0 %2931
  %v2933 = vsel %vm101, %v2929, 0.0
  %2934 = vadd.xlane.f32.xlu0 %v2933
  %v2935 = vpop.xlane.xlu0 %2934
  %v2936 = vmul.f32 %v2932, %v318
  %v2937 = vmul.f32 %v2935, %v318
  %v2938 = vadd.f32 %v2936, 1e-05
  %v2939 = vadd.f32 %v2937, 1e-05
  %v2940 = vrsqrt.pop %v2938
  %v2941 = vrsqrt.pop %v2939
  %v2942 = vmul.f32 %v2619, %v2940
  %v2943 = vmul.f32 %v2620, %v2941
  %v2944 = vmul.f32 %v2924, %v2942
  %v2945 = vmul.f32 %v2925, %v2943
  %v2946 = vsub.f32 %v2621, %v2944
  %v2947 = vsub.f32 %v2622, %v2945
  %2949 = vset.pattern.permute.xlu0 0
  %2950 = vperm.xlu0 %2949, %v2942
  %v2951 = vpop.permute.xlu0 %2950
  %2954 = vset.pattern.permute.xlu0 0
  %2955 = vperm.xlu0 %2954, %v2943
  %v2956 = vpop.permute.xlu0 %2955
  %v2958 = vmul.f32 %v2916, %v2951
  %v2959 = vmul.f32 %v2917, %v2956
  %2961 = vset.pattern.permute.xlu0 0
  %2962 = vperm.xlu0 %2961, %v2946
  %v2963 = vpop.permute.xlu0 %2962
  %2966 = vset.pattern.permute.xlu0 0
  %2967 = vperm.xlu0 %2966, %v2947
  %v2968 = vpop.permute.xlu0 %2967
  %v2970 = vadd.f32 %v2958, %v2963
  %v2971 = vadd.f32 %v2959, %v2968
  %v2972 = vld [vmem:[%s11] sm:$0xff]
  %v2973 = vld [vmem:[%s11 + $0x8] sm:$0xff]
  %2975 = vset.pattern.permute.xlu0 0
  %2976 = vperm.xlu0 %2975, %v2972
  %v2977 = vpop.permute.xlu0 %2976
  %2980 = vset.pattern.permute.xlu0 0
  %2981 = vperm.xlu0 %2980, %v2973
  %v2982 = vpop.permute.xlu0 %2981
  %v2984 = vmul.f32 %v2970, %v2977
  %v2985 = vmul.f32 %v2971, %v2982
  %v2986 = vsel %vm101, %v2984, 0.0
  %v2987 = vsel %vm101, %v2985, 0.0
  %v2988 = vadd.f32 %v2986, %v2987
  %v2989 = vrot.slane %v2988, 4
  %v2990 = vadd.f32 %v2988, %v2989
  %v2991 = vrot.slane %v2990, 2
  %v2992 = vadd.f32 %v2990, %v2991
  %v2993 = vrot.slane %v2992, 1
  %v2994 = vadd.f32 %v2992, %v2993
  %v2995 = vld [vmem:[#allocation2] sm:$0x1]
  %2997 = vset.pattern.permute.xlu0 0
  %2998 = vperm.xlu0 %2997, %v2995
  %v2999 = vpop.permute.xlu0 %2998
  %v3001 = vlaneseq
  %v3002 = vshrl.u32 %v3001, 7
  %v3003 = vsub.s32 0, %v3002
  %v3004 = vrot.slane %v2999, %v3003
  %v3005 = vadd.f32 %v2994, %v3004
  %vm3006 = vcmask 253952
  %3007 = vst.msk [vmem:[%s13] sm:$0x1] %vm3006, %v3005
  // Predicated region
  $region54: #{unet1d_forward.1} parent=0 // pred_check
    _
  $region55: #{unet1d_forward.1} parent=0 // pred_check_branch
    %3009 = sbr.rel (0) target = $region57
  $region56: #{unet1d_forward.1} parent=0 // pred_region
    _
  $region57: #{unet1d_forward.1} parent=0 // pred_fallthru
    _
  // Predicated region
  $region58: #{unet1d_forward.1} parent=0 // pred_check
    _
  $region59: #{unet1d_forward.1} parent=0 // pred_check_branch
    %3011 = sbr.rel (0) target = $region61
  $region60: #{unet1d_forward.1} parent=0 // pred_region
    _
  $region61: #{unet1d_forward.1} parent=0 // pred_fallthru
    _

</llo_original>
